<compile_context>
chip_gen: v6e
topology: v6e:2x2x1
jax: 0.10.0
libtpu: 0.0.40
codegen_flags: <defaults>
</compile_context>

<pallas_src>
import functools

import jax
import jax.numpy as jnp
from jax import lax
from jax.experimental import pallas as pl
from jax.experimental.pallas import tpu as pltpu


# ------------------------- in-kernel math helpers (f32) -------------------------

def _layernorm(x, g, b):
    # PyTorch LayerNorm, eps=1e-5, computed in f32.
    mu = jnp.mean(x, axis=-1, keepdims=True)
    xc = x - mu
    var = jnp.mean(xc * xc, axis=-1, keepdims=True)
    return xc * lax.rsqrt(var + 1e-5) * g + b


def _erf(z):
    # Abramowitz & Stegun 7.1.26 rational approximation, |err| < 1.5e-7 (~1 f32 ulp);
    # matches torch nn.GELU()'s exact erf to f32 precision using only mul/add/exp/div
    # (exp runs on the EUP slot on every TPU generation).
    a1, a2, a3 = 0.254829592, -0.284496736, 1.421413741
    a4, a5, pp = -1.453152027, 1.061405429, 0.3275911
    az = jnp.abs(z)
    t = 1.0 / (1.0 + pp * az)
    poly = ((((a5 * t + a4) * t + a3) * t + a2) * t + a1) * t
    y = 1.0 - poly * jnp.exp(-az * az)
    return jnp.where(z >= 0, y, -y)


def _gelu_exact(x):
    return 0.5 * x * (1.0 + _erf(x * 0.7071067811865476))


# --------------------------- fused ViT Pallas kernel ----------------------------

def _vit_fused_kernel(tok_ref, mask_ref, emb_ref, kbias_ref, gvec_ref,
                      patch_w_ref, w_qkv_ref, w_out_ref, w_ff1_ref, w_ff2_ref,
                      head_w_ref, lvec_ref,
                      o_ref, oheads_ref,
                      *, heads, dim_head, seq_len):
    f32, bf16 = jnp.float32, jnp.bfloat16
    M, patch_dim = tok_ref.shape
    dim = patch_w_ref.shape[1]
    mlp_dim = w_ff1_ref.shape[2]
    depth = w_qkv_ref.shape[0]
    inner = heads * dim_head
    T = seq_len
    Nimg = M // T
    n_class = o_ref.shape[1]

    # Packed global 1D parameters (one operand instead of eight).
    gv = gvec_ref[...]
    pln1_g, pln1_b = gv[0:1, :patch_dim], gv[1:2, :patch_dim]
    patch_b = gv[2:3, :dim]
    pln2_g, pln2_b = gv[3:4, :dim], gv[4:5, :dim]
    final_g, final_b = gv[5:6, :dim], gv[6:7, :dim]
    head_b = gv[7:8, :n_class]

    # ---- patch embedding: LN -> Linear -> LN (cls / pad slots carry zeros) ----
    e = _layernorm(tok_ref[...], pln1_g, pln1_b)
    e = jnp.dot(e.astype(bf16), patch_w_ref[...], preferred_element_type=f32) + patch_b
    e = _layernorm(e, pln2_g, pln2_b)

    # ---- cls token + positional embedding (pre-broadcast to (M,*) in the wrapper) ----
    # mask zeroes the dummy cls / pad slots; emb = pos_emb (+ cls token at slot 0).
    x = e * mask_ref[...] + emb_ref[...]                       # (M, dim)

    # Additive attention-score bias that masks the padded key position(s) to -1e9.
    kbias = kbias_ref[...].reshape(1, 1, T)

    # ---- transformer layers: activations stay resident in VMEM across the stack ----
    for d in range(depth):
        lv = lvec_ref[d]                                       # (8, K) packed per-layer vecs
        aln_g, aln_b = lv[0:1, :dim], lv[1:2, :dim]
        b_out = lv[2:3, :dim]
        fln_g, fln_b = lv[3:4, :dim], lv[4:5, :dim]
        b_ff1 = lv[5:6, :mlp_dim]
        b_ff2 = lv[6:7, :dim]

        # Attention (pre-norm, residual).  Q already carries 1/sqrt(dim_head) (folded into
        # the bf16 w_qkv at parameter-prep time).
        y = _layernorm(x, aln_g, aln_b).astype(bf16)
        qkv = jnp.dot(y, w_qkv_ref[d], preferred_element_type=f32)   # (M, 3*inner), no bias
        qkv = qkv.reshape(Nimg, T, 3 * inner).astype(bf16)           # tile-exact (T = 8)
        for h in range(heads):
            lo = h * dim_head
            q = qkv[:, :, lo:lo + dim_head]
            k = qkv[:, :, inner + lo:inner + lo + dim_head]
            v = qkv[:, :, 2 * inner + lo:2 * inner + lo + dim_head]
            s = jnp.einsum('bqd,bkd->bqk', q, k, preferred_element_type=f32) + kbias
            s = s - jnp.max(s, axis=-1, keepdims=True)
            p = jnp.exp(s)
            p = p * pl.reciprocal(jnp.sum(p, axis=-1, keepdims=True), approx=True)
            o_h = jnp.einsum('bqk,bkd->bqd', p.astype(bf16), v, preferred_element_type=f32)
            # Pack the head output into the (M, inner) VMEM slab (scratch ref) so the whole
            # out-projection is ONE merged (M,inner)@(inner,dim) matmul (no per-head
            # dot+accumulate chain, no unaligned lane concatenate).
            oheads_ref[:, lo:lo + dim_head] = o_h.reshape(M, dim_head)
        attn = jnp.dot(oheads_ref[...].astype(bf16), w_out_ref[d],
                       preferred_element_type=f32)
        x = x + attn + b_out

        # FeedForward: LN -> Linear -> exact GELU (fused, f32) -> Linear, residual.
        y = _layernorm(x, fln_g, fln_b).astype(bf16)
        hdn = jnp.dot(y, w_ff1_ref[d], preferred_element_type=f32) + b_ff1
        hdn = _gelu_exact(hdn)
        ff = jnp.dot(hdn.astype(bf16), w_ff2_ref[d], preferred_element_type=f32) + b_ff2
        x = x + ff

    # ---- cls pooling FIRST, then final LN + classifier head on only Nimg rows ----
    cls = x.reshape(Nimg, T, dim)[:, 0:1, :].reshape(Nimg, dim)
    cls = _layernorm(cls, final_g, final_b)
    logits = jnp.dot(cls.astype(bf16), head_w_ref[...], preferred_element_type=f32) + head_b
    o_ref[...] = logits.astype(o_ref.dtype)


# ------------------------------ ViT (lucidrains) --------------------------------

def init_vit_params(key, *, channels, image_size, patch_size, dim, depth, heads,
                    dim_head, mlp_dim, num_classes):
    ph, pw = patch_size
    H, W = image_size
    num_patches = (H // ph) * (W // pw)
    patch_dim = channels * ph * pw
    inner = heads * dim_head

    keys = iter(jax.random.split(key, 8 + depth * 6))

    def nrm(shape, std=0.02):
        return (std * jax.random.normal(next(keys), shape)).astype(jnp.float32)

    p = {
        'patch_ln1_g': jnp.ones((patch_dim,), jnp.float32),
        'patch_ln1_b': jnp.zeros((patch_dim,), jnp.float32),
        'patch_w': nrm((patch_dim, dim)),
        'patch_b': jnp.zeros((dim,), jnp.float32),
        'patch_ln2_g': jnp.ones((dim,), jnp.float32),
        'patch_ln2_b': jnp.zeros((dim,), jnp.float32),
        'pos_emb': nrm((1, num_patches + 1, dim), std=1.0),    # torch.randn
        'cls_token': nrm((1, 1, dim), std=1.0),                 # torch.randn
        'final_ln_g': jnp.ones((dim,), jnp.float32),
        'final_ln_b': jnp.zeros((dim,), jnp.float32),
    }
    layers = []
    for _ in range(depth):
        layers.append({
            'attn_ln_g': jnp.ones((dim,), jnp.float32),
            'attn_ln_b': jnp.zeros((dim,), jnp.float32),
            'w_qkv': nrm((dim, inner * 3)),                     # to_qkv, bias=False
            'w_out': nrm((inner, dim)),
            'b_out': jnp.zeros((dim,), jnp.float32),
            'ff_ln_g': jnp.ones((dim,), jnp.float32),
            'ff_ln_b': jnp.zeros((dim,), jnp.float32),
            'w_ff1': nrm((dim, mlp_dim)),
            'b_ff1': jnp.zeros((mlp_dim,), jnp.float32),
            'w_ff2': nrm((mlp_dim, dim)),
            'b_ff2': jnp.zeros((dim,), jnp.float32),
        })
    p['layers'] = layers
    p['head_w'] = nrm((dim, num_classes))
    p['head_b'] = jnp.zeros((num_classes,), jnp.float32)
    return p


def prepare_vit_params(p, *, image_size, patch_size, channels, heads, dim_head):
    """One-time (outside jit) weight packing: stack per-layer weights, cast matmul weights
    to bf16, fold 1/sqrt(dim_head) into the Q columns, pack 1D vectors into two arrays, and
    build the padded-sequence (T=8) cls/pos-embedding, token mask and pad-key score bias."""
    f32, bf16 = jnp.float32, jnp.bfloat16
    dim = p['patch_w'].shape[1]
    patch_dim = p['patch_w'].shape[0]
    mlp_dim = p['layers'][0]['w_ff1'].shape[1]
    n_class = p['head_w'].shape[1]
    depth = len(p['layers'])
    inner = heads * dim_head
    ph, pw = patch_size
    H, W = image_size
    n_patch = (H // ph) * (W // pw)
    T_real = n_patch + 1
    T_pad = ((T_real + 7) // 8) * 8          # sublane-align the per-image sequence

    def padrow(v, width):
        v = jnp.asarray(v, f32).reshape(-1)
        return jnp.pad(v, (0, width - v.shape[0]))

    Kg = max(patch_dim, dim, n_class)
    gvec = jnp.stack([
        padrow(p['patch_ln1_g'], Kg), padrow(p['patch_ln1_b'], Kg),
        padrow(p['patch_b'], Kg), padrow(p['patch_ln2_g'], Kg),
        padrow(p['patch_ln2_b'], Kg), padrow(p['final_ln_g'], Kg),
        padrow(p['final_ln_b'], Kg), padrow(p['head_b'], Kg)])

    K = max(dim, mlp_dim)
    lvec = jnp.stack([jnp.stack([
        padrow(l['attn_ln_g'], K), padrow(l['attn_ln_b'], K),
        padrow(l['b_out'], K), padrow(l['ff_ln_g'], K),
        padrow(l['ff_ln_b'], K), padrow(l['b_ff1'], K),
        padrow(l['b_ff2'], K), jnp.zeros((K,), f32)]) for l in p['layers']])

    # Fold the attention scale into the Q columns once (zero per-call / per-layer cost).
    w_qkv = jnp.stack([l['w_qkv'] for l in p['layers']]).astype(f32)
    w_qkv = w_qkv.at[:, :, :inner].multiply(dim_head ** -0.5)

    # cls+pos embedding / patch mask / pad-key bias for the padded sequence of length T_pad.
    pos = p['pos_emb'][0, :T_real].astype(f32)               # (T_real, dim)
    cls = p['cls_token'][0, 0].astype(f32)                   # (dim,)
    add_emb = jnp.concatenate([
        (pos[0] + cls)[None, :], pos[1:],
        jnp.zeros((T_pad - T_real, dim), f32)], axis=0)      # (T_pad, dim)
    tok_mask = jnp.concatenate([
        jnp.zeros((1, 1), f32), jnp.ones((T_real - 1, 1), f32),
        jnp.zeros((T_pad - T_real, 1), f32)], axis=0)        # (T_pad, 1)
    key_bias = jnp.concatenate([
        jnp.zeros((1, T_real), f32),
        jnp.full((1, T_pad - T_real), -1e9, f32)], axis=1)   # (1, T_pad)

    return {
        'patch_w': p['patch_w'].astype(bf16),
        'w_qkv': w_qkv.astype(bf16),
        'w_out': jnp.stack([l['w_out'] for l in p['layers']]).astype(bf16),
        'w_ff1': jnp.stack([l['w_ff1'] for l in p['layers']]).astype(bf16),
        'w_ff2': jnp.stack([l['w_ff2'] for l in p['layers']]).astype(bf16),
        'head_w': p['head_w'].astype(bf16),
        'gvec': gvec, 'lvec': lvec,
        'add_emb': add_emb, 'tok_mask': tok_mask, 'key_bias': key_bias,
    }


def vit_forward(prep, imgs, *, patch_size, heads, dim_head):
    """imgs: (Nimg, C, H, W) NCHW -> logits (Nimg, num_classes) via ONE fused Pallas kernel."""
    Nimg, C, H, W = imgs.shape
    ph, pw = patch_size
    hh, ww = H // ph, W // pw
    patch_dim = C * ph * pw
    n_patch = hh * ww
    T_real = n_patch + 1
    T_pad = prep['add_emb'].shape[0]
    dim = prep['add_emb'].shape[1]
    n_class = prep['head_w'].shape[1]
    inner = heads * dim_head
    M = Nimg * T_pad

    # Rearrange 'b c (h p1) (w p2) -> b (h w) (p1 p2 c)'  (pure relayout: left to XLA)
    x = imgs.reshape(Nimg, C, hh, ph, ww, pw)
    x = jnp.transpose(x, (0, 2, 4, 3, 5, 1))
    patches = x.reshape(Nimg, n_patch, patch_dim).astype(jnp.float32)

    # Flatten to (M, patch_dim) in the wrapper with a zero cls slot at position 0 and zero
    # pad slot(s) at the tail (content/removal handled by tok_mask / add_emb / key_bias).
    tok = jnp.concatenate([
        jnp.zeros((Nimg, 1, patch_dim), jnp.float32), patches,
        jnp.zeros((Nimg, T_pad - T_real, patch_dim), jnp.float32)], axis=1)
    tok = tok.reshape(M, patch_dim)
    tok_mask = jnp.tile(prep['tok_mask'], (Nimg, 1))   # (M, 1)
    add_emb = jnp.tile(prep['add_emb'], (Nimg, 1))     # (M, dim)

    kernel = functools.partial(_vit_fused_kernel,
                               heads=heads, dim_head=dim_head, seq_len=T_pad)
    return pl.pallas_call(
        kernel,
        out_shape=jax.ShapeDtypeStruct((Nimg, n_class), jnp.float32),
        scratch_shapes=[pltpu.VMEM((M, inner), jnp.float32)],   # packed head outputs
    )(tok, tok_mask, add_emb, prep['key_bias'], prep['gvec'],
      prep['patch_w'], prep['w_qkv'], prep['w_out'], prep['w_ff1'], prep['w_ff2'],
      prep['head_w'], prep['lvec'])


# ------------------------------- CRF (torchcrf) ----------------------------------
# TODO(synk): CRF recursion kept in plain JAX; it is a tiny (S=3, n_class=4) sequential
# integer-gather path, not a tensor hot path worth a Pallas kernel.  Python-unrolled so the
# jit sees straight-line HLO (no scan/while launches).

def crf_log_likelihood(emissions, tags, start, end, trans):
    # emissions: (S, B, NT), tags: (S, B) int; mask = all ones, reduction = 'sum'
    S, B, _ = emissions.shape
    bidx = jnp.arange(B)

    # numerator: score of the given tag path
    score = start[tags[0]] + emissions[0, bidx, tags[0]]
    for t in range(1, S):
        score = score + trans[tags[t - 1], tags[t]] + emissions[t, bidx, tags[t]]
    score = score + end[tags[S - 1]]

    # denominator: log partition via the forward algorithm
    alpha = start[None, :] + emissions[0]                      # (B, NT)
    for t in range(1, S):
        nxt = alpha[:, :, None] + trans[None, :, :] + emissions[t][:, None, :]
        alpha = jax.nn.logsumexp(nxt, axis=1)
    log_z = jax.nn.logsumexp(alpha + end[None, :], axis=1)

    return jnp.sum(score - log_z)                              # scalar (reduction='sum')


# ------------------------------- vit_crf forward ---------------------------------

def vit_crf_forward(prep, crf, input_seq, label, *, patch_size, heads, dim_head):
    # batch_first=False: input_seq (S, B, C, H, W); label (S, B)
    S, B = input_seq.shape[0], input_seq.shape[1]
    imgs = input_seq.reshape((-1,) + input_seq.shape[-3:])     # (S*B, C, H, W)
    emission = vit_forward(prep, imgs, patch_size=patch_size,
                           heads=heads, dim_head=dim_head)
    emission = emission.reshape(S, B, emission.shape[-1])      # (S, B, n_class)
    return crf_log_likelihood(emission, label, crf['start'], crf['end'], crf['trans'])


# ----------------------------------- main -----------------------------------------

if __name__ == "__main__":
    n_class = 4
    # Small config consistent with the module's structure (scaled-down ViT).
    config = dict(image_size=(48, 8), patch_size=(8, 8), channels=1,
                  dim=32, depth=2, heads=2, dim_head=16, mlp_dim=32,
                  num_classes=n_class)

    key = jax.random.PRNGKey(0)
    k_vit, k_crf, k_x, k_tag = jax.random.split(key, 4)

    vit_params = init_vit_params(
        k_vit, channels=config['channels'], image_size=config['image_size'],
        patch_size=config['patch_size'], dim=config['dim'], depth=config['depth'],
        heads=config['heads'], dim_head=config['dim_head'],
        mlp_dim=config['mlp_dim'], num_classes=n_class)

    # One-time weight packing / casting OUTSIDE the jitted forward (no per-call stacking).
    prep = prepare_vit_params(vit_params, image_size=config['image_size'],
                              patch_size=config['patch_size'], channels=config['channels'],
                              heads=config['heads'], dim_head=config['dim_head'])

    kc1, kc2, kc3 = jax.random.split(k_crf, 3)
    crf_params = {
        'start': jax.random.uniform(kc1, (n_class,), minval=-0.1, maxval=0.1),
        'end':   jax.random.uniform(kc2, (n_class,), minval=-0.1, maxval=0.1),
        'trans': jax.random.uniform(kc3, (n_class, n_class), minval=-0.1, maxval=0.1),
    }

    S, B = 3, 2
    H, W = config['image_size']
    input_seq = jax.random.normal(k_x, (S, B, config['channels'], H, W), jnp.float32)
    label = jax.random.randint(k_tag, (S, B), 0, n_class)

    fwd = jax.jit(functools.partial(vit_crf_forward,
                                    patch_size=config['patch_size'],
                                    heads=config['heads'], dim_head=config['dim_head']))
    out = fwd(prep, crf_params, input_seq, label)
    jax.block_until_ready(out)
    assert out.shape == () and jnp.isfinite(out)
    print("KERNEL_OK")
</pallas_src>

<mosaic_0001>
module attributes {stable_mosaic.version = 11 : i64} {
  func.func @_vit_fused_kernel(%arg0: memref<48x64xf32, #tpu.memory_space<vmem>>, %arg1: memref<48x1xf32, #tpu.memory_space<vmem>>, %arg2: memref<48x32xf32, #tpu.memory_space<vmem>>, %arg3: memref<1x8xf32, #tpu.memory_space<vmem>>, %arg4: memref<8x64xf32, #tpu.memory_space<vmem>>, %arg5: memref<64x32xbf16, #tpu.memory_space<vmem>>, %arg6: memref<2x32x96xbf16, #tpu.memory_space<vmem>>, %arg7: memref<2x32x32xbf16, #tpu.memory_space<vmem>>, %arg8: memref<2x32x32xbf16, #tpu.memory_space<vmem>>, %arg9: memref<2x32x32xbf16, #tpu.memory_space<vmem>>, %arg10: memref<32x4xbf16, #tpu.memory_space<vmem>>, %arg11: memref<2x8x32xf32, #tpu.memory_space<vmem>>, %arg12: memref<6x4xf32, #tpu.memory_space<vmem>>, %arg13: memref<48x32xf32, #tpu.memory_space<vmem>>) attributes {dimension_semantics = [], scalar_prefetch = 0 : i64, scratch_operands = 1 : i64, tpu.core_type = #tpu.core_type<tc>} {
    %c0 = arith.constant 0 : index
    %c0_0 = arith.constant 0 : index
    %0 = vector.load %arg4[%c0, %c0_0] : memref<8x64xf32, #tpu.memory_space<vmem>>, vector<8x64xf32>
    %1 = vector.extract_strided_slice %0 {offsets = [0, 0], sizes = [1, 64], strides = [1, 1]} : vector<8x64xf32> to vector<1x64xf32>
    %2 = vector.extract_strided_slice %0 {offsets = [1, 0], sizes = [1, 64], strides = [1, 1]} : vector<8x64xf32> to vector<1x64xf32>
    %3 = vector.extract_strided_slice %0 {offsets = [2, 0], sizes = [1, 32], strides = [1, 1]} : vector<8x64xf32> to vector<1x32xf32>
    %4 = vector.extract_strided_slice %0 {offsets = [3, 0], sizes = [1, 32], strides = [1, 1]} : vector<8x64xf32> to vector<1x32xf32>
    %5 = vector.extract_strided_slice %0 {offsets = [4, 0], sizes = [1, 32], strides = [1, 1]} : vector<8x64xf32> to vector<1x32xf32>
    %6 = vector.extract_strided_slice %0 {offsets = [5, 0], sizes = [1, 32], strides = [1, 1]} : vector<8x64xf32> to vector<1x32xf32>
    %7 = vector.extract_strided_slice %0 {offsets = [6, 0], sizes = [1, 32], strides = [1, 1]} : vector<8x64xf32> to vector<1x32xf32>
    %8 = vector.extract_strided_slice %0 {offsets = [7, 0], sizes = [1, 4], strides = [1, 1]} : vector<8x64xf32> to vector<1x4xf32>
    %c0_1 = arith.constant 0 : index
    %c0_2 = arith.constant 0 : index
    %9 = vector.load %arg0[%c0_1, %c0_2] : memref<48x64xf32, #tpu.memory_space<vmem>>, vector<48x64xf32>
    %cst = arith.constant dense<0.000000e+00> : vector<48xf32>
    %10 = vector.multi_reduction <add>, %9, %cst [1] : vector<48x64xf32> to vector<48xf32>
    %11 = vector.shape_cast %10 : vector<48xf32> to vector<48x1xf32>
    %cst_3 = arith.constant 6.400000e+01 : f32
    %12 = vector.broadcast %cst_3 : f32 to vector<48x1xf32>
    %13 = arith.divf %11, %12 : vector<48x1xf32>
    %14 = vector.broadcast %13 : vector<48x1xf32> to vector<48x64xf32>
    %15 = arith.subf %9, %14 : vector<48x64xf32>
    %16 = arith.mulf %15, %15 : vector<48x64xf32>
    %cst_4 = arith.constant dense<0.000000e+00> : vector<48xf32>
    %17 = vector.multi_reduction <add>, %16, %cst_4 [1] : vector<48x64xf32> to vector<48xf32>
    %18 = vector.shape_cast %17 : vector<48xf32> to vector<48x1xf32>
    %cst_5 = arith.constant 6.400000e+01 : f32
    %19 = vector.broadcast %cst_5 : f32 to vector<48x1xf32>
    %20 = arith.divf %18, %19 : vector<48x1xf32>
    %cst_6 = arith.constant 9.99999974E-6 : f32
    %21 = vector.broadcast %cst_6 : f32 to vector<48x1xf32>
    %22 = arith.addf %20, %21 : vector<48x1xf32>
    %23 = math.rsqrt %22 : vector<48x1xf32>
    %24 = vector.broadcast %23 : vector<48x1xf32> to vector<48x64xf32>
    %25 = arith.mulf %15, %24 : vector<48x64xf32>
    %26 = vector.broadcast %1 : vector<1x64xf32> to vector<48x64xf32>
    %27 = arith.mulf %25, %26 : vector<48x64xf32>
    %28 = vector.broadcast %2 : vector<1x64xf32> to vector<48x64xf32>
    %29 = arith.addf %27, %28 : vector<48x64xf32>
    %30 = arith.truncf %29 : vector<48x64xf32> to vector<48x64xbf16>
    %c0_7 = arith.constant 0 : index
    %c0_8 = arith.constant 0 : index
    %31 = vector.load %arg5[%c0_7, %c0_8] : memref<64x32xbf16, #tpu.memory_space<vmem>>, vector<64x32xbf16>
    %cst_9 = arith.constant dense<0.000000e+00> : vector<48x32xf32>
    %32 = tpu.matmul %30, %31, %cst_9 {dimension_numbers = #tpu.dot_dimension_numbers<[1], [0], [0], [1], [0, 0, 1, 1], [], []>} : vector<48x64xbf16>, vector<64x32xbf16>, vector<48x32xf32> -> vector<48x32xf32>
    %33 = vector.broadcast %3 : vector<1x32xf32> to vector<48x32xf32>
    %34 = arith.addf %32, %33 : vector<48x32xf32>
    %cst_10 = arith.constant dense<0.000000e+00> : vector<48xf32>
    %35 = vector.multi_reduction <add>, %34, %cst_10 [1] : vector<48x32xf32> to vector<48xf32>
    %36 = vector.shape_cast %35 : vector<48xf32> to vector<48x1xf32>
    %cst_11 = arith.constant 3.200000e+01 : f32
    %37 = vector.broadcast %cst_11 : f32 to vector<48x1xf32>
    %38 = arith.divf %36, %37 : vector<48x1xf32>
    %39 = vector.broadcast %38 : vector<48x1xf32> to vector<48x32xf32>
    %40 = arith.subf %34, %39 : vector<48x32xf32>
    %41 = arith.mulf %40, %40 : vector<48x32xf32>
    %cst_12 = arith.constant dense<0.000000e+00> : vector<48xf32>
    %42 = vector.multi_reduction <add>, %41, %cst_12 [1] : vector<48x32xf32> to vector<48xf32>
    %43 = vector.shape_cast %42 : vector<48xf32> to vector<48x1xf32>
    %cst_13 = arith.constant 3.200000e+01 : f32
    %44 = vector.broadcast %cst_13 : f32 to vector<48x1xf32>
    %45 = arith.divf %43, %44 : vector<48x1xf32>
    %cst_14 = arith.constant 9.99999974E-6 : f32
    %46 = vector.broadcast %cst_14 : f32 to vector<48x1xf32>
    %47 = arith.addf %45, %46 : vector<48x1xf32>
    %48 = math.rsqrt %47 : vector<48x1xf32>
    %49 = vector.broadcast %48 : vector<48x1xf32> to vector<48x32xf32>
    %50 = arith.mulf %40, %49 : vector<48x32xf32>
    %51 = vector.broadcast %4 : vector<1x32xf32> to vector<48x32xf32>
    %52 = arith.mulf %50, %51 : vector<48x32xf32>
    %53 = vector.broadcast %5 : vector<1x32xf32> to vector<48x32xf32>
    %54 = arith.addf %52, %53 : vector<48x32xf32>
    %c0_15 = arith.constant 0 : index
    %c0_16 = arith.constant 0 : index
    %55 = vector.load %arg1[%c0_15, %c0_16] : memref<48x1xf32, #tpu.memory_space<vmem>>, vector<48x1xf32>
    %56 = vector.broadcast %55 : vector<48x1xf32> to vector<48x32xf32>
    %57 = arith.mulf %54, %56 : vector<48x32xf32>
    %c0_17 = arith.constant 0 : index
    %c0_18 = arith.constant 0 : index
    %58 = vector.load %arg2[%c0_17, %c0_18] : memref<48x32xf32, #tpu.memory_space<vmem>>, vector<48x32xf32>
    %59 = arith.addf %57, %58 : vector<48x32xf32>
    %c0_19 = arith.constant 0 : index
    %c0_20 = arith.constant 0 : index
    %60 = vector.load %arg3[%c0_19, %c0_20] : memref<1x8xf32, #tpu.memory_space<vmem>>, vector<1x8xf32>
    %61 = vector.shape_cast %60 : vector<1x8xf32> to vector<1x1x8xf32>
    %c0_21 = arith.constant 0 : index
    %c0_22 = arith.constant 0 : index
    %c0_23 = arith.constant 0 : index
    %62 = vector.load %arg11[%c0_21, %c0_22, %c0_23] : memref<2x8x32xf32, #tpu.memory_space<vmem>>, vector<1x8x32xf32>
    %63 = vector.shape_cast %62 : vector<1x8x32xf32> to vector<8x32xf32>
    %64 = vector.extract_strided_slice %63 {offsets = [0, 0], sizes = [1, 32], strides = [1, 1]} : vector<8x32xf32> to vector<1x32xf32>
    %65 = vector.extract_strided_slice %63 {offsets = [1, 0], sizes = [1, 32], strides = [1, 1]} : vector<8x32xf32> to vector<1x32xf32>
    %66 = vector.extract_strided_slice %63 {offsets = [2, 0], sizes = [1, 32], strides = [1, 1]} : vector<8x32xf32> to vector<1x32xf32>
    %67 = vector.extract_strided_slice %63 {offsets = [3, 0], sizes = [1, 32], strides = [1, 1]} : vector<8x32xf32> to vector<1x32xf32>
    %68 = vector.extract_strided_slice %63 {offsets = [4, 0], sizes = [1, 32], strides = [1, 1]} : vector<8x32xf32> to vector<1x32xf32>
    %69 = vector.extract_strided_slice %63 {offsets = [5, 0], sizes = [1, 32], strides = [1, 1]} : vector<8x32xf32> to vector<1x32xf32>
    %70 = vector.extract_strided_slice %63 {offsets = [6, 0], sizes = [1, 32], strides = [1, 1]} : vector<8x32xf32> to vector<1x32xf32>
    %cst_24 = arith.constant dense<0.000000e+00> : vector<48xf32>
    %71 = vector.multi_reduction <add>, %59, %cst_24 [1] : vector<48x32xf32> to vector<48xf32>
    %72 = vector.shape_cast %71 : vector<48xf32> to vector<48x1xf32>
    %cst_25 = arith.constant 3.200000e+01 : f32
    %73 = vector.broadcast %cst_25 : f32 to vector<48x1xf32>
    %74 = arith.divf %72, %73 : vector<48x1xf32>
    %75 = vector.broadcast %74 : vector<48x1xf32> to vector<48x32xf32>
    %76 = arith.subf %59, %75 : vector<48x32xf32>
    %77 = arith.mulf %76, %76 : vector<48x32xf32>
    %cst_26 = arith.constant dense<0.000000e+00> : vector<48xf32>
    %78 = vector.multi_reduction <add>, %77, %cst_26 [1] : vector<48x32xf32> to vector<48xf32>
    %79 = vector.shape_cast %78 : vector<48xf32> to vector<48x1xf32>
    %cst_27 = arith.constant 3.200000e+01 : f32
    %80 = vector.broadcast %cst_27 : f32 to vector<48x1xf32>
    %81 = arith.divf %79, %80 : vector<48x1xf32>
    %cst_28 = arith.constant 9.99999974E-6 : f32
    %82 = vector.broadcast %cst_28 : f32 to vector<48x1xf32>
    %83 = arith.addf %81, %82 : vector<48x1xf32>
    %84 = math.rsqrt %83 : vector<48x1xf32>
    %85 = vector.broadcast %84 : vector<48x1xf32> to vector<48x32xf32>
    %86 = arith.mulf %76, %85 : vector<48x32xf32>
    %87 = vector.broadcast %64 : vector<1x32xf32> to vector<48x32xf32>
    %88 = arith.mulf %86, %87 : vector<48x32xf32>
    %89 = vector.broadcast %65 : vector<1x32xf32> to vector<48x32xf32>
    %90 = arith.addf %88, %89 : vector<48x32xf32>
    %91 = arith.truncf %90 : vector<48x32xf32> to vector<48x32xbf16>
    %c0_29 = arith.constant 0 : index
    %c0_30 = arith.constant 0 : index
    %c0_31 = arith.constant 0 : index
    %92 = vector.load %arg6[%c0_29, %c0_30, %c0_31] : memref<2x32x96xbf16, #tpu.memory_space<vmem>>, vector<1x32x96xbf16>
    %93 = vector.shape_cast %92 : vector<1x32x96xbf16> to vector<32x96xbf16>
    %cst_32 = arith.constant dense<0.000000e+00> : vector<48x96xf32>
    %94 = tpu.matmul %91, %93, %cst_32 {dimension_numbers = #tpu.dot_dimension_numbers<[1], [0], [0], [1], [0, 0, 1, 1], [], []>} : vector<48x32xbf16>, vector<32x96xbf16>, vector<48x96xf32> -> vector<48x96xf32>
    %95 = vector.shape_cast %94 : vector<48x96xf32> to vector<6x8x96xf32>
    %96 = arith.truncf %95 : vector<6x8x96xf32> to vector<6x8x96xbf16>
    %97 = vector.extract_strided_slice %96 {offsets = [0, 0, 0], sizes = [6, 8, 16], strides = [1, 1, 1]} : vector<6x8x96xbf16> to vector<6x8x16xbf16>
    %98 = vector.extract_strided_slice %96 {offsets = [0, 0, 32], sizes = [6, 8, 16], strides = [1, 1, 1]} : vector<6x8x96xbf16> to vector<6x8x16xbf16>
    %99 = vector.extract_strided_slice %96 {offsets = [0, 0, 64], sizes = [6, 8, 16], strides = [1, 1, 1]} : vector<6x8x96xbf16> to vector<6x8x16xbf16>
    "tpu.trace_start"() <{level = 10 : i32, message = "bqd,bkd->bqk"}> : () -> ()
    %cst_33 = arith.constant dense<0.000000e+00> : vector<6x8x8xf32>
    %100 = tpu.matmul %97, %98, %cst_33 {dimension_numbers = #tpu.dot_dimension_numbers<[2], [2], [1], [1], [0, 0, 0, 1, 1, 1], [0], [0]>} : vector<6x8x16xbf16>, vector<6x8x16xbf16>, vector<6x8x8xf32> -> vector<6x8x8xf32>
    "tpu.trace_stop"() : () -> ()
    %101 = vector.broadcast %61 : vector<1x1x8xf32> to vector<6x8x8xf32>
    %102 = arith.addf %100, %101 : vector<6x8x8xf32>
    %cst_34 = arith.constant dense<0xFF800000> : vector<6x8xf32>
    %103 = vector.multi_reduction <maximumf>, %102, %cst_34 [2] : vector<6x8x8xf32> to vector<6x8xf32>
    %104 = vector.shape_cast %103 : vector<6x8xf32> to vector<6x8x1xf32>
    %105 = vector.broadcast %104 : vector<6x8x1xf32> to vector<6x8x8xf32>
    %106 = arith.subf %102, %105 : vector<6x8x8xf32>
    %107 = math.exp %106 : vector<6x8x8xf32>
    %cst_35 = arith.constant dense<0.000000e+00> : vector<6x8xf32>
    %108 = vector.multi_reduction <add>, %107, %cst_35 [2] : vector<6x8x8xf32> to vector<6x8xf32>
    %109 = vector.shape_cast %108 : vector<6x8xf32> to vector<6x8x1xf32>
    %110 = tpu.reciprocal %109 {approx = true} : vector<6x8x1xf32> -> vector<6x8x1xf32>
    %111 = vector.broadcast %110 : vector<6x8x1xf32> to vector<6x8x8xf32>
    %112 = arith.mulf %107, %111 : vector<6x8x8xf32>
    %113 = arith.truncf %112 : vector<6x8x8xf32> to vector<6x8x8xbf16>
    "tpu.trace_start"() <{level = 10 : i32, message = "bqk,bkd->bqd"}> : () -> ()
    %cst_36 = arith.constant dense<0.000000e+00> : vector<6x8x16xf32>
    %114 = tpu.matmul %113, %99, %cst_36 {dimension_numbers = #tpu.dot_dimension_numbers<[2], [1], [1], [2], [0, 0, 0, 1, 1, 2], [0], [0]>} : vector<6x8x8xbf16>, vector<6x8x16xbf16>, vector<6x8x16xf32> -> vector<6x8x16xf32>
    "tpu.trace_stop"() : () -> ()
    %115 = vector.shape_cast %114 : vector<6x8x16xf32> to vector<48x16xf32>
    %c0_37 = arith.constant 0 : index
    %c0_38 = arith.constant 0 : index
    %116 = vector.load %arg13[%c0_37, %c0_38] : memref<48x32xf32, #tpu.memory_space<vmem>>, vector<48x16xf32>
    tpu.vector_store %arg13[%c0_37, %c0_38], %115 {strides = array<i32>} : memref<48x32xf32, #tpu.memory_space<vmem>>, vector<48x16xf32>,
    %117 = vector.extract_strided_slice %96 {offsets = [0, 0, 16], sizes = [6, 8, 16], strides = [1, 1, 1]} : vector<6x8x96xbf16> to vector<6x8x16xbf16>
    %118 = vector.extract_strided_slice %96 {offsets = [0, 0, 48], sizes = [6, 8, 16], strides = [1, 1, 1]} : vector<6x8x96xbf16> to vector<6x8x16xbf16>
    %119 = vector.extract_strided_slice %96 {offsets = [0, 0, 80], sizes = [6, 8, 16], strides = [1, 1, 1]} : vector<6x8x96xbf16> to vector<6x8x16xbf16>
    "tpu.trace_start"() <{level = 10 : i32, message = "bqd,bkd->bqk"}> : () -> ()
    %cst_39 = arith.constant dense<0.000000e+00> : vector<6x8x8xf32>
    %120 = tpu.matmul %117, %118, %cst_39 {dimension_numbers = #tpu.dot_dimension_numbers<[2], [2], [1], [1], [0, 0, 0, 1, 1, 1], [0], [0]>} : vector<6x8x16xbf16>, vector<6x8x16xbf16>, vector<6x8x8xf32> -> vector<6x8x8xf32>
    "tpu.trace_stop"() : () -> ()
    %121 = vector.broadcast %61 : vector<1x1x8xf32> to vector<6x8x8xf32>
    %122 = arith.addf %120, %121 : vector<6x8x8xf32>
    %cst_40 = arith.constant dense<0xFF800000> : vector<6x8xf32>
    %123 = vector.multi_reduction <maximumf>, %122, %cst_40 [2] : vector<6x8x8xf32> to vector<6x8xf32>
    %124 = vector.shape_cast %123 : vector<6x8xf32> to vector<6x8x1xf32>
    %125 = vector.broadcast %124 : vector<6x8x1xf32> to vector<6x8x8xf32>
    %126 = arith.subf %122, %125 : vector<6x8x8xf32>
    %127 = math.exp %126 : vector<6x8x8xf32>
    %cst_41 = arith.constant dense<0.000000e+00> : vector<6x8xf32>
    %128 = vector.multi_reduction <add>, %127, %cst_41 [2] : vector<6x8x8xf32> to vector<6x8xf32>
    %129 = vector.shape_cast %128 : vector<6x8xf32> to vector<6x8x1xf32>
    %130 = tpu.reciprocal %129 {approx = true} : vector<6x8x1xf32> -> vector<6x8x1xf32>
    %131 = vector.broadcast %130 : vector<6x8x1xf32> to vector<6x8x8xf32>
    %132 = arith.mulf %127, %131 : vector<6x8x8xf32>
    %133 = arith.truncf %132 : vector<6x8x8xf32> to vector<6x8x8xbf16>
    "tpu.trace_start"() <{level = 10 : i32, message = "bqk,bkd->bqd"}> : () -> ()
    %cst_42 = arith.constant dense<0.000000e+00> : vector<6x8x16xf32>
    %134 = tpu.matmul %133, %119, %cst_42 {dimension_numbers = #tpu.dot_dimension_numbers<[2], [1], [1], [2], [0, 0, 0, 1, 1, 2], [0], [0]>} : vector<6x8x8xbf16>, vector<6x8x16xbf16>, vector<6x8x16xf32> -> vector<6x8x16xf32>
    "tpu.trace_stop"() : () -> ()
    %135 = vector.shape_cast %134 : vector<6x8x16xf32> to vector<48x16xf32>
    %c0_43 = arith.constant 0 : index
    %c16 = arith.constant 16 : index
    %136 = vector.load %arg13[%c0_43, %c16] : memref<48x32xf32, #tpu.memory_space<vmem>>, vector<48x16xf32>
    tpu.vector_store %arg13[%c0_43, %c16], %135 {strides = array<i32>} : memref<48x32xf32, #tpu.memory_space<vmem>>, vector<48x16xf32>,
    %c0_44 = arith.constant 0 : index
    %c0_45 = arith.constant 0 : index
    %137 = vector.load %arg13[%c0_44, %c0_45] : memref<48x32xf32, #tpu.memory_space<vmem>>, vector<48x32xf32>
    %138 = arith.truncf %137 : vector<48x32xf32> to vector<48x32xbf16>
    %c0_46 = arith.constant 0 : index
    %c0_47 = arith.constant 0 : index
    %c0_48 = arith.constant 0 : index
    %139 = vector.load %arg7[%c0_46, %c0_47, %c0_48] : memref<2x32x32xbf16, #tpu.memory_space<vmem>>, vector<1x32x32xbf16>
    %140 = vector.shape_cast %139 : vector<1x32x32xbf16> to vector<32x32xbf16>
    %cst_49 = arith.constant dense<0.000000e+00> : vector<48x32xf32>
    %141 = tpu.matmul %138, %140, %cst_49 {dimension_numbers = #tpu.dot_dimension_numbers<[1], [0], [0], [1], [0, 0, 1, 1], [], []>} : vector<48x32xbf16>, vector<32x32xbf16>, vector<48x32xf32> -> vector<48x32xf32>
    %142 = arith.addf %59, %141 : vector<48x32xf32>
    %143 = vector.broadcast %66 : vector<1x32xf32> to vector<48x32xf32>
    %144 = arith.addf %142, %143 : vector<48x32xf32>
    %cst_50 = arith.constant dense<0.000000e+00> : vector<48xf32>
    %145 = vector.multi_reduction <add>, %144, %cst_50 [1] : vector<48x32xf32> to vector<48xf32>
    %146 = vector.shape_cast %145 : vector<48xf32> to vector<48x1xf32>
    %cst_51 = arith.constant 3.200000e+01 : f32
    %147 = vector.broadcast %cst_51 : f32 to vector<48x1xf32>
    %148 = arith.divf %146, %147 : vector<48x1xf32>
    %149 = vector.broadcast %148 : vector<48x1xf32> to vector<48x32xf32>
    %150 = arith.subf %144, %149 : vector<48x32xf32>
    %151 = arith.mulf %150, %150 : vector<48x32xf32>
    %cst_52 = arith.constant dense<0.000000e+00> : vector<48xf32>
    %152 = vector.multi_reduction <add>, %151, %cst_52 [1] : vector<48x32xf32> to vector<48xf32>
    %153 = vector.shape_cast %152 : vector<48xf32> to vector<48x1xf32>
    %cst_53 = arith.constant 3.200000e+01 : f32
    %154 = vector.broadcast %cst_53 : f32 to vector<48x1xf32>
    %155 = arith.divf %153, %154 : vector<48x1xf32>
    %cst_54 = arith.constant 9.99999974E-6 : f32
    %156 = vector.broadcast %cst_54 : f32 to vector<48x1xf32>
    %157 = arith.addf %155, %156 : vector<48x1xf32>
    %158 = math.rsqrt %157 : vector<48x1xf32>
    %159 = vector.broadcast %158 : vector<48x1xf32> to vector<48x32xf32>
    %160 = arith.mulf %150, %159 : vector<48x32xf32>
    %161 = vector.broadcast %67 : vector<1x32xf32> to vector<48x32xf32>
    %162 = arith.mulf %160, %161 : vector<48x32xf32>
    %163 = vector.broadcast %68 : vector<1x32xf32> to vector<48x32xf32>
    %164 = arith.addf %162, %163 : vector<48x32xf32>
    %165 = arith.truncf %164 : vector<48x32xf32> to vector<48x32xbf16>
    %c0_55 = arith.constant 0 : index
    %c0_56 = arith.constant 0 : index
    %c0_57 = arith.constant 0 : index
    %166 = vector.load %arg8[%c0_55, %c0_56, %c0_57] : memref<2x32x32xbf16, #tpu.memory_space<vmem>>, vector<1x32x32xbf16>
    %167 = vector.shape_cast %166 : vector<1x32x32xbf16> to vector<32x32xbf16>
    %cst_58 = arith.constant dense<0.000000e+00> : vector<48x32xf32>
    %168 = tpu.matmul %165, %167, %cst_58 {dimension_numbers = #tpu.dot_dimension_numbers<[1], [0], [0], [1], [0, 0, 1, 1], [], []>} : vector<48x32xbf16>, vector<32x32xbf16>, vector<48x32xf32> -> vector<48x32xf32>
    %169 = vector.broadcast %69 : vector<1x32xf32> to vector<48x32xf32>
    %170 = arith.addf %168, %169 : vector<48x32xf32>
    %cst_59 = arith.constant 5.000000e-01 : f32
    %171 = vector.broadcast %cst_59 : f32 to vector<48x32xf32>
    %172 = arith.mulf %171, %170 : vector<48x32xf32>
    %cst_60 = arith.constant 0.707106769 : f32
    %173 = vector.broadcast %cst_60 : f32 to vector<48x32xf32>
    %174 = arith.mulf %170, %173 : vector<48x32xf32>
    %175 = math.absf %174 : vector<48x32xf32>
    %cst_61 = arith.constant 0.327591091 : f32
    %176 = vector.broadcast %cst_61 : f32 to vector<48x32xf32>
    %177 = arith.mulf %176, %175 : vector<48x32xf32>
    %cst_62 = arith.constant 1.000000e+00 : f32
    %178 = vector.broadcast %cst_62 : f32 to vector<48x32xf32>
    %179 = arith.addf %178, %177 : vector<48x32xf32>
    %cst_63 = arith.constant 1.000000e+00 : f32
    %180 = vector.broadcast %cst_63 : f32 to vector<48x32xf32>
    %181 = arith.divf %180, %179 : vector<48x32xf32>
    %cst_64 = arith.constant 1.06140542 : f32
    %182 = vector.broadcast %cst_64 : f32 to vector<48x32xf32>
    %183 = arith.mulf %182, %181 : vector<48x32xf32>
    %cst_65 = arith.constant -1.45315206 : f32
    %184 = vector.broadcast %cst_65 : f32 to vector<48x32xf32>
    %185 = arith.addf %183, %184 : vector<48x32xf32>
    %186 = arith.mulf %185, %181 : vector<48x32xf32>
    %cst_66 = arith.constant 1.42141378 : f32
    %187 = vector.broadcast %cst_66 : f32 to vector<48x32xf32>
    %188 = arith.addf %186, %187 : vector<48x32xf32>
    %189 = arith.mulf %188, %181 : vector<48x32xf32>
    %cst_67 = arith.constant -0.284496725 : f32
    %190 = vector.broadcast %cst_67 : f32 to vector<48x32xf32>
    %191 = arith.addf %189, %190 : vector<48x32xf32>
    %192 = arith.mulf %191, %181 : vector<48x32xf32>
    %cst_68 = arith.constant 0.254829586 : f32
    %193 = vector.broadcast %cst_68 : f32 to vector<48x32xf32>
    %194 = arith.addf %192, %193 : vector<48x32xf32>
    %195 = arith.mulf %194, %181 : vector<48x32xf32>
    %cst_69 = arith.constant 0.000000e+00 : f32
    %196 = vector.broadcast %cst_69 : f32 to vector<48x32xf32>
    %197 = arith.subf %196, %175 : vector<48x32xf32>
    %198 = arith.mulf %197, %175 : vector<48x32xf32>
    %199 = math.exp %198 : vector<48x32xf32>
    %200 = arith.mulf %195, %199 : vector<48x32xf32>
    %cst_70 = arith.constant 1.000000e+00 : f32
    %201 = vector.broadcast %cst_70 : f32 to vector<48x32xf32>
    %202 = arith.subf %201, %200 : vector<48x32xf32>
    %cst_71 = arith.constant 0.000000e+00 : f32
    %203 = vector.broadcast %cst_71 : f32 to vector<48x32xf32>
    %204 = arith.cmpf oge, %174, %203 : vector<48x32xf32>
    %cst_72 = arith.constant 0.000000e+00 : f32
    %205 = vector.broadcast %cst_72 : f32 to vector<48x32xf32>
    %206 = arith.subf %205, %202 : vector<48x32xf32>
    %207 = arith.select %204, %202, %206 : vector<48x32xi1>, vector<48x32xf32>
    %cst_73 = arith.constant 1.000000e+00 : f32
    %208 = vector.broadcast %cst_73 : f32 to vector<48x32xf32>
    %209 = arith.addf %208, %207 : vector<48x32xf32>
    %210 = arith.mulf %172, %209 : vector<48x32xf32>
    %211 = arith.truncf %210 : vector<48x32xf32> to vector<48x32xbf16>
    %c0_74 = arith.constant 0 : index
    %c0_75 = arith.constant 0 : index
    %c0_76 = arith.constant 0 : index
    %212 = vector.load %arg9[%c0_74, %c0_75, %c0_76] : memref<2x32x32xbf16, #tpu.memory_space<vmem>>, vector<1x32x32xbf16>
    %213 = vector.shape_cast %212 : vector<1x32x32xbf16> to vector<32x32xbf16>
    %cst_77 = arith.constant dense<0.000000e+00> : vector<48x32xf32>
    %214 = tpu.matmul %211, %213, %cst_77 {dimension_numbers = #tpu.dot_dimension_numbers<[1], [0], [0], [1], [0, 0, 1, 1], [], []>} : vector<48x32xbf16>, vector<32x32xbf16>, vector<48x32xf32> -> vector<48x32xf32>
    %215 = vector.broadcast %70 : vector<1x32xf32> to vector<48x32xf32>
    %216 = arith.addf %214, %215 : vector<48x32xf32>
    %217 = arith.addf %144, %216 : vector<48x32xf32>
    %c1 = arith.constant 1 : index
    %c0_78 = arith.constant 0 : index
    %c0_79 = arith.constant 0 : index
    %218 = vector.load %arg11[%c1, %c0_78, %c0_79] : memref<2x8x32xf32, #tpu.memory_space<vmem>>, vector<1x8x32xf32>
    %219 = vector.shape_cast %218 : vector<1x8x32xf32> to vector<8x32xf32>
    %220 = vector.extract_strided_slice %219 {offsets = [0, 0], sizes = [1, 32], strides = [1, 1]} : vector<8x32xf32> to vector<1x32xf32>
    %221 = vector.extract_strided_slice %219 {offsets = [1, 0], sizes = [1, 32], strides = [1, 1]} : vector<8x32xf32> to vector<1x32xf32>
    %222 = vector.extract_strided_slice %219 {offsets = [2, 0], sizes = [1, 32], strides = [1, 1]} : vector<8x32xf32> to vector<1x32xf32>
    %223 = vector.extract_strided_slice %219 {offsets = [3, 0], sizes = [1, 32], strides = [1, 1]} : vector<8x32xf32> to vector<1x32xf32>
    %224 = vector.extract_strided_slice %219 {offsets = [4, 0], sizes = [1, 32], strides = [1, 1]} : vector<8x32xf32> to vector<1x32xf32>
    %225 = vector.extract_strided_slice %219 {offsets = [5, 0], sizes = [1, 32], strides = [1, 1]} : vector<8x32xf32> to vector<1x32xf32>
    %226 = vector.extract_strided_slice %219 {offsets = [6, 0], sizes = [1, 32], strides = [1, 1]} : vector<8x32xf32> to vector<1x32xf32>
    %cst_80 = arith.constant dense<0.000000e+00> : vector<48xf32>
    %227 = vector.multi_reduction <add>, %217, %cst_80 [1] : vector<48x32xf32> to vector<48xf32>
    %228 = vector.shape_cast %227 : vector<48xf32> to vector<48x1xf32>
    %cst_81 = arith.constant 3.200000e+01 : f32
    %229 = vector.broadcast %cst_81 : f32 to vector<48x1xf32>
    %230 = arith.divf %228, %229 : vector<48x1xf32>
    %231 = vector.broadcast %230 : vector<48x1xf32> to vector<48x32xf32>
    %232 = arith.subf %217, %231 : vector<48x32xf32>
    %233 = arith.mulf %232, %232 : vector<48x32xf32>
    %cst_82 = arith.constant dense<0.000000e+00> : vector<48xf32>
    %234 = vector.multi_reduction <add>, %233, %cst_82 [1] : vector<48x32xf32> to vector<48xf32>
    %235 = vector.shape_cast %234 : vector<48xf32> to vector<48x1xf32>
    %cst_83 = arith.constant 3.200000e+01 : f32
    %236 = vector.broadcast %cst_83 : f32 to vector<48x1xf32>
    %237 = arith.divf %235, %236 : vector<48x1xf32>
    %cst_84 = arith.constant 9.99999974E-6 : f32
    %238 = vector.broadcast %cst_84 : f32 to vector<48x1xf32>
    %239 = arith.addf %237, %238 : vector<48x1xf32>
    %240 = math.rsqrt %239 : vector<48x1xf32>
    %241 = vector.broadcast %240 : vector<48x1xf32> to vector<48x32xf32>
    %242 = arith.mulf %232, %241 : vector<48x32xf32>
    %243 = vector.broadcast %220 : vector<1x32xf32> to vector<48x32xf32>
    %244 = arith.mulf %242, %243 : vector<48x32xf32>
    %245 = vector.broadcast %221 : vector<1x32xf32> to vector<48x32xf32>
    %246 = arith.addf %244, %245 : vector<48x32xf32>
    %247 = arith.truncf %246 : vector<48x32xf32> to vector<48x32xbf16>
    %c1_85 = arith.constant 1 : index
    %c0_86 = arith.constant 0 : index
    %c0_87 = arith.constant 0 : index
    %248 = vector.load %arg6[%c1_85, %c0_86, %c0_87] : memref<2x32x96xbf16, #tpu.memory_space<vmem>>, vector<1x32x96xbf16>
    %249 = vector.shape_cast %248 : vector<1x32x96xbf16> to vector<32x96xbf16>
    %cst_88 = arith.constant dense<0.000000e+00> : vector<48x96xf32>
    %250 = tpu.matmul %247, %249, %cst_88 {dimension_numbers = #tpu.dot_dimension_numbers<[1], [0], [0], [1], [0, 0, 1, 1], [], []>} : vector<48x32xbf16>, vector<32x96xbf16>, vector<48x96xf32> -> vector<48x96xf32>
    %251 = vector.shape_cast %250 : vector<48x96xf32> to vector<6x8x96xf32>
    %252 = arith.truncf %251 : vector<6x8x96xf32> to vector<6x8x96xbf16>
    %253 = vector.extract_strided_slice %252 {offsets = [0, 0, 0], sizes = [6, 8, 16], strides = [1, 1, 1]} : vector<6x8x96xbf16> to vector<6x8x16xbf16>
    %254 = vector.extract_strided_slice %252 {offsets = [0, 0, 32], sizes = [6, 8, 16], strides = [1, 1, 1]} : vector<6x8x96xbf16> to vector<6x8x16xbf16>
    %255 = vector.extract_strided_slice %252 {offsets = [0, 0, 64], sizes = [6, 8, 16], strides = [1, 1, 1]} : vector<6x8x96xbf16> to vector<6x8x16xbf16>
    "tpu.trace_start"() <{level = 10 : i32, message = "bqd,bkd->bqk"}> : () -> ()
    %cst_89 = arith.constant dense<0.000000e+00> : vector<6x8x8xf32>
    %256 = tpu.matmul %253, %254, %cst_89 {dimension_numbers = #tpu.dot_dimension_numbers<[2], [2], [1], [1], [0, 0, 0, 1, 1, 1], [0], [0]>} : vector<6x8x16xbf16>, vector<6x8x16xbf16>, vector<6x8x8xf32> -> vector<6x8x8xf32>
    "tpu.trace_stop"() : () -> ()
    %257 = vector.broadcast %61 : vector<1x1x8xf32> to vector<6x8x8xf32>
    %258 = arith.addf %256, %257 : vector<6x8x8xf32>
    %cst_90 = arith.constant dense<0xFF800000> : vector<6x8xf32>
    %259 = vector.multi_reduction <maximumf>, %258, %cst_90 [2] : vector<6x8x8xf32> to vector<6x8xf32>
    %260 = vector.shape_cast %259 : vector<6x8xf32> to vector<6x8x1xf32>
    %261 = vector.broadcast %260 : vector<6x8x1xf32> to vector<6x8x8xf32>
    %262 = arith.subf %258, %261 : vector<6x8x8xf32>
    %263 = math.exp %262 : vector<6x8x8xf32>
    %cst_91 = arith.constant dense<0.000000e+00> : vector<6x8xf32>
    %264 = vector.multi_reduction <add>, %263, %cst_91 [2] : vector<6x8x8xf32> to vector<6x8xf32>
    %265 = vector.shape_cast %264 : vector<6x8xf32> to vector<6x8x1xf32>
    %266 = tpu.reciprocal %265 {approx = true} : vector<6x8x1xf32> -> vector<6x8x1xf32>
    %267 = vector.broadcast %266 : vector<6x8x1xf32> to vector<6x8x8xf32>
    %268 = arith.mulf %263, %267 : vector<6x8x8xf32>
    %269 = arith.truncf %268 : vector<6x8x8xf32> to vector<6x8x8xbf16>
    "tpu.trace_start"() <{level = 10 : i32, message = "bqk,bkd->bqd"}> : () -> ()
    %cst_92 = arith.constant dense<0.000000e+00> : vector<6x8x16xf32>
    %270 = tpu.matmul %269, %255, %cst_92 {dimension_numbers = #tpu.dot_dimension_numbers<[2], [1], [1], [2], [0, 0, 0, 1, 1, 2], [0], [0]>} : vector<6x8x8xbf16>, vector<6x8x16xbf16>, vector<6x8x16xf32> -> vector<6x8x16xf32>
    "tpu.trace_stop"() : () -> ()
    %271 = vector.shape_cast %270 : vector<6x8x16xf32> to vector<48x16xf32>
    %c0_93 = arith.constant 0 : index
    %c0_94 = arith.constant 0 : index
    %272 = vector.load %arg13[%c0_93, %c0_94] : memref<48x32xf32, #tpu.memory_space<vmem>>, vector<48x16xf32>
    tpu.vector_store %arg13[%c0_93, %c0_94], %271 {strides = array<i32>} : memref<48x32xf32, #tpu.memory_space<vmem>>, vector<48x16xf32>,
    %273 = vector.extract_strided_slice %252 {offsets = [0, 0, 16], sizes = [6, 8, 16], strides = [1, 1, 1]} : vector<6x8x96xbf16> to vector<6x8x16xbf16>
    %274 = vector.extract_strided_slice %252 {offsets = [0, 0, 48], sizes = [6, 8, 16], strides = [1, 1, 1]} : vector<6x8x96xbf16> to vector<6x8x16xbf16>
    %275 = vector.extract_strided_slice %252 {offsets = [0, 0, 80], sizes = [6, 8, 16], strides = [1, 1, 1]} : vector<6x8x96xbf16> to vector<6x8x16xbf16>
    "tpu.trace_start"() <{level = 10 : i32, message = "bqd,bkd->bqk"}> : () -> ()
    %cst_95 = arith.constant dense<0.000000e+00> : vector<6x8x8xf32>
    %276 = tpu.matmul %273, %274, %cst_95 {dimension_numbers = #tpu.dot_dimension_numbers<[2], [2], [1], [1], [0, 0, 0, 1, 1, 1], [0], [0]>} : vector<6x8x16xbf16>, vector<6x8x16xbf16>, vector<6x8x8xf32> -> vector<6x8x8xf32>
    "tpu.trace_stop"() : () -> ()
    %277 = vector.broadcast %61 : vector<1x1x8xf32> to vector<6x8x8xf32>
    %278 = arith.addf %276, %277 : vector<6x8x8xf32>
    %cst_96 = arith.constant dense<0xFF800000> : vector<6x8xf32>
    %279 = vector.multi_reduction <maximumf>, %278, %cst_96 [2] : vector<6x8x8xf32> to vector<6x8xf32>
    %280 = vector.shape_cast %279 : vector<6x8xf32> to vector<6x8x1xf32>
    %281 = vector.broadcast %280 : vector<6x8x1xf32> to vector<6x8x8xf32>
    %282 = arith.subf %278, %281 : vector<6x8x8xf32>
    %283 = math.exp %282 : vector<6x8x8xf32>
    %cst_97 = arith.constant dense<0.000000e+00> : vector<6x8xf32>
    %284 = vector.multi_reduction <add>, %283, %cst_97 [2] : vector<6x8x8xf32> to vector<6x8xf32>
    %285 = vector.shape_cast %284 : vector<6x8xf32> to vector<6x8x1xf32>
    %286 = tpu.reciprocal %285 {approx = true} : vector<6x8x1xf32> -> vector<6x8x1xf32>
    %287 = vector.broadcast %286 : vector<6x8x1xf32> to vector<6x8x8xf32>
    %288 = arith.mulf %283, %287 : vector<6x8x8xf32>
    %289 = arith.truncf %288 : vector<6x8x8xf32> to vector<6x8x8xbf16>
    "tpu.trace_start"() <{level = 10 : i32, message = "bqk,bkd->bqd"}> : () -> ()
    %cst_98 = arith.constant dense<0.000000e+00> : vector<6x8x16xf32>
    %290 = tpu.matmul %289, %275, %cst_98 {dimension_numbers = #tpu.dot_dimension_numbers<[2], [1], [1], [2], [0, 0, 0, 1, 1, 2], [0], [0]>} : vector<6x8x8xbf16>, vector<6x8x16xbf16>, vector<6x8x16xf32> -> vector<6x8x16xf32>
    "tpu.trace_stop"() : () -> ()
    %291 = vector.shape_cast %290 : vector<6x8x16xf32> to vector<48x16xf32>
    %c0_99 = arith.constant 0 : index
    %c16_100 = arith.constant 16 : index
    %292 = vector.load %arg13[%c0_99, %c16_100] : memref<48x32xf32, #tpu.memory_space<vmem>>, vector<48x16xf32>
    tpu.vector_store %arg13[%c0_99, %c16_100], %291 {strides = array<i32>} : memref<48x32xf32, #tpu.memory_space<vmem>>, vector<48x16xf32>,
    %c0_101 = arith.constant 0 : index
    %c0_102 = arith.constant 0 : index
    %293 = vector.load %arg13[%c0_101, %c0_102] : memref<48x32xf32, #tpu.memory_space<vmem>>, vector<48x32xf32>
    %294 = arith.truncf %293 : vector<48x32xf32> to vector<48x32xbf16>
    %c1_103 = arith.constant 1 : index
    %c0_104 = arith.constant 0 : index
    %c0_105 = arith.constant 0 : index
    %295 = vector.load %arg7[%c1_103, %c0_104, %c0_105] : memref<2x32x32xbf16, #tpu.memory_space<vmem>>, vector<1x32x32xbf16>
    %296 = vector.shape_cast %295 : vector<1x32x32xbf16> to vector<32x32xbf16>
    %cst_106 = arith.constant dense<0.000000e+00> : vector<48x32xf32>
    %297 = tpu.matmul %294, %296, %cst_106 {dimension_numbers = #tpu.dot_dimension_numbers<[1], [0], [0], [1], [0, 0, 1, 1], [], []>} : vector<48x32xbf16>, vector<32x32xbf16>, vector<48x32xf32> -> vector<48x32xf32>
    %298 = arith.addf %217, %297 : vector<48x32xf32>
    %299 = vector.broadcast %222 : vector<1x32xf32> to vector<48x32xf32>
    %300 = arith.addf %298, %299 : vector<48x32xf32>
    %cst_107 = arith.constant dense<0.000000e+00> : vector<48xf32>
    %301 = vector.multi_reduction <add>, %300, %cst_107 [1] : vector<48x32xf32> to vector<48xf32>
    %302 = vector.shape_cast %301 : vector<48xf32> to vector<48x1xf32>
    %cst_108 = arith.constant 3.200000e+01 : f32
    %303 = vector.broadcast %cst_108 : f32 to vector<48x1xf32>
    %304 = arith.divf %302, %303 : vector<48x1xf32>
    %305 = vector.broadcast %304 : vector<48x1xf32> to vector<48x32xf32>
    %306 = arith.subf %300, %305 : vector<48x32xf32>
    %307 = arith.mulf %306, %306 : vector<48x32xf32>
    %cst_109 = arith.constant dense<0.000000e+00> : vector<48xf32>
    %308 = vector.multi_reduction <add>, %307, %cst_109 [1] : vector<48x32xf32> to vector<48xf32>
    %309 = vector.shape_cast %308 : vector<48xf32> to vector<48x1xf32>
    %cst_110 = arith.constant 3.200000e+01 : f32
    %310 = vector.broadcast %cst_110 : f32 to vector<48x1xf32>
    %311 = arith.divf %309, %310 : vector<48x1xf32>
    %cst_111 = arith.constant 9.99999974E-6 : f32
    %312 = vector.broadcast %cst_111 : f32 to vector<48x1xf32>
    %313 = arith.addf %311, %312 : vector<48x1xf32>
    %314 = math.rsqrt %313 : vector<48x1xf32>
    %315 = vector.broadcast %314 : vector<48x1xf32> to vector<48x32xf32>
    %316 = arith.mulf %306, %315 : vector<48x32xf32>
    %317 = vector.broadcast %223 : vector<1x32xf32> to vector<48x32xf32>
    %318 = arith.mulf %316, %317 : vector<48x32xf32>
    %319 = vector.broadcast %224 : vector<1x32xf32> to vector<48x32xf32>
    %320 = arith.addf %318, %319 : vector<48x32xf32>
    %321 = arith.truncf %320 : vector<48x32xf32> to vector<48x32xbf16>
    %c1_112 = arith.constant 1 : index
    %c0_113 = arith.constant 0 : index
    %c0_114 = arith.constant 0 : index
    %322 = vector.load %arg8[%c1_112, %c0_113, %c0_114] : memref<2x32x32xbf16, #tpu.memory_space<vmem>>, vector<1x32x32xbf16>
    %323 = vector.shape_cast %322 : vector<1x32x32xbf16> to vector<32x32xbf16>
    %cst_115 = arith.constant dense<0.000000e+00> : vector<48x32xf32>
    %324 = tpu.matmul %321, %323, %cst_115 {dimension_numbers = #tpu.dot_dimension_numbers<[1], [0], [0], [1], [0, 0, 1, 1], [], []>} : vector<48x32xbf16>, vector<32x32xbf16>, vector<48x32xf32> -> vector<48x32xf32>
    %325 = vector.broadcast %225 : vector<1x32xf32> to vector<48x32xf32>
    %326 = arith.addf %324, %325 : vector<48x32xf32>
    %cst_116 = arith.constant 5.000000e-01 : f32
    %327 = vector.broadcast %cst_116 : f32 to vector<48x32xf32>
    %328 = arith.mulf %327, %326 : vector<48x32xf32>
    %cst_117 = arith.constant 0.707106769 : f32
    %329 = vector.broadcast %cst_117 : f32 to vector<48x32xf32>
    %330 = arith.mulf %326, %329 : vector<48x32xf32>
    %331 = math.absf %330 : vector<48x32xf32>
    %cst_118 = arith.constant 0.327591091 : f32
    %332 = vector.broadcast %cst_118 : f32 to vector<48x32xf32>
    %333 = arith.mulf %332, %331 : vector<48x32xf32>
    %cst_119 = arith.constant 1.000000e+00 : f32
    %334 = vector.broadcast %cst_119 : f32 to vector<48x32xf32>
    %335 = arith.addf %334, %333 : vector<48x32xf32>
    %cst_120 = arith.constant 1.000000e+00 : f32
    %336 = vector.broadcast %cst_120 : f32 to vector<48x32xf32>
    %337 = arith.divf %336, %335 : vector<48x32xf32>
    %cst_121 = arith.constant 1.06140542 : f32
    %338 = vector.broadcast %cst_121 : f32 to vector<48x32xf32>
    %339 = arith.mulf %338, %337 : vector<48x32xf32>
    %cst_122 = arith.constant -1.45315206 : f32
    %340 = vector.broadcast %cst_122 : f32 to vector<48x32xf32>
    %341 = arith.addf %339, %340 : vector<48x32xf32>
    %342 = arith.mulf %341, %337 : vector<48x32xf32>
    %cst_123 = arith.constant 1.42141378 : f32
    %343 = vector.broadcast %cst_123 : f32 to vector<48x32xf32>
    %344 = arith.addf %342, %343 : vector<48x32xf32>
    %345 = arith.mulf %344, %337 : vector<48x32xf32>
    %cst_124 = arith.constant -0.284496725 : f32
    %346 = vector.broadcast %cst_124 : f32 to vector<48x32xf32>
    %347 = arith.addf %345, %346 : vector<48x32xf32>
    %348 = arith.mulf %347, %337 : vector<48x32xf32>
    %cst_125 = arith.constant 0.254829586 : f32
    %349 = vector.broadcast %cst_125 : f32 to vector<48x32xf32>
    %350 = arith.addf %348, %349 : vector<48x32xf32>
    %351 = arith.mulf %350, %337 : vector<48x32xf32>
    %cst_126 = arith.constant 0.000000e+00 : f32
    %352 = vector.broadcast %cst_126 : f32 to vector<48x32xf32>
    %353 = arith.subf %352, %331 : vector<48x32xf32>
    %354 = arith.mulf %353, %331 : vector<48x32xf32>
    %355 = math.exp %354 : vector<48x32xf32>
    %356 = arith.mulf %351, %355 : vector<48x32xf32>
    %cst_127 = arith.constant 1.000000e+00 : f32
    %357 = vector.broadcast %cst_127 : f32 to vector<48x32xf32>
    %358 = arith.subf %357, %356 : vector<48x32xf32>
    %cst_128 = arith.constant 0.000000e+00 : f32
    %359 = vector.broadcast %cst_128 : f32 to vector<48x32xf32>
    %360 = arith.cmpf oge, %330, %359 : vector<48x32xf32>
    %cst_129 = arith.constant 0.000000e+00 : f32
    %361 = vector.broadcast %cst_129 : f32 to vector<48x32xf32>
    %362 = arith.subf %361, %358 : vector<48x32xf32>
    %363 = arith.select %360, %358, %362 : vector<48x32xi1>, vector<48x32xf32>
    %cst_130 = arith.constant 1.000000e+00 : f32
    %364 = vector.broadcast %cst_130 : f32 to vector<48x32xf32>
    %365 = arith.addf %364, %363 : vector<48x32xf32>
    %366 = arith.mulf %328, %365 : vector<48x32xf32>
    %367 = arith.truncf %366 : vector<48x32xf32> to vector<48x32xbf16>
    %c1_131 = arith.constant 1 : index
    %c0_132 = arith.constant 0 : index
    %c0_133 = arith.constant 0 : index
    %368 = vector.load %arg9[%c1_131, %c0_132, %c0_133] : memref<2x32x32xbf16, #tpu.memory_space<vmem>>, vector<1x32x32xbf16>
    %369 = vector.shape_cast %368 : vector<1x32x32xbf16> to vector<32x32xbf16>
    %cst_134 = arith.constant dense<0.000000e+00> : vector<48x32xf32>
    %370 = tpu.matmul %367, %369, %cst_134 {dimension_numbers = #tpu.dot_dimension_numbers<[1], [0], [0], [1], [0, 0, 1, 1], [], []>} : vector<48x32xbf16>, vector<32x32xbf16>, vector<48x32xf32> -> vector<48x32xf32>
    %371 = vector.broadcast %226 : vector<1x32xf32> to vector<48x32xf32>
    %372 = arith.addf %370, %371 : vector<48x32xf32>
    %373 = arith.addf %300, %372 : vector<48x32xf32>
    %374 = vector.shape_cast %373 : vector<48x32xf32> to vector<6x8x32xf32>
    %375 = vector.extract_strided_slice %374 {offsets = [0, 0, 0], sizes = [6, 1, 32], strides = [1, 1, 1]} : vector<6x8x32xf32> to vector<6x1x32xf32>
    %376 = vector.shape_cast %375 : vector<6x1x32xf32> to vector<6x32xf32>
    %cst_135 = arith.constant dense<0.000000e+00> : vector<6xf32>
    %377 = vector.multi_reduction <add>, %376, %cst_135 [1] : vector<6x32xf32> to vector<6xf32>
    %378 = vector.shape_cast %377 : vector<6xf32> to vector<6x1xf32>
    %cst_136 = arith.constant 3.200000e+01 : f32
    %379 = vector.broadcast %cst_136 : f32 to vector<6x1xf32>
    %380 = arith.divf %378, %379 : vector<6x1xf32>
    %381 = vector.broadcast %380 : vector<6x1xf32> to vector<6x32xf32>
    %382 = arith.subf %376, %381 : vector<6x32xf32>
    %383 = arith.mulf %382, %382 : vector<6x32xf32>
    %cst_137 = arith.constant dense<0.000000e+00> : vector<6xf32>
    %384 = vector.multi_reduction <add>, %383, %cst_137 [1] : vector<6x32xf32> to vector<6xf32>
    %385 = vector.shape_cast %384 : vector<6xf32> to vector<6x1xf32>
    %cst_138 = arith.constant 3.200000e+01 : f32
    %386 = vector.broadcast %cst_138 : f32 to vector<6x1xf32>
    %387 = arith.divf %385, %386 : vector<6x1xf32>
    %cst_139 = arith.constant 9.99999974E-6 : f32
    %388 = vector.broadcast %cst_139 : f32 to vector<6x1xf32>
    %389 = arith.addf %387, %388 : vector<6x1xf32>
    %390 = math.rsqrt %389 : vector<6x1xf32>
    %391 = vector.broadcast %390 : vector<6x1xf32> to vector<6x32xf32>
    %392 = arith.mulf %382, %391 : vector<6x32xf32>
    %393 = vector.broadcast %6 : vector<1x32xf32> to vector<6x32xf32>
    %394 = arith.mulf %392, %393 : vector<6x32xf32>
    %395 = vector.broadcast %7 : vector<1x32xf32> to vector<6x32xf32>
    %396 = arith.addf %394, %395 : vector<6x32xf32>
    %397 = arith.truncf %396 : vector<6x32xf32> to vector<6x32xbf16>
    %c0_140 = arith.constant 0 : index
    %c0_141 = arith.constant 0 : index
    %398 = vector.load %arg10[%c0_140, %c0_141] : memref<32x4xbf16, #tpu.memory_space<vmem>>, vector<32x4xbf16>
    %cst_142 = arith.constant dense<0.000000e+00> : vector<6x4xf32>
    %399 = tpu.matmul %397, %398, %cst_142 {dimension_numbers = #tpu.dot_dimension_numbers<[1], [0], [0], [1], [0, 0, 1, 1], [], []>} : vector<6x32xbf16>, vector<32x4xbf16>, vector<6x4xf32> -> vector<6x4xf32>
    %400 = vector.broadcast %8 : vector<1x4xf32> to vector<6x4xf32>
    %401 = arith.addf %399, %400 : vector<6x4xf32>
    %c0_143 = arith.constant 0 : index
    %c0_144 = arith.constant 0 : index
    %402 = vector.load %arg12[%c0_143, %c0_144] : memref<6x4xf32, #tpu.memory_space<vmem>>, vector<6x4xf32>
    tpu.vector_store %arg12[%c0_143, %c0_144], %401 {strides = array<i32>} : memref<6x4xf32, #tpu.memory_space<vmem>>, vector<6x4xf32>,
    return
  }
}

</mosaic_0001>

<llo_original>
// kernel: vit_crf_forward.1
$region0: #{vit_crf_forward.1}
  #allocation0 [shape = 'u32[]', space=smem, size = 0x4, offset = 0x4, fixed_abs, tag = 'smem constant byte address 0x4 - core index']
  #allocation1 [shape = 'u32[144,128]{1,0:T(1,128)}', space=vmem, size = 0x12000, scoped, tag = 'internal scratch']
  #allocation2 [shape = 'f32[48,32]{1,0:T(8,128)}', space=vmem, size = 0x6000, scoped, tag = 'scratch operand']
  %s0 = inlined_call_operand.vmem [shape: f32[48,64], index: 0, kind: input, shape index: {}]
  %s1 = inlined_call_operand.vmem [shape: f32[48,1], index: 1, kind: input, shape index: {}]
  %s2 = inlined_call_operand.vmem [shape: f32[48,32], index: 2, kind: input, shape index: {}]
  %s3 = inlined_call_operand.vmem [shape: f32[1,8], index: 3, kind: input, shape index: {}]
  %s4 = inlined_call_operand.vmem [shape: f32[8,64], index: 4, kind: input, shape index: {}]
  %s5 = inlined_call_operand.vmem [shape: bf16[64,32], index: 5, kind: input, shape index: {}]
  %s6 = inlined_call_operand.vmem [shape: bf16[2,32,96], index: 6, kind: input, shape index: {}]
  %s7 = inlined_call_operand.vmem [shape: bf16[2,32,32], index: 7, kind: input, shape index: {}]
  %s8 = inlined_call_operand.vmem [shape: bf16[2,32,32], index: 8, kind: input, shape index: {}]
  %s9 = inlined_call_operand.vmem [shape: bf16[2,32,32], index: 9, kind: input, shape index: {}]
  %s10 = inlined_call_operand.vmem [shape: bf16[32,4], index: 10, kind: input, shape index: {}]
  %s11 = inlined_call_operand.vmem [shape: f32[2,8,32], index: 11, kind: input, shape index: {}]
  %s12 = inlined_call_operand.vmem [shape: f32[6,4], index: 12, kind: output, shape index: {}]
  %s13 = sld [smem:[#allocation0]]
  $region58: #{vit_crf_forward.1} parent=0
    _
  %s15 = ssub.s32 1, %s13
  %s16 = scalar_select 0, %s15, %s13
  // Predicated region
  $region2: #{vit_crf_forward.1} parent=0 // pred_check
    _
  $region3: #{vit_crf_forward.1} parent=0 // pred_check_branch
    %18 = sbr.rel (0) target = $region5
  $region4: #{vit_crf_forward.1} parent=0 // pred_region
    _
  $region5: #{vit_crf_forward.1} parent=0 // pred_fallthru
    _
  // Predicated region
  $region6: #{vit_crf_forward.1} parent=0 // pred_check
    _
  $region7: #{vit_crf_forward.1} parent=0 // pred_check_branch
    %20 = sbr.rel (0) target = $region9
  $region8: #{vit_crf_forward.1} parent=0 // pred_region
    _
  $region9: #{vit_crf_forward.1} parent=0 // pred_fallthru
    _
  // Predicated region
  $region10: #{vit_crf_forward.1} parent=0 // pred_check
    _
  $region11: #{vit_crf_forward.1} parent=0 // pred_check_branch
    %22 = sbr.rel (0) target = $region13
  $region12: #{vit_crf_forward.1} parent=0 // pred_region
    _
  $region13: #{vit_crf_forward.1} parent=0 // pred_fallthru
    _
  // Predicated region
  $region14: #{vit_crf_forward.1} parent=0 // pred_check
    _
  $region15: #{vit_crf_forward.1} parent=0 // pred_check_branch
    %24 = sbr.rel (0) target = $region17
  $region16: #{vit_crf_forward.1} parent=0 // pred_region
    _
  $region17: #{vit_crf_forward.1} parent=0 // pred_fallthru
    _
  // Predicated region
  $region18: #{vit_crf_forward.1} parent=0 // pred_check
    _
  $region19: #{vit_crf_forward.1} parent=0 // pred_check_branch
    %26 = sbr.rel (0) target = $region21
  $region20: #{vit_crf_forward.1} parent=0 // pred_region
    _
  $region21: #{vit_crf_forward.1} parent=0 // pred_fallthru
    _
  // Predicated region
  $region22: #{vit_crf_forward.1} parent=0 // pred_check
    _
  $region23: #{vit_crf_forward.1} parent=0 // pred_check_branch
    %28 = sbr.rel (0) target = $region25
  $region24: #{vit_crf_forward.1} parent=0 // pred_region
    _
  $region25: #{vit_crf_forward.1} parent=0 // pred_fallthru
    _
  // Predicated region
  $region26: #{vit_crf_forward.1} parent=0 // pred_check
    _
  $region27: #{vit_crf_forward.1} parent=0 // pred_check_branch
    %30 = sbr.rel (0) target = $region29
  $region28: #{vit_crf_forward.1} parent=0 // pred_region
    _
  $region29: #{vit_crf_forward.1} parent=0 // pred_fallthru
    _
  // Predicated region
  $region30: #{vit_crf_forward.1} parent=0 // pred_check
    _
  $region31: #{vit_crf_forward.1} parent=0 // pred_check_branch
    %32 = sbr.rel (0) target = $region33
  $region32: #{vit_crf_forward.1} parent=0 // pred_region
    _
  $region33: #{vit_crf_forward.1} parent=0 // pred_fallthru
    _
  // Predicated region
  $region34: #{vit_crf_forward.1} parent=0 // pred_check
    _
  $region35: #{vit_crf_forward.1} parent=0 // pred_check_branch
    %34 = sbr.rel (0) target = $region37
  $region36: #{vit_crf_forward.1} parent=0 // pred_region
    _
  $region37: #{vit_crf_forward.1} parent=0 // pred_fallthru
    _
  // Predicated region
  $region38: #{vit_crf_forward.1} parent=0 // pred_check
    _
  $region39: #{vit_crf_forward.1} parent=0 // pred_check_branch
    %36 = sbr.rel (0) target = $region41
  $region40: #{vit_crf_forward.1} parent=0 // pred_region
    _
  $region41: #{vit_crf_forward.1} parent=0 // pred_fallthru
    _
  // Predicated region
  $region42: #{vit_crf_forward.1} parent=0 // pred_check
    _
  $region43: #{vit_crf_forward.1} parent=0 // pred_check_branch
    %38 = sbr.rel (0) target = $region45
  $region44: #{vit_crf_forward.1} parent=0 // pred_region
    _
  $region45: #{vit_crf_forward.1} parent=0 // pred_fallthru
    _
  // Predicated region
  $region46: #{vit_crf_forward.1} parent=0 // pred_check
    _
  $region47: #{vit_crf_forward.1} parent=0 // pred_check_branch
    %40 = sbr.rel (0) target = $region49
  $region48: #{vit_crf_forward.1} parent=0 // pred_region
    _
  $region49: #{vit_crf_forward.1} parent=0 // pred_fallthru
    _
  %v42 = vld [vmem:[%s4] sm:$0xff]
  %v43 = vld [vmem:[%s0] sm:$0xff]
  %v44 = vld [vmem:[%s0 + $0x8] sm:$0xff]
  %v45 = vld [vmem:[%s0 + $0x10] sm:$0xff]
  %v46 = vld [vmem:[%s0 + $0x18] sm:$0xff]
  %v47 = vld [vmem:[%s0 + $0x20] sm:$0xff]
  %v48 = vld [vmem:[%s0 + $0x28] sm:$0xff]
  %vm49 = vcmask 523264
  %v50 = vsel %vm49, %v43, 0.0
  %51 = vadd.xlane.f32.xlu0 %v50
  %v52 = vpop.xlane.xlu0 %51
  %v53 = vsel %vm49, %v44, 0.0
  %54 = vadd.xlane.f32.xlu0 %v53
  %v55 = vpop.xlane.xlu0 %54
  %v56 = vsel %vm49, %v45, 0.0
  %57 = vadd.xlane.f32.xlu0 %v56
  %v58 = vpop.xlane.xlu0 %57
  %v59 = vsel %vm49, %v46, 0.0
  %60 = vadd.xlane.f32.xlu0 %v59
  %v61 = vpop.xlane.xlu0 %60
  %v62 = vsel %vm49, %v47, 0.0
  %63 = vadd.xlane.f32.xlu0 %v62
  %v64 = vpop.xlane.xlu0 %63
  %v65 = vsel %vm49, %v48, 0.0
  %66 = vadd.xlane.f32.xlu0 %v65
  %v67 = vpop.xlane.xlu0 %66
  %v68 = vrcp.pop 64.0
  %v69 = vmul.f32 %v52, %v68
  %v70 = vmul.f32 %v55, %v68
  %v71 = vmul.f32 %v58, %v68
  %v72 = vmul.f32 %v61, %v68
  %v73 = vmul.f32 %v64, %v68
  %v74 = vmul.f32 %v67, %v68
  %v75 = vsub.f32 %v43, %v69
  %v76 = vsub.f32 %v44, %v70
  %v77 = vsub.f32 %v45, %v71
  %v78 = vsub.f32 %v46, %v72
  %v79 = vsub.f32 %v47, %v73
  %v80 = vsub.f32 %v48, %v74
  %v81 = vmul.f32 %v75, %v75
  %v82 = vmul.f32 %v76, %v76
  %v83 = vmul.f32 %v77, %v77
  %v84 = vmul.f32 %v78, %v78
  %v85 = vmul.f32 %v79, %v79
  %v86 = vmul.f32 %v80, %v80
  %v87 = vsel %vm49, %v81, 0.0
  %88 = vadd.xlane.f32.xlu0 %v87
  %v89 = vpop.xlane.xlu0 %88
  %v90 = vsel %vm49, %v82, 0.0
  %91 = vadd.xlane.f32.xlu0 %v90
  %v92 = vpop.xlane.xlu0 %91
  %v93 = vsel %vm49, %v83, 0.0
  %94 = vadd.xlane.f32.xlu0 %v93
  %v95 = vpop.xlane.xlu0 %94
  %v96 = vsel %vm49, %v84, 0.0
  %97 = vadd.xlane.f32.xlu0 %v96
  %v98 = vpop.xlane.xlu0 %97
  %v99 = vsel %vm49, %v85, 0.0
  %100 = vadd.xlane.f32.xlu0 %v99
  %v101 = vpop.xlane.xlu0 %100
  %v102 = vsel %vm49, %v86, 0.0
  %103 = vadd.xlane.f32.xlu0 %v102
  %v104 = vpop.xlane.xlu0 %103
  %v105 = vmul.f32 %v89, %v68
  %v106 = vmul.f32 %v92, %v68
  %v107 = vmul.f32 %v95, %v68
  %v108 = vmul.f32 %v98, %v68
  %v109 = vmul.f32 %v101, %v68
  %v110 = vmul.f32 %v104, %v68
  %v111 = vadd.f32 %v105, 1e-05
  %v112 = vadd.f32 %v106, 1e-05
  %v113 = vadd.f32 %v107, 1e-05
  %v114 = vadd.f32 %v108, 1e-05
  %v115 = vadd.f32 %v109, 1e-05
  %v116 = vadd.f32 %v110, 1e-05
  %v117 = vrsqrt.pop %v111
  %v118 = vrsqrt.pop %v112
  %v119 = vrsqrt.pop %v113
  %v120 = vrsqrt.pop %v114
  %v121 = vrsqrt.pop %v115
  %v122 = vrsqrt.pop %v116
  %v123 = vmul.f32 %v75, %v117
  %v124 = vmul.f32 %v76, %v118
  %v125 = vmul.f32 %v77, %v119
  %v126 = vmul.f32 %v78, %v120
  %v127 = vmul.f32 %v79, %v121
  %v128 = vmul.f32 %v80, %v122
  %v129 = vlaneseq
  %v130 = vshrl.u32 %v129, 7
  %v131 = vsub.s32 0, %v130
  %v132 = vrot.slane %v42, %v131
  %v133 = vmul.f32 %v123, %v132
  %v134 = vmul.f32 %v124, %v132
  %v135 = vmul.f32 %v125, %v132
  %v136 = vmul.f32 %v126, %v132
  %v137 = vmul.f32 %v127, %v132
  %v138 = vmul.f32 %v128, %v132
  %v139 = vlaneseq
  %v140 = vshrl.u32 %v139, 7
  %v141 = vsub.s32 1, %v140
  %v142 = vrot.slane %v42, %v141
  %v143 = vadd.f32 %v133, %v142
  %v144 = vadd.f32 %v134, %v142
  %v145 = vadd.f32 %v135, %v142
  %v146 = vadd.f32 %v136, %v142
  %v147 = vadd.f32 %v137, %v142
  %v148 = vadd.f32 %v138, %v142
  %v149 = vpack.c.bf16 %v144, %v143
  %v150 = vpack.c.bf16 %v146, %v145
  %v151 = vpack.c.bf16 %v148, %v147
  %v152 = vld [vmem:[%s5] sm:$0xf]
  %v153 = vld [vmem:[%s5 + $0x4] sm:$0xf]
  %v154 = vld [vmem:[%s5 + $0x8] sm:$0xf]
  %v155 = vld [vmem:[%s5 + $0xc] sm:$0xf]
  %v156 = vld [vmem:[%s5 + $0x10] sm:$0xf]
  %v157 = vld [vmem:[%s5 + $0x14] sm:$0xf]
  %v158 = vld [vmem:[%s5 + $0x18] sm:$0xf]
  %v159 = vld [vmem:[%s5 + $0x1c] sm:$0xf]
  %v160 = vlaneseq
  %v161 = vshrl.u32 %v160, 7
  %v162 = vsub.s32 2, %v161
  %v163 = vrot.slane %v42, %v162
  %v172 = vunpack.c.l.b16 %v152
  %v173 = vunpack.c.l.b16 %v153
  %v174 = vunpack.c.l.b16 %v154
  %v175 = vunpack.c.l.b16 %v155
  %v176 = vunpack.c.l.b16 %v156
  %v177 = vunpack.c.l.b16 %v157
  %v178 = vunpack.c.l.b16 %v158
  %v179 = vunpack.c.l.b16 %v159
  %v180 = vpack.c.b16 %v173, %v172
  %v181 = vpack.c.b16 %v175, %v174
  %v182 = vpack.c.b16 %v177, %v176
  %v183 = vpack.c.b16 %v179, %v178
  %v189 = vsel %vm49, %v149, 0
  %v192 = vsel %vm49, %v150, 0
  %v195 = vsel %vm49, %v151, 0
  %197 = vmatprep.subr.bf16.mxu0 0
  %198 = vmatpush1.bf16.msra.mxu0 0
  %199 = vmatprep.subr.bf16.mxu0 0
  %200 = vmatpush1.bf16.msra.mxu0 0
  %201 = vmatprep.subr.bf16.mxu0 0
  %202 = vmatpush1.bf16.msra.mxu0 0
  %203 = vmatprep.subr.bf16.mxu0 0
  %204 = vmatpush1.bf16.msra.mxu0 0
  %205 = vmatprep.subr.bf16.mxu0 0
  %206 = vmatpush1.bf16.msra.mxu0 %v183
  %207 = vmatprep.subr.bf16.mxu0 0
  %208 = vmatpush1.bf16.msra.mxu0 %v182
  %209 = vmatprep.subr.bf16.mxu0 0
  %210 = vmatpush1.bf16.msra.mxu0 %v181
  %211 = vmatprep.subr.bf16.mxu0 0
  %212 = vmatpush1.bf16.msra.mxu0 %v180
  %213 = vmatprep.subr.bf16.mxu0 0
  %214 = vmatpush2.bf16.msra.mxu0 0
  %215 = vmatprep.subr.bf16.mxu0 0
  %216 = vmatpush2.bf16.msra.mxu0 0
  %217 = vmatprep.subr.bf16.mxu0 0
  %218 = vmatpush2.bf16.msra.mxu0 0
  %219 = vmatprep.subr.bf16.mxu0 0
  %220 = vmatpush2.bf16.msra.mxu0 0
  %221 = vmatprep.subr.bf16.mxu0 0
  %222 = vmatpush2.bf16.msra.mxu0 0
  %223 = vmatprep.subr.bf16.mxu0 0
  %224 = vmatpush2.bf16.msra.mxu0 0
  %225 = vmatprep.subr.bf16.mxu0 0
  %226 = vmatpush2.bf16.msra.mxu0 0
  %227 = vmatprep.subr.bf16.mxu0 0
  %228 = vmatpush2.bf16.msra.mxu0 0
  %229 = vmatprep.mubr.bf16.mxu0 0
  %230 = vmatmul.mubr.bf16.gmra.mxu0 %v189
  %v231 = vpop.f32.mrf.mxu0
  %v232 = vadd.f32 %v163, %v231
  %v233 = vpop.f32.mrf.mxu0
  %v234 = vpop.f32.mrf.mxu0
  %v235 = vadd.f32 %v163, %v234
  %v236 = vpop.f32.mrf.mxu0
  %237 = vmatprep.mubr.bf16.mxu0 0
  %238 = vmatmul.mubr.bf16.gmra.mxu0 %v192
  %v239 = vpop.f32.mrf.mxu0
  %v240 = vadd.f32 %v163, %v239
  %v241 = vpop.f32.mrf.mxu0
  %v242 = vpop.f32.mrf.mxu0
  %v243 = vadd.f32 %v163, %v242
  %v244 = vpop.f32.mrf.mxu0
  %245 = vmatprep.mubr.bf16.mxu0 0
  %246 = vmatmul.mubr.bf16.gmra.mxu0 %v195
  %v247 = vpop.f32.mrf.mxu0
  %v248 = vadd.f32 %v163, %v247
  %v249 = vpop.f32.mrf.mxu0
  %v250 = vpop.f32.mrf.mxu0
  %v251 = vadd.f32 %v163, %v250
  %v252 = vpop.f32.mrf.mxu0
  %253 = vdwg.mxu0
  %vm254 = vcmask 261120
  %v255 = vsel %vm254, %v232, 0.0
  %256 = vadd.xlane.f32.xlu0 %v255
  %v257 = vpop.xlane.xlu0 %256
  %v258 = vsel %vm254, %v235, 0.0
  %259 = vadd.xlane.f32.xlu0 %v258
  %v260 = vpop.xlane.xlu0 %259
  %v261 = vsel %vm254, %v240, 0.0
  %262 = vadd.xlane.f32.xlu0 %v261
  %v263 = vpop.xlane.xlu0 %262
  %v264 = vsel %vm254, %v243, 0.0
  %265 = vadd.xlane.f32.xlu0 %v264
  %v266 = vpop.xlane.xlu0 %265
  %v267 = vsel %vm254, %v248, 0.0
  %268 = vadd.xlane.f32.xlu0 %v267
  %v269 = vpop.xlane.xlu0 %268
  %v270 = vsel %vm254, %v251, 0.0
  %271 = vadd.xlane.f32.xlu0 %v270
  %v272 = vpop.xlane.xlu0 %271
  %v273 = vrcp.pop 32.0
  %v274 = vmul.f32 %v257, %v273
  %v275 = vmul.f32 %v260, %v273
  %v276 = vmul.f32 %v263, %v273
  %v277 = vmul.f32 %v266, %v273
  %v278 = vmul.f32 %v269, %v273
  %v279 = vmul.f32 %v272, %v273
  %v280 = vsub.f32 %v232, %v274
  %v281 = vsub.f32 %v235, %v275
  %v282 = vsub.f32 %v240, %v276
  %v283 = vsub.f32 %v243, %v277
  %v284 = vsub.f32 %v248, %v278
  %v285 = vsub.f32 %v251, %v279
  %v286 = vmul.f32 %v280, %v280
  %v287 = vmul.f32 %v281, %v281
  %v288 = vmul.f32 %v282, %v282
  %v289 = vmul.f32 %v283, %v283
  %v290 = vmul.f32 %v284, %v284
  %v291 = vmul.f32 %v285, %v285
  %v292 = vsel %vm254, %v286, 0.0
  %293 = vadd.xlane.f32.xlu0 %v292
  %v294 = vpop.xlane.xlu0 %293
  %v295 = vsel %vm254, %v287, 0.0
  %296 = vadd.xlane.f32.xlu0 %v295
  %v297 = vpop.xlane.xlu0 %296
  %v298 = vsel %vm254, %v288, 0.0
  %299 = vadd.xlane.f32.xlu0 %v298
  %v300 = vpop.xlane.xlu0 %299
  %v301 = vsel %vm254, %v289, 0.0
  %302 = vadd.xlane.f32.xlu0 %v301
  %v303 = vpop.xlane.xlu0 %302
  %v304 = vsel %vm254, %v290, 0.0
  %305 = vadd.xlane.f32.xlu0 %v304
  %v306 = vpop.xlane.xlu0 %305
  %v307 = vsel %vm254, %v291, 0.0
  %308 = vadd.xlane.f32.xlu0 %v307
  %v309 = vpop.xlane.xlu0 %308
  %v310 = vmul.f32 %v294, %v273
  %v311 = vmul.f32 %v297, %v273
  %v312 = vmul.f32 %v300, %v273
  %v313 = vmul.f32 %v303, %v273
  %v314 = vmul.f32 %v306, %v273
  %v315 = vmul.f32 %v309, %v273
  %v316 = vadd.f32 %v310, 1e-05
  %v317 = vadd.f32 %v311, 1e-05
  %v318 = vadd.f32 %v312, 1e-05
  %v319 = vadd.f32 %v313, 1e-05
  %v320 = vadd.f32 %v314, 1e-05
  %v321 = vadd.f32 %v315, 1e-05
  %v322 = vrsqrt.pop %v316
  %v323 = vrsqrt.pop %v317
  %v324 = vrsqrt.pop %v318
  %v325 = vrsqrt.pop %v319
  %v326 = vrsqrt.pop %v320
  %v327 = vrsqrt.pop %v321
  %v328 = vmul.f32 %v280, %v322
  %v329 = vmul.f32 %v281, %v323
  %v330 = vmul.f32 %v282, %v324
  %v331 = vmul.f32 %v283, %v325
  %v332 = vmul.f32 %v284, %v326
  %v333 = vmul.f32 %v285, %v327
  %v334 = vlaneseq
  %v335 = vshrl.u32 %v334, 7
  %v336 = vsub.s32 3, %v335
  %v337 = vrot.slane %v42, %v336
  %v338 = vmul.f32 %v328, %v337
  %v339 = vmul.f32 %v329, %v337
  %v340 = vmul.f32 %v330, %v337
  %v341 = vmul.f32 %v331, %v337
  %v342 = vmul.f32 %v332, %v337
  %v343 = vmul.f32 %v333, %v337
  %v344 = vlaneseq
  %v345 = vshrl.u32 %v344, 7
  %v346 = vsub.s32 4, %v345
  %v347 = vrot.slane %v42, %v346
  %v348 = vadd.f32 %v338, %v347
  %v349 = vadd.f32 %v339, %v347
  %v350 = vadd.f32 %v340, %v347
  %v351 = vadd.f32 %v341, %v347
  %v352 = vadd.f32 %v342, %v347
  %v353 = vadd.f32 %v343, %v347
  %v354 = vld [vmem:[%s1] sm:$0xff]
  %v355 = vld [vmem:[%s1 + $0x8] sm:$0xff]
  %v356 = vld [vmem:[%s1 + $0x10] sm:$0xff]
  %v357 = vld [vmem:[%s1 + $0x18] sm:$0xff]
  %v358 = vld [vmem:[%s1 + $0x20] sm:$0xff]
  %v359 = vld [vmem:[%s1 + $0x28] sm:$0xff]
  %361 = vset.pattern.permute.xlu0 0
  %362 = vperm.xlu0 %361, %v354
  %v363 = vpop.permute.xlu0 %362
  %366 = vset.pattern.permute.xlu0 0
  %367 = vperm.xlu0 %366, %v355
  %v368 = vpop.permute.xlu0 %367
  %371 = vset.pattern.permute.xlu0 0
  %372 = vperm.xlu0 %371, %v356
  %v373 = vpop.permute.xlu0 %372
  %376 = vset.pattern.permute.xlu0 0
  %377 = vperm.xlu0 %376, %v357
  %v378 = vpop.permute.xlu0 %377
  %381 = vset.pattern.permute.xlu0 0
  %382 = vperm.xlu0 %381, %v358
  %v383 = vpop.permute.xlu0 %382
  %386 = vset.pattern.permute.xlu0 0
  %387 = vperm.xlu0 %386, %v359
  %v388 = vpop.permute.xlu0 %387
  %v390 = vmul.f32 %v348, %v363
  %v391 = vmul.f32 %v349, %v368
  %v392 = vmul.f32 %v350, %v373
  %v393 = vmul.f32 %v351, %v378
  %v394 = vmul.f32 %v352, %v383
  %v395 = vmul.f32 %v353, %v388
  %v396 = vld [vmem:[%s2] sm:$0xff]
  %v397 = vld [vmem:[%s2 + $0x8] sm:$0xff]
  %v398 = vld [vmem:[%s2 + $0x10] sm:$0xff]
  %v399 = vld [vmem:[%s2 + $0x18] sm:$0xff]
  %v400 = vld [vmem:[%s2 + $0x20] sm:$0xff]
  %v401 = vld [vmem:[%s2 + $0x28] sm:$0xff]
  %v402 = vadd.f32 %v390, %v396
  %v403 = vadd.f32 %v391, %v397
  %v404 = vadd.f32 %v392, %v398
  %v405 = vadd.f32 %v393, %v399
  %v406 = vadd.f32 %v394, %v400
  %v407 = vadd.f32 %v395, %v401
  %v408 = vld [vmem:[%s3] sm:$0x1]
  %v409 = vld [vmem:[%s11] sm:$0xff]
  %v410 = vsel %vm254, %v402, 0.0
  %411 = vadd.xlane.f32.xlu0 %v410
  %v412 = vpop.xlane.xlu0 %411
  %v413 = vsel %vm254, %v403, 0.0
  %414 = vadd.xlane.f32.xlu0 %v413
  %v415 = vpop.xlane.xlu0 %414
  %v416 = vsel %vm254, %v404, 0.0
  %417 = vadd.xlane.f32.xlu0 %v416
  %v418 = vpop.xlane.xlu0 %417
  %v419 = vsel %vm254, %v405, 0.0
  %420 = vadd.xlane.f32.xlu0 %v419
  %v421 = vpop.xlane.xlu0 %420
  %v422 = vsel %vm254, %v406, 0.0
  %423 = vadd.xlane.f32.xlu0 %v422
  %v424 = vpop.xlane.xlu0 %423
  %v425 = vsel %vm254, %v407, 0.0
  %426 = vadd.xlane.f32.xlu0 %v425
  %v427 = vpop.xlane.xlu0 %426
  %v428 = vmul.f32 %v412, %v273
  %v429 = vmul.f32 %v415, %v273
  %v430 = vmul.f32 %v418, %v273
  %v431 = vmul.f32 %v421, %v273
  %v432 = vmul.f32 %v424, %v273
  %v433 = vmul.f32 %v427, %v273
  %v434 = vsub.f32 %v402, %v428
  %v435 = vsub.f32 %v403, %v429
  %v436 = vsub.f32 %v404, %v430
  %v437 = vsub.f32 %v405, %v431
  %v438 = vsub.f32 %v406, %v432
  %v439 = vsub.f32 %v407, %v433
  %v440 = vmul.f32 %v434, %v434
  %v441 = vmul.f32 %v435, %v435
  %v442 = vmul.f32 %v436, %v436
  %v443 = vmul.f32 %v437, %v437
  %v444 = vmul.f32 %v438, %v438
  %v445 = vmul.f32 %v439, %v439
  %v446 = vsel %vm254, %v440, 0.0
  %447 = vadd.xlane.f32.xlu0 %v446
  %v448 = vpop.xlane.xlu0 %447
  %v449 = vsel %vm254, %v441, 0.0
  %450 = vadd.xlane.f32.xlu0 %v449
  %v451 = vpop.xlane.xlu0 %450
  %v452 = vsel %vm254, %v442, 0.0
  %453 = vadd.xlane.f32.xlu0 %v452
  %v454 = vpop.xlane.xlu0 %453
  %v455 = vsel %vm254, %v443, 0.0
  %456 = vadd.xlane.f32.xlu0 %v455
  %v457 = vpop.xlane.xlu0 %456
  %v458 = vsel %vm254, %v444, 0.0
  %459 = vadd.xlane.f32.xlu0 %v458
  %v460 = vpop.xlane.xlu0 %459
  %v461 = vsel %vm254, %v445, 0.0
  %462 = vadd.xlane.f32.xlu0 %v461
  %v463 = vpop.xlane.xlu0 %462
  %v464 = vmul.f32 %v448, %v273
  %v465 = vmul.f32 %v451, %v273
  %v466 = vmul.f32 %v454, %v273
  %v467 = vmul.f32 %v457, %v273
  %v468 = vmul.f32 %v460, %v273
  %v469 = vmul.f32 %v463, %v273
  %v470 = vadd.f32 %v464, 1e-05
  %v471 = vadd.f32 %v465, 1e-05
  %v472 = vadd.f32 %v466, 1e-05
  %v473 = vadd.f32 %v467, 1e-05
  %v474 = vadd.f32 %v468, 1e-05
  %v475 = vadd.f32 %v469, 1e-05
  %v476 = vrsqrt.pop %v470
  %v477 = vrsqrt.pop %v471
  %v478 = vrsqrt.pop %v472
  %v479 = vrsqrt.pop %v473
  %v480 = vrsqrt.pop %v474
  %v481 = vrsqrt.pop %v475
  %v482 = vmul.f32 %v434, %v476
  %v483 = vmul.f32 %v435, %v477
  %v484 = vmul.f32 %v436, %v478
  %v485 = vmul.f32 %v437, %v479
  %v486 = vmul.f32 %v438, %v480
  %v487 = vmul.f32 %v439, %v481
  %v488 = vlaneseq
  %v489 = vshrl.u32 %v488, 7
  %v490 = vsub.s32 0, %v489
  %v491 = vrot.slane %v409, %v490
  %v492 = vmul.f32 %v482, %v491
  %v493 = vmul.f32 %v483, %v491
  %v494 = vmul.f32 %v484, %v491
  %v495 = vmul.f32 %v485, %v491
  %v496 = vmul.f32 %v486, %v491
  %v497 = vmul.f32 %v487, %v491
  %v498 = vlaneseq
  %v499 = vshrl.u32 %v498, 7
  %v500 = vsub.s32 1, %v499
  %v501 = vrot.slane %v409, %v500
  %v502 = vadd.f32 %v492, %v501
  %v503 = vadd.f32 %v493, %v501
  %v504 = vadd.f32 %v494, %v501
  %v505 = vadd.f32 %v495, %v501
  %v506 = vadd.f32 %v496, %v501
  %v507 = vadd.f32 %v497, %v501
  %v508 = vpack.c.bf16 %v503, %v502
  %v509 = vpack.c.bf16 %v505, %v504
  %v510 = vpack.c.bf16 %v507, %v506
  %v511 = vld [vmem:[%s6] sm:$0xf]
  %v512 = vld [vmem:[%s6 + $0x4] sm:$0xf]
  %v513 = vld [vmem:[%s6 + $0x8] sm:$0xf]
  %v514 = vld [vmem:[%s6 + $0xc] sm:$0xf]
  %v519 = vunpack.c.l.b16 %v511
  %v520 = vunpack.c.l.b16 %v512
  %v521 = vunpack.c.l.b16 %v513
  %v522 = vunpack.c.l.b16 %v514
  %v523 = vpack.c.b16 %v520, %v519
  %v524 = vpack.c.b16 %v522, %v521
  %v528 = vsel %vm254, %v508, 0
  %v531 = vsel %vm254, %v509, 0
  %v534 = vsel %vm254, %v510, 0
  %536 = vmatprep.subr.bf16.mxu0 0
  %537 = vmatpush1.bf16.msra.mxu0 0
  %538 = vmatprep.subr.bf16.mxu0 0
  %539 = vmatpush1.bf16.msra.mxu0 0
  %540 = vmatprep.subr.bf16.mxu0 0
  %541 = vmatpush1.bf16.msra.mxu0 0
  %542 = vmatprep.subr.bf16.mxu0 0
  %543 = vmatpush1.bf16.msra.mxu0 0
  %544 = vmatprep.subr.bf16.mxu0 0
  %545 = vmatpush1.bf16.msra.mxu0 0
  %546 = vmatprep.subr.bf16.mxu0 0
  %547 = vmatpush1.bf16.msra.mxu0 0
  %548 = vmatprep.subr.bf16.mxu0 0
  %549 = vmatpush1.bf16.msra.mxu0 %v524
  %550 = vmatprep.subr.bf16.mxu0 0
  %551 = vmatpush1.bf16.msra.mxu0 %v523
  %552 = vmatprep.subr.bf16.mxu0 0
  %553 = vmatpush2.bf16.msra.mxu0 0
  %554 = vmatprep.subr.bf16.mxu0 0
  %555 = vmatpush2.bf16.msra.mxu0 0
  %556 = vmatprep.subr.bf16.mxu0 0
  %557 = vmatpush2.bf16.msra.mxu0 0
  %558 = vmatprep.subr.bf16.mxu0 0
  %559 = vmatpush2.bf16.msra.mxu0 0
  %560 = vmatprep.subr.bf16.mxu0 0
  %561 = vmatpush2.bf16.msra.mxu0 0
  %562 = vmatprep.subr.bf16.mxu0 0
  %563 = vmatpush2.bf16.msra.mxu0 0
  %564 = vmatprep.subr.bf16.mxu0 0
  %565 = vmatpush2.bf16.msra.mxu0 0
  %566 = vmatprep.subr.bf16.mxu0 0
  %567 = vmatpush2.bf16.msra.mxu0 0
  %568 = vmatprep.mubr.bf16.mxu0 0
  %569 = vmatmul.mubr.bf16.gmra.mxu0 %v528
  %v570 = vpop.f32.mrf.mxu0
  %v571 = vadd.f32 0.0, %v570
  %v572 = vpop.f32.mrf.mxu0
  %v573 = vpop.f32.mrf.mxu0
  %v574 = vadd.f32 0.0, %v573
  %v575 = vpop.f32.mrf.mxu0
  %576 = vmatprep.mubr.bf16.mxu0 0
  %577 = vmatmul.mubr.bf16.gmra.mxu0 %v531
  %v578 = vpop.f32.mrf.mxu0
  %v579 = vadd.f32 0.0, %v578
  %v580 = vpop.f32.mrf.mxu0
  %v581 = vpop.f32.mrf.mxu0
  %v582 = vadd.f32 0.0, %v581
  %v583 = vpop.f32.mrf.mxu0
  %584 = vmatprep.mubr.bf16.mxu0 0
  %585 = vmatmul.mubr.bf16.gmra.mxu0 %v534
  %v586 = vpop.f32.mrf.mxu0
  %v587 = vadd.f32 0.0, %v586
  %v588 = vpop.f32.mrf.mxu0
  %v589 = vpop.f32.mrf.mxu0
  %v590 = vadd.f32 0.0, %v589
  %v591 = vpop.f32.mrf.mxu0
  %592 = vdwg.mxu0
  %v593 = vpack.c.bf16 %v571, %v571
  %v594 = vpack.c.bf16 %v574, %v574
  %v595 = vpack.c.bf16 %v579, %v579
  %v596 = vpack.c.bf16 %v582, %v582
  %v597 = vpack.c.bf16 %v587, %v587
  %v598 = vpack.c.bf16 %v590, %v590
  %v600 = vlaneseq
  %v601 = vshrl.u32 %v600, 7
  %v602 = vsub.s32 0, %v601
  %v603 = vrot.slane %v408, %v602
  %606 = vrot.lane.b32.xlu0 %v593, 96
  %v607 = vpop.permute.xlu0 %606
  %vm608 = vcmask 130048
  %v610 = vsel %vm608, %v593, 0
  %v613 = vsel %vm608, %v607, 0
  %615 = vmatprep.subr.bf16.mxu0 0
  %616 = vmatpush1.bf16.xpose.msra.mxu0 0
  %617 = vmatprep.subr.bf16.mxu0 0
  %618 = vmatpush1.bf16.xpose.msra.mxu0 0
  %619 = vmatprep.subr.bf16.mxu0 0
  %620 = vmatpush1.bf16.xpose.msra.mxu0 0
  %621 = vmatprep.subr.bf16.mxu0 0
  %622 = vmatpush1.bf16.xpose.msra.mxu0 0
  %623 = vmatprep.subr.bf16.mxu0 0
  %624 = vmatpush1.bf16.xpose.msra.mxu0 0
  %625 = vmatprep.subr.bf16.mxu0 0
  %626 = vmatpush1.bf16.xpose.msra.mxu0 0
  %627 = vmatprep.subr.bf16.mxu0 0
  %628 = vmatpush1.bf16.xpose.msra.mxu0 0
  %629 = vmatprep.subr.bf16.mxu0 0
  %630 = vmatpush1.bf16.xpose.msra.mxu0 %v613
  %631 = vmatprep.subr.bf16.mxu0 0
  %632 = vmatpush2.bf16.xpose.msra.mxu0 0
  %633 = vmatprep.subr.bf16.mxu0 0
  %634 = vmatpush2.bf16.xpose.msra.mxu0 0
  %635 = vmatprep.subr.bf16.mxu0 0
  %636 = vmatpush2.bf16.xpose.msra.mxu0 0
  %637 = vmatprep.subr.bf16.mxu0 0
  %638 = vmatpush2.bf16.xpose.msra.mxu0 0
  %639 = vmatprep.subr.bf16.mxu0 0
  %640 = vmatpush2.bf16.xpose.msra.mxu0 0
  %641 = vmatprep.subr.bf16.mxu0 0
  %642 = vmatpush2.bf16.xpose.msra.mxu0 0
  %643 = vmatprep.subr.bf16.mxu0 0
  %644 = vmatpush2.bf16.xpose.msra.mxu0 0
  %645 = vmatprep.subr.bf16.mxu0 0
  %646 = vmatpush2.bf16.xpose.msra.mxu0 0
  %647 = vmatprep.mubr.bf16.mxu0 0
  %648 = vmatmul.mubr.bf16.gmra.mxu0 %v610
  %v649 = vpop.f32.mrf.mxu0
  %v650 = vadd.f32 %v603, %v649
  %v651 = vpop.f32.mrf.mxu0
  %v652 = vpop.f32.mrf.mxu0
  %v653 = vpop.f32.mrf.mxu0
  %654 = vdwg.mxu0
  %656 = vrot.lane.b32.xlu0 %v594, 96
  %v657 = vpop.permute.xlu0 %656
  %v659 = vsel %vm608, %v594, 0
  %v662 = vsel %vm608, %v657, 0
  %664 = vmatprep.subr.bf16.mxu0 0
  %665 = vmatpush1.bf16.xpose.msra.mxu0 0
  %666 = vmatprep.subr.bf16.mxu0 0
  %667 = vmatpush1.bf16.xpose.msra.mxu0 0
  %668 = vmatprep.subr.bf16.mxu0 0
  %669 = vmatpush1.bf16.xpose.msra.mxu0 0
  %670 = vmatprep.subr.bf16.mxu0 0
  %671 = vmatpush1.bf16.xpose.msra.mxu0 0
  %672 = vmatprep.subr.bf16.mxu0 0
  %673 = vmatpush1.bf16.xpose.msra.mxu0 0
  %674 = vmatprep.subr.bf16.mxu0 0
  %675 = vmatpush1.bf16.xpose.msra.mxu0 0
  %676 = vmatprep.subr.bf16.mxu0 0
  %677 = vmatpush1.bf16.xpose.msra.mxu0 0
  %678 = vmatprep.subr.bf16.mxu0 0
  %679 = vmatpush1.bf16.xpose.msra.mxu0 %v662
  %680 = vmatprep.subr.bf16.mxu0 0
  %681 = vmatpush2.bf16.xpose.msra.mxu0 0
  %682 = vmatprep.subr.bf16.mxu0 0
  %683 = vmatpush2.bf16.xpose.msra.mxu0 0
  %684 = vmatprep.subr.bf16.mxu0 0
  %685 = vmatpush2.bf16.xpose.msra.mxu0 0
  %686 = vmatprep.subr.bf16.mxu0 0
  %687 = vmatpush2.bf16.xpose.msra.mxu0 0
  %688 = vmatprep.subr.bf16.mxu0 0
  %689 = vmatpush2.bf16.xpose.msra.mxu0 0
  %690 = vmatprep.subr.bf16.mxu0 0
  %691 = vmatpush2.bf16.xpose.msra.mxu0 0
  %692 = vmatprep.subr.bf16.mxu0 0
  %693 = vmatpush2.bf16.xpose.msra.mxu0 0
  %694 = vmatprep.subr.bf16.mxu0 0
  %695 = vmatpush2.bf16.xpose.msra.mxu0 0
  %696 = vmatprep.mubr.bf16.mxu0 0
  %697 = vmatmul.mubr.bf16.gmra.mxu0 %v659
  %v698 = vpop.f32.mrf.mxu0
  %v699 = vadd.f32 %v603, %v698
  %v700 = vpop.f32.mrf.mxu0
  %v701 = vpop.f32.mrf.mxu0
  %v702 = vpop.f32.mrf.mxu0
  %703 = vdwg.mxu0
  %705 = vrot.lane.b32.xlu0 %v595, 96
  %v706 = vpop.permute.xlu0 %705
  %v708 = vsel %vm608, %v595, 0
  %v711 = vsel %vm608, %v706, 0
  %713 = vmatprep.subr.bf16.mxu0 0
  %714 = vmatpush1.bf16.xpose.msra.mxu0 0
  %715 = vmatprep.subr.bf16.mxu0 0
  %716 = vmatpush1.bf16.xpose.msra.mxu0 0
  %717 = vmatprep.subr.bf16.mxu0 0
  %718 = vmatpush1.bf16.xpose.msra.mxu0 0
  %719 = vmatprep.subr.bf16.mxu0 0
  %720 = vmatpush1.bf16.xpose.msra.mxu0 0
  %721 = vmatprep.subr.bf16.mxu0 0
  %722 = vmatpush1.bf16.xpose.msra.mxu0 0
  %723 = vmatprep.subr.bf16.mxu0 0
  %724 = vmatpush1.bf16.xpose.msra.mxu0 0
  %725 = vmatprep.subr.bf16.mxu0 0
  %726 = vmatpush1.bf16.xpose.msra.mxu0 0
  %727 = vmatprep.subr.bf16.mxu0 0
  %728 = vmatpush1.bf16.xpose.msra.mxu0 %v711
  %729 = vmatprep.subr.bf16.mxu0 0
  %730 = vmatpush2.bf16.xpose.msra.mxu0 0
  %731 = vmatprep.subr.bf16.mxu0 0
  %732 = vmatpush2.bf16.xpose.msra.mxu0 0
  %733 = vmatprep.subr.bf16.mxu0 0
  %734 = vmatpush2.bf16.xpose.msra.mxu0 0
  %735 = vmatprep.subr.bf16.mxu0 0
  %736 = vmatpush2.bf16.xpose.msra.mxu0 0
  %737 = vmatprep.subr.bf16.mxu0 0
  %738 = vmatpush2.bf16.xpose.msra.mxu0 0
  %739 = vmatprep.subr.bf16.mxu0 0
  %740 = vmatpush2.bf16.xpose.msra.mxu0 0
  %741 = vmatprep.subr.bf16.mxu0 0
  %742 = vmatpush2.bf16.xpose.msra.mxu0 0
  %743 = vmatprep.subr.bf16.mxu0 0
  %744 = vmatpush2.bf16.xpose.msra.mxu0 0
  %745 = vmatprep.mubr.bf16.mxu0 0
  %746 = vmatmul.mubr.bf16.gmra.mxu0 %v708
  %v747 = vpop.f32.mrf.mxu0
  %v748 = vadd.f32 %v603, %v747
  %v749 = vpop.f32.mrf.mxu0
  %v750 = vpop.f32.mrf.mxu0
  %v751 = vpop.f32.mrf.mxu0
  %752 = vdwg.mxu0
  %754 = vrot.lane.b32.xlu0 %v596, 96
  %v755 = vpop.permute.xlu0 %754
  %v757 = vsel %vm608, %v596, 0
  %v760 = vsel %vm608, %v755, 0
  %762 = vmatprep.subr.bf16.mxu0 0
  %763 = vmatpush1.bf16.xpose.msra.mxu0 0
  %764 = vmatprep.subr.bf16.mxu0 0
  %765 = vmatpush1.bf16.xpose.msra.mxu0 0
  %766 = vmatprep.subr.bf16.mxu0 0
  %767 = vmatpush1.bf16.xpose.msra.mxu0 0
  %768 = vmatprep.subr.bf16.mxu0 0
  %769 = vmatpush1.bf16.xpose.msra.mxu0 0
  %770 = vmatprep.subr.bf16.mxu0 0
  %771 = vmatpush1.bf16.xpose.msra.mxu0 0
  %772 = vmatprep.subr.bf16.mxu0 0
  %773 = vmatpush1.bf16.xpose.msra.mxu0 0
  %774 = vmatprep.subr.bf16.mxu0 0
  %775 = vmatpush1.bf16.xpose.msra.mxu0 0
  %776 = vmatprep.subr.bf16.mxu0 0
  %777 = vmatpush1.bf16.xpose.msra.mxu0 %v760
  %778 = vmatprep.subr.bf16.mxu0 0
  %779 = vmatpush2.bf16.xpose.msra.mxu0 0
  %780 = vmatprep.subr.bf16.mxu0 0
  %781 = vmatpush2.bf16.xpose.msra.mxu0 0
  %782 = vmatprep.subr.bf16.mxu0 0
  %783 = vmatpush2.bf16.xpose.msra.mxu0 0
  %784 = vmatprep.subr.bf16.mxu0 0
  %785 = vmatpush2.bf16.xpose.msra.mxu0 0
  %786 = vmatprep.subr.bf16.mxu0 0
  %787 = vmatpush2.bf16.xpose.msra.mxu0 0
  %788 = vmatprep.subr.bf16.mxu0 0
  %789 = vmatpush2.bf16.xpose.msra.mxu0 0
  %790 = vmatprep.subr.bf16.mxu0 0
  %791 = vmatpush2.bf16.xpose.msra.mxu0 0
  %792 = vmatprep.subr.bf16.mxu0 0
  %793 = vmatpush2.bf16.xpose.msra.mxu0 0
  %794 = vmatprep.mubr.bf16.mxu0 0
  %795 = vmatmul.mubr.bf16.gmra.mxu0 %v757
  %v796 = vpop.f32.mrf.mxu0
  %v797 = vadd.f32 %v603, %v796
  %v798 = vpop.f32.mrf.mxu0
  %v799 = vpop.f32.mrf.mxu0
  %v800 = vpop.f32.mrf.mxu0
  %801 = vdwg.mxu0
  %803 = vrot.lane.b32.xlu0 %v597, 96
  %v804 = vpop.permute.xlu0 %803
  %v806 = vsel %vm608, %v597, 0
  %v809 = vsel %vm608, %v804, 0
  %811 = vmatprep.subr.bf16.mxu0 0
  %812 = vmatpush1.bf16.xpose.msra.mxu0 0
  %813 = vmatprep.subr.bf16.mxu0 0
  %814 = vmatpush1.bf16.xpose.msra.mxu0 0
  %815 = vmatprep.subr.bf16.mxu0 0
  %816 = vmatpush1.bf16.xpose.msra.mxu0 0
  %817 = vmatprep.subr.bf16.mxu0 0
  %818 = vmatpush1.bf16.xpose.msra.mxu0 0
  %819 = vmatprep.subr.bf16.mxu0 0
  %820 = vmatpush1.bf16.xpose.msra.mxu0 0
  %821 = vmatprep.subr.bf16.mxu0 0
  %822 = vmatpush1.bf16.xpose.msra.mxu0 0
  %823 = vmatprep.subr.bf16.mxu0 0
  %824 = vmatpush1.bf16.xpose.msra.mxu0 0
  %825 = vmatprep.subr.bf16.mxu0 0
  %826 = vmatpush1.bf16.xpose.msra.mxu0 %v809
  %827 = vmatprep.subr.bf16.mxu0 0
  %828 = vmatpush2.bf16.xpose.msra.mxu0 0
  %829 = vmatprep.subr.bf16.mxu0 0
  %830 = vmatpush2.bf16.xpose.msra.mxu0 0
  %831 = vmatprep.subr.bf16.mxu0 0
  %832 = vmatpush2.bf16.xpose.msra.mxu0 0
  %833 = vmatprep.subr.bf16.mxu0 0
  %834 = vmatpush2.bf16.xpose.msra.mxu0 0
  %835 = vmatprep.subr.bf16.mxu0 0
  %836 = vmatpush2.bf16.xpose.msra.mxu0 0
  %837 = vmatprep.subr.bf16.mxu0 0
  %838 = vmatpush2.bf16.xpose.msra.mxu0 0
  %839 = vmatprep.subr.bf16.mxu0 0
  %840 = vmatpush2.bf16.xpose.msra.mxu0 0
  %841 = vmatprep.subr.bf16.mxu0 0
  %842 = vmatpush2.bf16.xpose.msra.mxu0 0
  %843 = vmatprep.mubr.bf16.mxu0 0
  %844 = vmatmul.mubr.bf16.gmra.mxu0 %v806
  %v845 = vpop.f32.mrf.mxu0
  %v846 = vadd.f32 %v603, %v845
  %v847 = vpop.f32.mrf.mxu0
  %v848 = vpop.f32.mrf.mxu0
  %v849 = vpop.f32.mrf.mxu0
  %850 = vdwg.mxu0
  %852 = vrot.lane.b32.xlu0 %v598, 96
  %v853 = vpop.permute.xlu0 %852
  %v855 = vsel %vm608, %v598, 0
  %v858 = vsel %vm608, %v853, 0
  %860 = vmatprep.subr.bf16.mxu0 0
  %861 = vmatpush1.bf16.xpose.msra.mxu0 0
  %862 = vmatprep.subr.bf16.mxu0 0
  %863 = vmatpush1.bf16.xpose.msra.mxu0 0
  %864 = vmatprep.subr.bf16.mxu0 0
  %865 = vmatpush1.bf16.xpose.msra.mxu0 0
  %866 = vmatprep.subr.bf16.mxu0 0
  %867 = vmatpush1.bf16.xpose.msra.mxu0 0
  %868 = vmatprep.subr.bf16.mxu0 0
  %869 = vmatpush1.bf16.xpose.msra.mxu0 0
  %870 = vmatprep.subr.bf16.mxu0 0
  %871 = vmatpush1.bf16.xpose.msra.mxu0 0
  %872 = vmatprep.subr.bf16.mxu0 0
  %873 = vmatpush1.bf16.xpose.msra.mxu0 0
  %874 = vmatprep.subr.bf16.mxu0 0
  %875 = vmatpush1.bf16.xpose.msra.mxu0 %v858
  %876 = vmatprep.subr.bf16.mxu0 0
  %877 = vmatpush2.bf16.xpose.msra.mxu0 0
  %878 = vmatprep.subr.bf16.mxu0 0
  %879 = vmatpush2.bf16.xpose.msra.mxu0 0
  %880 = vmatprep.subr.bf16.mxu0 0
  %881 = vmatpush2.bf16.xpose.msra.mxu0 0
  %882 = vmatprep.subr.bf16.mxu0 0
  %883 = vmatpush2.bf16.xpose.msra.mxu0 0
  %884 = vmatprep.subr.bf16.mxu0 0
  %885 = vmatpush2.bf16.xpose.msra.mxu0 0
  %886 = vmatprep.subr.bf16.mxu0 0
  %887 = vmatpush2.bf16.xpose.msra.mxu0 0
  %888 = vmatprep.subr.bf16.mxu0 0
  %889 = vmatpush2.bf16.xpose.msra.mxu0 0
  %890 = vmatprep.subr.bf16.mxu0 0
  %891 = vmatpush2.bf16.xpose.msra.mxu0 0
  %892 = vmatprep.mubr.bf16.mxu0 0
  %893 = vmatmul.mubr.bf16.gmra.mxu0 %v855
  %v894 = vpop.f32.mrf.mxu0
  %v895 = vadd.f32 %v603, %v894
  %v896 = vpop.f32.mrf.mxu0
  %v897 = vpop.f32.mrf.mxu0
  %v898 = vpop.f32.mrf.mxu0
  %899 = vdwg.mxu0
  %vm900 = vcmask 64512
  %v901 = vsel %vm900, %v650, -inf
  %902 = vmax.xlane.f32.xlu0 %v901
  %v903 = vpop.xlane.xlu0 %902
  %v904 = vsel %vm900, %v699, -inf
  %905 = vmax.xlane.f32.xlu0 %v904
  %v906 = vpop.xlane.xlu0 %905
  %v907 = vsel %vm900, %v748, -inf
  %908 = vmax.xlane.f32.xlu0 %v907
  %v909 = vpop.xlane.xlu0 %908
  %v910 = vsel %vm900, %v797, -inf
  %911 = vmax.xlane.f32.xlu0 %v910
  %v912 = vpop.xlane.xlu0 %911
  %v913 = vsel %vm900, %v846, -inf
  %914 = vmax.xlane.f32.xlu0 %v913
  %v915 = vpop.xlane.xlu0 %914
  %v916 = vsel %vm900, %v895, -inf
  %917 = vmax.xlane.f32.xlu0 %v916
  %v918 = vpop.xlane.xlu0 %917
  %v919 = vsub.f32 %v650, %v903
  %v920 = vsub.f32 %v699, %v906
  %v921 = vsub.f32 %v748, %v909
  %v922 = vsub.f32 %v797, %v912
  %v923 = vsub.f32 %v846, %v915
  %v924 = vsub.f32 %v895, %v918
  %v925 = vmul.f32 %v919, 1.442695
  %v926 = vpow.pop %v925
  %v927 = vmul.f32 %v920, 1.442695
  %v928 = vpow.pop %v927
  %v929 = vmul.f32 %v921, 1.442695
  %v930 = vpow.pop %v929
  %v931 = vmul.f32 %v922, 1.442695
  %v932 = vpow.pop %v931
  %v933 = vmul.f32 %v923, 1.442695
  %v934 = vpow.pop %v933
  %v935 = vmul.f32 %v924, 1.442695
  %v936 = vpow.pop %v935
  %v937 = vsel %vm900, %v926, 0.0
  %938 = vadd.xlane.f32.xlu0 %v937
  %v939 = vpop.xlane.xlu0 %938
  %v940 = vsel %vm900, %v928, 0.0
  %941 = vadd.xlane.f32.xlu0 %v940
  %v942 = vpop.xlane.xlu0 %941
  %v943 = vsel %vm900, %v930, 0.0
  %944 = vadd.xlane.f32.xlu0 %v943
  %v945 = vpop.xlane.xlu0 %944
  %v946 = vsel %vm900, %v932, 0.0
  %947 = vadd.xlane.f32.xlu0 %v946
  %v948 = vpop.xlane.xlu0 %947
  %v949 = vsel %vm900, %v934, 0.0
  %950 = vadd.xlane.f32.xlu0 %v949
  %v951 = vpop.xlane.xlu0 %950
  %v952 = vsel %vm900, %v936, 0.0
  %953 = vadd.xlane.f32.xlu0 %v952
  %v954 = vpop.xlane.xlu0 %953
  %v955 = vrcp.pop %v939
  %v956 = vrcp.pop %v942
  %v957 = vrcp.pop %v945
  %v958 = vrcp.pop %v948
  %v959 = vrcp.pop %v951
  %v960 = vrcp.pop %v954
  %v961 = vmul.f32 %v926, %v955
  %v962 = vmul.f32 %v928, %v956
  %v963 = vmul.f32 %v930, %v957
  %v964 = vmul.f32 %v932, %v958
  %v965 = vmul.f32 %v934, %v959
  %v966 = vmul.f32 %v936, %v960
  %v967 = vpack.c.bf16 %v961, %v961
  %v968 = vpack.c.bf16 %v962, %v962
  %v969 = vpack.c.bf16 %v963, %v963
  %v970 = vpack.c.bf16 %v964, %v964
  %v971 = vpack.c.bf16 %v965, %v965
  %v972 = vpack.c.bf16 %v966, %v966
  %973 = vrot.lane.b32.xlu0 %v593, 64
  %v974 = vpop.permute.xlu0 %973
  %v976 = vsel %vm900, %v967, 0
  %vm978 = vcmask 1043456
  %v980 = vsel %vm978, %v974, 0
  %982 = vmatprep.subr.bf16.mxu0 0
  %983 = vmatpush1.bf16.msra.mxu0 0
  %984 = vmatprep.subr.bf16.mxu0 0
  %985 = vmatpush1.bf16.msra.mxu0 0
  %986 = vmatprep.subr.bf16.mxu0 0
  %987 = vmatpush1.bf16.msra.mxu0 0
  %988 = vmatprep.subr.bf16.mxu0 0
  %989 = vmatpush1.bf16.msra.mxu0 0
  %990 = vmatprep.subr.bf16.mxu0 0
  %991 = vmatpush1.bf16.msra.mxu0 0
  %992 = vmatprep.subr.bf16.mxu0 0
  %993 = vmatpush1.bf16.msra.mxu0 0
  %994 = vmatprep.subr.bf16.mxu0 0
  %995 = vmatpush1.bf16.msra.mxu0 0
  %996 = vmatprep.subr.bf16.mxu0 0
  %997 = vmatpush1.bf16.msra.mxu0 %v980
  %998 = vmatprep.subr.bf16.mxu0 0
  %999 = vmatpush2.bf16.msra.mxu0 0
  %1000 = vmatprep.subr.bf16.mxu0 0
  %1001 = vmatpush2.bf16.msra.mxu0 0
  %1002 = vmatprep.subr.bf16.mxu0 0
  %1003 = vmatpush2.bf16.msra.mxu0 0
  %1004 = vmatprep.subr.bf16.mxu0 0
  %1005 = vmatpush2.bf16.msra.mxu0 0
  %1006 = vmatprep.subr.bf16.mxu0 0
  %1007 = vmatpush2.bf16.msra.mxu0 0
  %1008 = vmatprep.subr.bf16.mxu0 0
  %1009 = vmatpush2.bf16.msra.mxu0 0
  %1010 = vmatprep.subr.bf16.mxu0 0
  %1011 = vmatpush2.bf16.msra.mxu0 0
  %1012 = vmatprep.subr.bf16.mxu0 0
  %1013 = vmatpush2.bf16.msra.mxu0 0
  %1014 = vmatprep.mubr.bf16.mxu0 0
  %1015 = vmatmul.mubr.bf16.gmra.mxu0 %v976
  %v1016 = vpop.f32.mrf.mxu0
  %v1017 = vadd.f32 0.0, %v1016
  %v1018 = vpop.f32.mrf.mxu0
  %v1019 = vpop.f32.mrf.mxu0
  %v1020 = vpop.f32.mrf.mxu0
  %1021 = vdwg.mxu0
  %1022 = vrot.lane.b32.xlu0 %v594, 64
  %v1023 = vpop.permute.xlu0 %1022
  %v1025 = vsel %vm900, %v968, 0
  %v1028 = vsel %vm978, %v1023, 0
  %1030 = vmatprep.subr.bf16.mxu0 0
  %1031 = vmatpush1.bf16.msra.mxu0 0
  %1032 = vmatprep.subr.bf16.mxu0 0
  %1033 = vmatpush1.bf16.msra.mxu0 0
  %1034 = vmatprep.subr.bf16.mxu0 0
  %1035 = vmatpush1.bf16.msra.mxu0 0
  %1036 = vmatprep.subr.bf16.mxu0 0
  %1037 = vmatpush1.bf16.msra.mxu0 0
  %1038 = vmatprep.subr.bf16.mxu0 0
  %1039 = vmatpush1.bf16.msra.mxu0 0
  %1040 = vmatprep.subr.bf16.mxu0 0
  %1041 = vmatpush1.bf16.msra.mxu0 0
  %1042 = vmatprep.subr.bf16.mxu0 0
  %1043 = vmatpush1.bf16.msra.mxu0 0
  %1044 = vmatprep.subr.bf16.mxu0 0
  %1045 = vmatpush1.bf16.msra.mxu0 %v1028
  %1046 = vmatprep.subr.bf16.mxu0 0
  %1047 = vmatpush2.bf16.msra.mxu0 0
  %1048 = vmatprep.subr.bf16.mxu0 0
  %1049 = vmatpush2.bf16.msra.mxu0 0
  %1050 = vmatprep.subr.bf16.mxu0 0
  %1051 = vmatpush2.bf16.msra.mxu0 0
  %1052 = vmatprep.subr.bf16.mxu0 0
  %1053 = vmatpush2.bf16.msra.mxu0 0
  %1054 = vmatprep.subr.bf16.mxu0 0
  %1055 = vmatpush2.bf16.msra.mxu0 0
  %1056 = vmatprep.subr.bf16.mxu0 0
  %1057 = vmatpush2.bf16.msra.mxu0 0
  %1058 = vmatprep.subr.bf16.mxu0 0
  %1059 = vmatpush2.bf16.msra.mxu0 0
  %1060 = vmatprep.subr.bf16.mxu0 0
  %1061 = vmatpush2.bf16.msra.mxu0 0
  %1062 = vmatprep.mubr.bf16.mxu0 0
  %1063 = vmatmul.mubr.bf16.gmra.mxu0 %v1025
  %v1064 = vpop.f32.mrf.mxu0
  %v1065 = vadd.f32 0.0, %v1064
  %v1066 = vpop.f32.mrf.mxu0
  %v1067 = vpop.f32.mrf.mxu0
  %v1068 = vpop.f32.mrf.mxu0
  %1069 = vdwg.mxu0
  %1070 = vrot.lane.b32.xlu0 %v595, 64
  %v1071 = vpop.permute.xlu0 %1070
  %v1073 = vsel %vm900, %v969, 0
  %v1076 = vsel %vm978, %v1071, 0
  %1078 = vmatprep.subr.bf16.mxu0 0
  %1079 = vmatpush1.bf16.msra.mxu0 0
  %1080 = vmatprep.subr.bf16.mxu0 0
  %1081 = vmatpush1.bf16.msra.mxu0 0
  %1082 = vmatprep.subr.bf16.mxu0 0
  %1083 = vmatpush1.bf16.msra.mxu0 0
  %1084 = vmatprep.subr.bf16.mxu0 0
  %1085 = vmatpush1.bf16.msra.mxu0 0
  %1086 = vmatprep.subr.bf16.mxu0 0
  %1087 = vmatpush1.bf16.msra.mxu0 0
  %1088 = vmatprep.subr.bf16.mxu0 0
  %1089 = vmatpush1.bf16.msra.mxu0 0
  %1090 = vmatprep.subr.bf16.mxu0 0
  %1091 = vmatpush1.bf16.msra.mxu0 0
  %1092 = vmatprep.subr.bf16.mxu0 0
  %1093 = vmatpush1.bf16.msra.mxu0 %v1076
  %1094 = vmatprep.subr.bf16.mxu0 0
  %1095 = vmatpush2.bf16.msra.mxu0 0
  %1096 = vmatprep.subr.bf16.mxu0 0
  %1097 = vmatpush2.bf16.msra.mxu0 0
  %1098 = vmatprep.subr.bf16.mxu0 0
  %1099 = vmatpush2.bf16.msra.mxu0 0
  %1100 = vmatprep.subr.bf16.mxu0 0
  %1101 = vmatpush2.bf16.msra.mxu0 0
  %1102 = vmatprep.subr.bf16.mxu0 0
  %1103 = vmatpush2.bf16.msra.mxu0 0
  %1104 = vmatprep.subr.bf16.mxu0 0
  %1105 = vmatpush2.bf16.msra.mxu0 0
  %1106 = vmatprep.subr.bf16.mxu0 0
  %1107 = vmatpush2.bf16.msra.mxu0 0
  %1108 = vmatprep.subr.bf16.mxu0 0
  %1109 = vmatpush2.bf16.msra.mxu0 0
  %1110 = vmatprep.mubr.bf16.mxu0 0
  %1111 = vmatmul.mubr.bf16.gmra.mxu0 %v1073
  %v1112 = vpop.f32.mrf.mxu0
  %v1113 = vadd.f32 0.0, %v1112
  %v1114 = vpop.f32.mrf.mxu0
  %v1115 = vpop.f32.mrf.mxu0
  %v1116 = vpop.f32.mrf.mxu0
  %1117 = vdwg.mxu0
  %1118 = vrot.lane.b32.xlu0 %v596, 64
  %v1119 = vpop.permute.xlu0 %1118
  %v1121 = vsel %vm900, %v970, 0
  %v1124 = vsel %vm978, %v1119, 0
  %1126 = vmatprep.subr.bf16.mxu0 0
  %1127 = vmatpush1.bf16.msra.mxu0 0
  %1128 = vmatprep.subr.bf16.mxu0 0
  %1129 = vmatpush1.bf16.msra.mxu0 0
  %1130 = vmatprep.subr.bf16.mxu0 0
  %1131 = vmatpush1.bf16.msra.mxu0 0
  %1132 = vmatprep.subr.bf16.mxu0 0
  %1133 = vmatpush1.bf16.msra.mxu0 0
  %1134 = vmatprep.subr.bf16.mxu0 0
  %1135 = vmatpush1.bf16.msra.mxu0 0
  %1136 = vmatprep.subr.bf16.mxu0 0
  %1137 = vmatpush1.bf16.msra.mxu0 0
  %1138 = vmatprep.subr.bf16.mxu0 0
  %1139 = vmatpush1.bf16.msra.mxu0 0
  %1140 = vmatprep.subr.bf16.mxu0 0
  %1141 = vmatpush1.bf16.msra.mxu0 %v1124
  %1142 = vmatprep.subr.bf16.mxu0 0
  %1143 = vmatpush2.bf16.msra.mxu0 0
  %1144 = vmatprep.subr.bf16.mxu0 0
  %1145 = vmatpush2.bf16.msra.mxu0 0
  %1146 = vmatprep.subr.bf16.mxu0 0
  %1147 = vmatpush2.bf16.msra.mxu0 0
  %1148 = vmatprep.subr.bf16.mxu0 0
  %1149 = vmatpush2.bf16.msra.mxu0 0
  %1150 = vmatprep.subr.bf16.mxu0 0
  %1151 = vmatpush2.bf16.msra.mxu0 0
  %1152 = vmatprep.subr.bf16.mxu0 0
  %1153 = vmatpush2.bf16.msra.mxu0 0
  %1154 = vmatprep.subr.bf16.mxu0 0
  %1155 = vmatpush2.bf16.msra.mxu0 0
  %1156 = vmatprep.subr.bf16.mxu0 0
  %1157 = vmatpush2.bf16.msra.mxu0 0
  %1158 = vmatprep.mubr.bf16.mxu0 0
  %1159 = vmatmul.mubr.bf16.gmra.mxu0 %v1121
  %v1160 = vpop.f32.mrf.mxu0
  %v1161 = vadd.f32 0.0, %v1160
  %v1162 = vpop.f32.mrf.mxu0
  %v1163 = vpop.f32.mrf.mxu0
  %v1164 = vpop.f32.mrf.mxu0
  %1165 = vdwg.mxu0
  %1166 = vrot.lane.b32.xlu0 %v597, 64
  %v1167 = vpop.permute.xlu0 %1166
  %v1169 = vsel %vm900, %v971, 0
  %v1172 = vsel %vm978, %v1167, 0
  %1174 = vmatprep.subr.bf16.mxu0 0
  %1175 = vmatpush1.bf16.msra.mxu0 0
  %1176 = vmatprep.subr.bf16.mxu0 0
  %1177 = vmatpush1.bf16.msra.mxu0 0
  %1178 = vmatprep.subr.bf16.mxu0 0
  %1179 = vmatpush1.bf16.msra.mxu0 0
  %1180 = vmatprep.subr.bf16.mxu0 0
  %1181 = vmatpush1.bf16.msra.mxu0 0
  %1182 = vmatprep.subr.bf16.mxu0 0
  %1183 = vmatpush1.bf16.msra.mxu0 0
  %1184 = vmatprep.subr.bf16.mxu0 0
  %1185 = vmatpush1.bf16.msra.mxu0 0
  %1186 = vmatprep.subr.bf16.mxu0 0
  %1187 = vmatpush1.bf16.msra.mxu0 0
  %1188 = vmatprep.subr.bf16.mxu0 0
  %1189 = vmatpush1.bf16.msra.mxu0 %v1172
  %1190 = vmatprep.subr.bf16.mxu0 0
  %1191 = vmatpush2.bf16.msra.mxu0 0
  %1192 = vmatprep.subr.bf16.mxu0 0
  %1193 = vmatpush2.bf16.msra.mxu0 0
  %1194 = vmatprep.subr.bf16.mxu0 0
  %1195 = vmatpush2.bf16.msra.mxu0 0
  %1196 = vmatprep.subr.bf16.mxu0 0
  %1197 = vmatpush2.bf16.msra.mxu0 0
  %1198 = vmatprep.subr.bf16.mxu0 0
  %1199 = vmatpush2.bf16.msra.mxu0 0
  %1200 = vmatprep.subr.bf16.mxu0 0
  %1201 = vmatpush2.bf16.msra.mxu0 0
  %1202 = vmatprep.subr.bf16.mxu0 0
  %1203 = vmatpush2.bf16.msra.mxu0 0
  %1204 = vmatprep.subr.bf16.mxu0 0
  %1205 = vmatpush2.bf16.msra.mxu0 0
  %1206 = vmatprep.mubr.bf16.mxu0 0
  %1207 = vmatmul.mubr.bf16.gmra.mxu0 %v1169
  %v1208 = vpop.f32.mrf.mxu0
  %v1209 = vadd.f32 0.0, %v1208
  %v1210 = vpop.f32.mrf.mxu0
  %v1211 = vpop.f32.mrf.mxu0
  %v1212 = vpop.f32.mrf.mxu0
  %1213 = vdwg.mxu0
  %1214 = vrot.lane.b32.xlu0 %v598, 64
  %v1215 = vpop.permute.xlu0 %1214
  %v1217 = vsel %vm900, %v972, 0
  %v1220 = vsel %vm978, %v1215, 0
  %1222 = vmatprep.subr.bf16.mxu0 0
  %1223 = vmatpush1.bf16.msra.mxu0 0
  %1224 = vmatprep.subr.bf16.mxu0 0
  %1225 = vmatpush1.bf16.msra.mxu0 0
  %1226 = vmatprep.subr.bf16.mxu0 0
  %1227 = vmatpush1.bf16.msra.mxu0 0
  %1228 = vmatprep.subr.bf16.mxu0 0
  %1229 = vmatpush1.bf16.msra.mxu0 0
  %1230 = vmatprep.subr.bf16.mxu0 0
  %1231 = vmatpush1.bf16.msra.mxu0 0
  %1232 = vmatprep.subr.bf16.mxu0 0
  %1233 = vmatpush1.bf16.msra.mxu0 0
  %1234 = vmatprep.subr.bf16.mxu0 0
  %1235 = vmatpush1.bf16.msra.mxu0 0
  %1236 = vmatprep.subr.bf16.mxu0 0
  %1237 = vmatpush1.bf16.msra.mxu0 %v1220
  %1238 = vmatprep.subr.bf16.mxu0 0
  %1239 = vmatpush2.bf16.msra.mxu0 0
  %1240 = vmatprep.subr.bf16.mxu0 0
  %1241 = vmatpush2.bf16.msra.mxu0 0
  %1242 = vmatprep.subr.bf16.mxu0 0
  %1243 = vmatpush2.bf16.msra.mxu0 0
  %1244 = vmatprep.subr.bf16.mxu0 0
  %1245 = vmatpush2.bf16.msra.mxu0 0
  %1246 = vmatprep.subr.bf16.mxu0 0
  %1247 = vmatpush2.bf16.msra.mxu0 0
  %1248 = vmatprep.subr.bf16.mxu0 0
  %1249 = vmatpush2.bf16.msra.mxu0 0
  %1250 = vmatprep.subr.bf16.mxu0 0
  %1251 = vmatpush2.bf16.msra.mxu0 0
  %1252 = vmatprep.subr.bf16.mxu0 0
  %1253 = vmatpush2.bf16.msra.mxu0 0
  %1254 = vmatprep.mubr.bf16.mxu0 0
  %1255 = vmatmul.mubr.bf16.gmra.mxu0 %v1217
  %v1256 = vpop.f32.mrf.mxu0
  %v1257 = vadd.f32 0.0, %v1256
  %v1258 = vpop.f32.mrf.mxu0
  %v1259 = vpop.f32.mrf.mxu0
  %v1260 = vpop.f32.mrf.mxu0
  %1261 = vdwg.mxu0
  %1262 = vst.msk [vmem:[#allocation2] sm:$0xff] %vm608, %v1017
  %1263 = vst.msk [vmem:[#allocation2 + $0x8] sm:$0xff] %vm608, %v1065
  %1264 = vst.msk [vmem:[#allocation2 + $0x10] sm:$0xff] %vm608, %v1113
  %1265 = vst.msk [vmem:[#allocation2 + $0x18] sm:$0xff] %vm608, %v1161
  %1266 = vst.msk [vmem:[#allocation2 + $0x20] sm:$0xff] %vm608, %v1209
  %1267 = vst.msk [vmem:[#allocation2 + $0x28] sm:$0xff] %vm608, %v1257
  %1268 = vrot.lane.b32.xlu0 %v593, 112
  %v1269 = vpop.permute.xlu0 %1268
  %1270 = vrot.lane.b32.xlu0 %v593, 80
  %v1271 = vpop.permute.xlu0 %1270
  %v1273 = vsel %vm608, %v1269, 0
  %v1276 = vsel %vm608, %v1271, 0
  %1278 = vmatprep.subr.bf16.mxu0 0
  %1279 = vmatpush1.bf16.xpose.msra.mxu0 0
  %1280 = vmatprep.subr.bf16.mxu0 0
  %1281 = vmatpush1.bf16.xpose.msra.mxu0 0
  %1282 = vmatprep.subr.bf16.mxu0 0
  %1283 = vmatpush1.bf16.xpose.msra.mxu0 0
  %1284 = vmatprep.subr.bf16.mxu0 0
  %1285 = vmatpush1.bf16.xpose.msra.mxu0 0
  %1286 = vmatprep.subr.bf16.mxu0 0
  %1287 = vmatpush1.bf16.xpose.msra.mxu0 0
  %1288 = vmatprep.subr.bf16.mxu0 0
  %1289 = vmatpush1.bf16.xpose.msra.mxu0 0
  %1290 = vmatprep.subr.bf16.mxu0 0
  %1291 = vmatpush1.bf16.xpose.msra.mxu0 0
  %1292 = vmatprep.subr.bf16.mxu0 0
  %1293 = vmatpush1.bf16.xpose.msra.mxu0 %v1276
  %1294 = vmatprep.subr.bf16.mxu0 0
  %1295 = vmatpush2.bf16.xpose.msra.mxu0 0
  %1296 = vmatprep.subr.bf16.mxu0 0
  %1297 = vmatpush2.bf16.xpose.msra.mxu0 0
  %1298 = vmatprep.subr.bf16.mxu0 0
  %1299 = vmatpush2.bf16.xpose.msra.mxu0 0
  %1300 = vmatprep.subr.bf16.mxu0 0
  %1301 = vmatpush2.bf16.xpose.msra.mxu0 0
  %1302 = vmatprep.subr.bf16.mxu0 0
  %1303 = vmatpush2.bf16.xpose.msra.mxu0 0
  %1304 = vmatprep.subr.bf16.mxu0 0
  %1305 = vmatpush2.bf16.xpose.msra.mxu0 0
  %1306 = vmatprep.subr.bf16.mxu0 0
  %1307 = vmatpush2.bf16.xpose.msra.mxu0 0
  %1308 = vmatprep.subr.bf16.mxu0 0
  %1309 = vmatpush2.bf16.xpose.msra.mxu0 0
  %1310 = vmatprep.mubr.bf16.mxu0 0
  %1311 = vmatmul.mubr.bf16.gmra.mxu0 %v1273
  %v1312 = vpop.f32.mrf.mxu0
  %v1313 = vadd.f32 %v603, %v1312
  %v1314 = vpop.f32.mrf.mxu0
  %v1315 = vpop.f32.mrf.mxu0
  %v1316 = vpop.f32.mrf.mxu0
  %1317 = vdwg.mxu0
  %1318 = vrot.lane.b32.xlu0 %v594, 112
  %v1319 = vpop.permute.xlu0 %1318
  %1320 = vrot.lane.b32.xlu0 %v594, 80
  %v1321 = vpop.permute.xlu0 %1320
  %v1323 = vsel %vm608, %v1319, 0
  %v1326 = vsel %vm608, %v1321, 0
  %1328 = vmatprep.subr.bf16.mxu0 0
  %1329 = vmatpush1.bf16.xpose.msra.mxu0 0
  %1330 = vmatprep.subr.bf16.mxu0 0
  %1331 = vmatpush1.bf16.xpose.msra.mxu0 0
  %1332 = vmatprep.subr.bf16.mxu0 0
  %1333 = vmatpush1.bf16.xpose.msra.mxu0 0
  %1334 = vmatprep.subr.bf16.mxu0 0
  %1335 = vmatpush1.bf16.xpose.msra.mxu0 0
  %1336 = vmatprep.subr.bf16.mxu0 0
  %1337 = vmatpush1.bf16.xpose.msra.mxu0 0
  %1338 = vmatprep.subr.bf16.mxu0 0
  %1339 = vmatpush1.bf16.xpose.msra.mxu0 0
  %1340 = vmatprep.subr.bf16.mxu0 0
  %1341 = vmatpush1.bf16.xpose.msra.mxu0 0
  %1342 = vmatprep.subr.bf16.mxu0 0
  %1343 = vmatpush1.bf16.xpose.msra.mxu0 %v1326
  %1344 = vmatprep.subr.bf16.mxu0 0
  %1345 = vmatpush2.bf16.xpose.msra.mxu0 0
  %1346 = vmatprep.subr.bf16.mxu0 0
  %1347 = vmatpush2.bf16.xpose.msra.mxu0 0
  %1348 = vmatprep.subr.bf16.mxu0 0
  %1349 = vmatpush2.bf16.xpose.msra.mxu0 0
  %1350 = vmatprep.subr.bf16.mxu0 0
  %1351 = vmatpush2.bf16.xpose.msra.mxu0 0
  %1352 = vmatprep.subr.bf16.mxu0 0
  %1353 = vmatpush2.bf16.xpose.msra.mxu0 0
  %1354 = vmatprep.subr.bf16.mxu0 0
  %1355 = vmatpush2.bf16.xpose.msra.mxu0 0
  %1356 = vmatprep.subr.bf16.mxu0 0
  %1357 = vmatpush2.bf16.xpose.msra.mxu0 0
  %1358 = vmatprep.subr.bf16.mxu0 0
  %1359 = vmatpush2.bf16.xpose.msra.mxu0 0
  %1360 = vmatprep.mubr.bf16.mxu0 0
  %1361 = vmatmul.mubr.bf16.gmra.mxu0 %v1323
  %v1362 = vpop.f32.mrf.mxu0
  %v1363 = vadd.f32 %v603, %v1362
  %v1364 = vpop.f32.mrf.mxu0
  %v1365 = vpop.f32.mrf.mxu0
  %v1366 = vpop.f32.mrf.mxu0
  %1367 = vdwg.mxu0
  %1368 = vrot.lane.b32.xlu0 %v595, 112
  %v1369 = vpop.permute.xlu0 %1368
  %1370 = vrot.lane.b32.xlu0 %v595, 80
  %v1371 = vpop.permute.xlu0 %1370
  %v1373 = vsel %vm608, %v1369, 0
  %v1376 = vsel %vm608, %v1371, 0
  %1378 = vmatprep.subr.bf16.mxu0 0
  %1379 = vmatpush1.bf16.xpose.msra.mxu0 0
  %1380 = vmatprep.subr.bf16.mxu0 0
  %1381 = vmatpush1.bf16.xpose.msra.mxu0 0
  %1382 = vmatprep.subr.bf16.mxu0 0
  %1383 = vmatpush1.bf16.xpose.msra.mxu0 0
  %1384 = vmatprep.subr.bf16.mxu0 0
  %1385 = vmatpush1.bf16.xpose.msra.mxu0 0
  %1386 = vmatprep.subr.bf16.mxu0 0
  %1387 = vmatpush1.bf16.xpose.msra.mxu0 0
  %1388 = vmatprep.subr.bf16.mxu0 0
  %1389 = vmatpush1.bf16.xpose.msra.mxu0 0
  %1390 = vmatprep.subr.bf16.mxu0 0
  %1391 = vmatpush1.bf16.xpose.msra.mxu0 0
  %1392 = vmatprep.subr.bf16.mxu0 0
  %1393 = vmatpush1.bf16.xpose.msra.mxu0 %v1376
  %1394 = vmatprep.subr.bf16.mxu0 0
  %1395 = vmatpush2.bf16.xpose.msra.mxu0 0
  %1396 = vmatprep.subr.bf16.mxu0 0
  %1397 = vmatpush2.bf16.xpose.msra.mxu0 0
  %1398 = vmatprep.subr.bf16.mxu0 0
  %1399 = vmatpush2.bf16.xpose.msra.mxu0 0
  %1400 = vmatprep.subr.bf16.mxu0 0
  %1401 = vmatpush2.bf16.xpose.msra.mxu0 0
  %1402 = vmatprep.subr.bf16.mxu0 0
  %1403 = vmatpush2.bf16.xpose.msra.mxu0 0
  %1404 = vmatprep.subr.bf16.mxu0 0
  %1405 = vmatpush2.bf16.xpose.msra.mxu0 0
  %1406 = vmatprep.subr.bf16.mxu0 0
  %1407 = vmatpush2.bf16.xpose.msra.mxu0 0
  %1408 = vmatprep.subr.bf16.mxu0 0
  %1409 = vmatpush2.bf16.xpose.msra.mxu0 0
  %1410 = vmatprep.mubr.bf16.mxu0 0
  %1411 = vmatmul.mubr.bf16.gmra.mxu0 %v1373
  %v1412 = vpop.f32.mrf.mxu0
  %v1413 = vadd.f32 %v603, %v1412
  %v1414 = vpop.f32.mrf.mxu0
  %v1415 = vpop.f32.mrf.mxu0
  %v1416 = vpop.f32.mrf.mxu0
  %1417 = vdwg.mxu0
  %1418 = vrot.lane.b32.xlu0 %v596, 112
  %v1419 = vpop.permute.xlu0 %1418
  %1420 = vrot.lane.b32.xlu0 %v596, 80
  %v1421 = vpop.permute.xlu0 %1420
  %v1423 = vsel %vm608, %v1419, 0
  %v1426 = vsel %vm608, %v1421, 0
  %1428 = vmatprep.subr.bf16.mxu0 0
  %1429 = vmatpush1.bf16.xpose.msra.mxu0 0
  %1430 = vmatprep.subr.bf16.mxu0 0
  %1431 = vmatpush1.bf16.xpose.msra.mxu0 0
  %1432 = vmatprep.subr.bf16.mxu0 0
  %1433 = vmatpush1.bf16.xpose.msra.mxu0 0
  %1434 = vmatprep.subr.bf16.mxu0 0
  %1435 = vmatpush1.bf16.xpose.msra.mxu0 0
  %1436 = vmatprep.subr.bf16.mxu0 0
  %1437 = vmatpush1.bf16.xpose.msra.mxu0 0
  %1438 = vmatprep.subr.bf16.mxu0 0
  %1439 = vmatpush1.bf16.xpose.msra.mxu0 0
  %1440 = vmatprep.subr.bf16.mxu0 0
  %1441 = vmatpush1.bf16.xpose.msra.mxu0 0
  %1442 = vmatprep.subr.bf16.mxu0 0
  %1443 = vmatpush1.bf16.xpose.msra.mxu0 %v1426
  %1444 = vmatprep.subr.bf16.mxu0 0
  %1445 = vmatpush2.bf16.xpose.msra.mxu0 0
  %1446 = vmatprep.subr.bf16.mxu0 0
  %1447 = vmatpush2.bf16.xpose.msra.mxu0 0
  %1448 = vmatprep.subr.bf16.mxu0 0
  %1449 = vmatpush2.bf16.xpose.msra.mxu0 0
  %1450 = vmatprep.subr.bf16.mxu0 0
  %1451 = vmatpush2.bf16.xpose.msra.mxu0 0
  %1452 = vmatprep.subr.bf16.mxu0 0
  %1453 = vmatpush2.bf16.xpose.msra.mxu0 0
  %1454 = vmatprep.subr.bf16.mxu0 0
  %1455 = vmatpush2.bf16.xpose.msra.mxu0 0
  %1456 = vmatprep.subr.bf16.mxu0 0
  %1457 = vmatpush2.bf16.xpose.msra.mxu0 0
  %1458 = vmatprep.subr.bf16.mxu0 0
  %1459 = vmatpush2.bf16.xpose.msra.mxu0 0
  %1460 = vmatprep.mubr.bf16.mxu0 0
  %1461 = vmatmul.mubr.bf16.gmra.mxu0 %v1423
  %v1462 = vpop.f32.mrf.mxu0
  %v1463 = vadd.f32 %v603, %v1462
  %v1464 = vpop.f32.mrf.mxu0
  %v1465 = vpop.f32.mrf.mxu0
  %v1466 = vpop.f32.mrf.mxu0
  %1467 = vdwg.mxu0
  %1468 = vrot.lane.b32.xlu0 %v597, 112
  %v1469 = vpop.permute.xlu0 %1468
  %1470 = vrot.lane.b32.xlu0 %v597, 80
  %v1471 = vpop.permute.xlu0 %1470
  %v1473 = vsel %vm608, %v1469, 0
  %v1476 = vsel %vm608, %v1471, 0
  %1478 = vmatprep.subr.bf16.mxu0 0
  %1479 = vmatpush1.bf16.xpose.msra.mxu0 0
  %1480 = vmatprep.subr.bf16.mxu0 0
  %1481 = vmatpush1.bf16.xpose.msra.mxu0 0
  %1482 = vmatprep.subr.bf16.mxu0 0
  %1483 = vmatpush1.bf16.xpose.msra.mxu0 0
  %1484 = vmatprep.subr.bf16.mxu0 0
  %1485 = vmatpush1.bf16.xpose.msra.mxu0 0
  %1486 = vmatprep.subr.bf16.mxu0 0
  %1487 = vmatpush1.bf16.xpose.msra.mxu0 0
  %1488 = vmatprep.subr.bf16.mxu0 0
  %1489 = vmatpush1.bf16.xpose.msra.mxu0 0
  %1490 = vmatprep.subr.bf16.mxu0 0
  %1491 = vmatpush1.bf16.xpose.msra.mxu0 0
  %1492 = vmatprep.subr.bf16.mxu0 0
  %1493 = vmatpush1.bf16.xpose.msra.mxu0 %v1476
  %1494 = vmatprep.subr.bf16.mxu0 0
  %1495 = vmatpush2.bf16.xpose.msra.mxu0 0
  %1496 = vmatprep.subr.bf16.mxu0 0
  %1497 = vmatpush2.bf16.xpose.msra.mxu0 0
  %1498 = vmatprep.subr.bf16.mxu0 0
  %1499 = vmatpush2.bf16.xpose.msra.mxu0 0
  %1500 = vmatprep.subr.bf16.mxu0 0
  %1501 = vmatpush2.bf16.xpose.msra.mxu0 0
  %1502 = vmatprep.subr.bf16.mxu0 0
  %1503 = vmatpush2.bf16.xpose.msra.mxu0 0
  %1504 = vmatprep.subr.bf16.mxu0 0
  %1505 = vmatpush2.bf16.xpose.msra.mxu0 0
  %1506 = vmatprep.subr.bf16.mxu0 0
  %1507 = vmatpush2.bf16.xpose.msra.mxu0 0
  %1508 = vmatprep.subr.bf16.mxu0 0
  %1509 = vmatpush2.bf16.xpose.msra.mxu0 0
  %1510 = vmatprep.mubr.bf16.mxu0 0
  %1511 = vmatmul.mubr.bf16.gmra.mxu0 %v1473
  %v1512 = vpop.f32.mrf.mxu0
  %v1513 = vadd.f32 %v603, %v1512
  %v1514 = vpop.f32.mrf.mxu0
  %v1515 = vpop.f32.mrf.mxu0
  %v1516 = vpop.f32.mrf.mxu0
  %1517 = vdwg.mxu0
  %1518 = vrot.lane.b32.xlu0 %v598, 112
  %v1519 = vpop.permute.xlu0 %1518
  %1520 = vrot.lane.b32.xlu0 %v598, 80
  %v1521 = vpop.permute.xlu0 %1520
  %v1523 = vsel %vm608, %v1519, 0
  %v1526 = vsel %vm608, %v1521, 0
  %1528 = vmatprep.subr.bf16.mxu0 0
  %1529 = vmatpush1.bf16.xpose.msra.mxu0 0
  %1530 = vmatprep.subr.bf16.mxu0 0
  %1531 = vmatpush1.bf16.xpose.msra.mxu0 0
  %1532 = vmatprep.subr.bf16.mxu0 0
  %1533 = vmatpush1.bf16.xpose.msra.mxu0 0
  %1534 = vmatprep.subr.bf16.mxu0 0
  %1535 = vmatpush1.bf16.xpose.msra.mxu0 0
  %1536 = vmatprep.subr.bf16.mxu0 0
  %1537 = vmatpush1.bf16.xpose.msra.mxu0 0
  %1538 = vmatprep.subr.bf16.mxu0 0
  %1539 = vmatpush1.bf16.xpose.msra.mxu0 0
  %1540 = vmatprep.subr.bf16.mxu0 0
  %1541 = vmatpush1.bf16.xpose.msra.mxu0 0
  %1542 = vmatprep.subr.bf16.mxu0 0
  %1543 = vmatpush1.bf16.xpose.msra.mxu0 %v1526
  %1544 = vmatprep.subr.bf16.mxu0 0
  %1545 = vmatpush2.bf16.xpose.msra.mxu0 0
  %1546 = vmatprep.subr.bf16.mxu0 0
  %1547 = vmatpush2.bf16.xpose.msra.mxu0 0
  %1548 = vmatprep.subr.bf16.mxu0 0
  %1549 = vmatpush2.bf16.xpose.msra.mxu0 0
  %1550 = vmatprep.subr.bf16.mxu0 0
  %1551 = vmatpush2.bf16.xpose.msra.mxu0 0
  %1552 = vmatprep.subr.bf16.mxu0 0
  %1553 = vmatpush2.bf16.xpose.msra.mxu0 0
  %1554 = vmatprep.subr.bf16.mxu0 0
  %1555 = vmatpush2.bf16.xpose.msra.mxu0 0
  %1556 = vmatprep.subr.bf16.mxu0 0
  %1557 = vmatpush2.bf16.xpose.msra.mxu0 0
  %1558 = vmatprep.subr.bf16.mxu0 0
  %1559 = vmatpush2.bf16.xpose.msra.mxu0 0
  %1560 = vmatprep.mubr.bf16.mxu0 0
  %1561 = vmatmul.mubr.bf16.gmra.mxu0 %v1523
  %v1562 = vpop.f32.mrf.mxu0
  %v1563 = vadd.f32 %v603, %v1562
  %v1564 = vpop.f32.mrf.mxu0
  %v1565 = vpop.f32.mrf.mxu0
  %v1566 = vpop.f32.mrf.mxu0
  %1567 = vdwg.mxu0
  %v1568 = vsel %vm900, %v1313, -inf
  %1569 = vmax.xlane.f32.xlu0 %v1568
  %v1570 = vpop.xlane.xlu0 %1569
  %v1571 = vsel %vm900, %v1363, -inf
  %1572 = vmax.xlane.f32.xlu0 %v1571
  %v1573 = vpop.xlane.xlu0 %1572
  %v1574 = vsel %vm900, %v1413, -inf
  %1575 = vmax.xlane.f32.xlu0 %v1574
  %v1576 = vpop.xlane.xlu0 %1575
  %v1577 = vsel %vm900, %v1463, -inf
  %1578 = vmax.xlane.f32.xlu0 %v1577
  %v1579 = vpop.xlane.xlu0 %1578
  %v1580 = vsel %vm900, %v1513, -inf
  %1581 = vmax.xlane.f32.xlu0 %v1580
  %v1582 = vpop.xlane.xlu0 %1581
  %v1583 = vsel %vm900, %v1563, -inf
  %1584 = vmax.xlane.f32.xlu0 %v1583
  %v1585 = vpop.xlane.xlu0 %1584
  %v1586 = vsub.f32 %v1313, %v1570
  %v1587 = vsub.f32 %v1363, %v1573
  %v1588 = vsub.f32 %v1413, %v1576
  %v1589 = vsub.f32 %v1463, %v1579
  %v1590 = vsub.f32 %v1513, %v1582
  %v1591 = vsub.f32 %v1563, %v1585
  %v1592 = vmul.f32 %v1586, 1.442695
  %v1593 = vpow.pop %v1592
  %v1594 = vmul.f32 %v1587, 1.442695
  %v1595 = vpow.pop %v1594
  %v1596 = vmul.f32 %v1588, 1.442695
  %v1597 = vpow.pop %v1596
  %v1598 = vmul.f32 %v1589, 1.442695
  %v1599 = vpow.pop %v1598
  %v1600 = vmul.f32 %v1590, 1.442695
  %v1601 = vpow.pop %v1600
  %v1602 = vmul.f32 %v1591, 1.442695
  %v1603 = vpow.pop %v1602
  %v1604 = vsel %vm900, %v1593, 0.0
  %1605 = vadd.xlane.f32.xlu0 %v1604
  %v1606 = vpop.xlane.xlu0 %1605
  %v1607 = vsel %vm900, %v1595, 0.0
  %1608 = vadd.xlane.f32.xlu0 %v1607
  %v1609 = vpop.xlane.xlu0 %1608
  %v1610 = vsel %vm900, %v1597, 0.0
  %1611 = vadd.xlane.f32.xlu0 %v1610
  %v1612 = vpop.xlane.xlu0 %1611
  %v1613 = vsel %vm900, %v1599, 0.0
  %1614 = vadd.xlane.f32.xlu0 %v1613
  %v1615 = vpop.xlane.xlu0 %1614
  %v1616 = vsel %vm900, %v1601, 0.0
  %1617 = vadd.xlane.f32.xlu0 %v1616
  %v1618 = vpop.xlane.xlu0 %1617
  %v1619 = vsel %vm900, %v1603, 0.0
  %1620 = vadd.xlane.f32.xlu0 %v1619
  %v1621 = vpop.xlane.xlu0 %1620
  %v1622 = vrcp.pop %v1606
  %v1623 = vrcp.pop %v1609
  %v1624 = vrcp.pop %v1612
  %v1625 = vrcp.pop %v1615
  %v1626 = vrcp.pop %v1618
  %v1627 = vrcp.pop %v1621
  %v1628 = vmul.f32 %v1593, %v1622
  %v1629 = vmul.f32 %v1595, %v1623
  %v1630 = vmul.f32 %v1597, %v1624
  %v1631 = vmul.f32 %v1599, %v1625
  %v1632 = vmul.f32 %v1601, %v1626
  %v1633 = vmul.f32 %v1603, %v1627
  %v1634 = vpack.c.bf16 %v1628, %v1628
  %v1635 = vpack.c.bf16 %v1629, %v1629
  %v1636 = vpack.c.bf16 %v1630, %v1630
  %v1637 = vpack.c.bf16 %v1631, %v1631
  %v1638 = vpack.c.bf16 %v1632, %v1632
  %v1639 = vpack.c.bf16 %v1633, %v1633
  %1640 = vrot.lane.b32.xlu0 %v593, 48
  %v1641 = vpop.permute.xlu0 %1640
  %v1643 = vsel %vm900, %v1634, 0
  %v1646 = vsel %vm978, %v1641, 0
  %1648 = vmatprep.subr.bf16.mxu0 0
  %1649 = vmatpush1.bf16.msra.mxu0 0
  %1650 = vmatprep.subr.bf16.mxu0 0
  %1651 = vmatpush1.bf16.msra.mxu0 0
  %1652 = vmatprep.subr.bf16.mxu0 0
  %1653 = vmatpush1.bf16.msra.mxu0 0
  %1654 = vmatprep.subr.bf16.mxu0 0
  %1655 = vmatpush1.bf16.msra.mxu0 0
  %1656 = vmatprep.subr.bf16.mxu0 0
  %1657 = vmatpush1.bf16.msra.mxu0 0
  %1658 = vmatprep.subr.bf16.mxu0 0
  %1659 = vmatpush1.bf16.msra.mxu0 0
  %1660 = vmatprep.subr.bf16.mxu0 0
  %1661 = vmatpush1.bf16.msra.mxu0 0
  %1662 = vmatprep.subr.bf16.mxu0 0
  %1663 = vmatpush1.bf16.msra.mxu0 %v1646
  %1664 = vmatprep.subr.bf16.mxu0 0
  %1665 = vmatpush2.bf16.msra.mxu0 0
  %1666 = vmatprep.subr.bf16.mxu0 0
  %1667 = vmatpush2.bf16.msra.mxu0 0
  %1668 = vmatprep.subr.bf16.mxu0 0
  %1669 = vmatpush2.bf16.msra.mxu0 0
  %1670 = vmatprep.subr.bf16.mxu0 0
  %1671 = vmatpush2.bf16.msra.mxu0 0
  %1672 = vmatprep.subr.bf16.mxu0 0
  %1673 = vmatpush2.bf16.msra.mxu0 0
  %1674 = vmatprep.subr.bf16.mxu0 0
  %1675 = vmatpush2.bf16.msra.mxu0 0
  %1676 = vmatprep.subr.bf16.mxu0 0
  %1677 = vmatpush2.bf16.msra.mxu0 0
  %1678 = vmatprep.subr.bf16.mxu0 0
  %1679 = vmatpush2.bf16.msra.mxu0 0
  %1680 = vmatprep.mubr.bf16.mxu0 0
  %1681 = vmatmul.mubr.bf16.gmra.mxu0 %v1643
  %v1682 = vpop.f32.mrf.mxu0
  %v1683 = vadd.f32 0.0, %v1682
  %v1684 = vpop.f32.mrf.mxu0
  %v1685 = vpop.f32.mrf.mxu0
  %v1686 = vpop.f32.mrf.mxu0
  %1687 = vdwg.mxu0
  %1688 = vrot.lane.b32.xlu0 %v594, 48
  %v1689 = vpop.permute.xlu0 %1688
  %v1691 = vsel %vm900, %v1635, 0
  %v1694 = vsel %vm978, %v1689, 0
  %1696 = vmatprep.subr.bf16.mxu0 0
  %1697 = vmatpush1.bf16.msra.mxu0 0
  %1698 = vmatprep.subr.bf16.mxu0 0
  %1699 = vmatpush1.bf16.msra.mxu0 0
  %1700 = vmatprep.subr.bf16.mxu0 0
  %1701 = vmatpush1.bf16.msra.mxu0 0
  %1702 = vmatprep.subr.bf16.mxu0 0
  %1703 = vmatpush1.bf16.msra.mxu0 0
  %1704 = vmatprep.subr.bf16.mxu0 0
  %1705 = vmatpush1.bf16.msra.mxu0 0
  %1706 = vmatprep.subr.bf16.mxu0 0
  %1707 = vmatpush1.bf16.msra.mxu0 0
  %1708 = vmatprep.subr.bf16.mxu0 0
  %1709 = vmatpush1.bf16.msra.mxu0 0
  %1710 = vmatprep.subr.bf16.mxu0 0
  %1711 = vmatpush1.bf16.msra.mxu0 %v1694
  %1712 = vmatprep.subr.bf16.mxu0 0
  %1713 = vmatpush2.bf16.msra.mxu0 0
  %1714 = vmatprep.subr.bf16.mxu0 0
  %1715 = vmatpush2.bf16.msra.mxu0 0
  %1716 = vmatprep.subr.bf16.mxu0 0
  %1717 = vmatpush2.bf16.msra.mxu0 0
  %1718 = vmatprep.subr.bf16.mxu0 0
  %1719 = vmatpush2.bf16.msra.mxu0 0
  %1720 = vmatprep.subr.bf16.mxu0 0
  %1721 = vmatpush2.bf16.msra.mxu0 0
  %1722 = vmatprep.subr.bf16.mxu0 0
  %1723 = vmatpush2.bf16.msra.mxu0 0
  %1724 = vmatprep.subr.bf16.mxu0 0
  %1725 = vmatpush2.bf16.msra.mxu0 0
  %1726 = vmatprep.subr.bf16.mxu0 0
  %1727 = vmatpush2.bf16.msra.mxu0 0
  %1728 = vmatprep.mubr.bf16.mxu0 0
  %1729 = vmatmul.mubr.bf16.gmra.mxu0 %v1691
  %v1730 = vpop.f32.mrf.mxu0
  %v1731 = vadd.f32 0.0, %v1730
  %v1732 = vpop.f32.mrf.mxu0
  %v1733 = vpop.f32.mrf.mxu0
  %v1734 = vpop.f32.mrf.mxu0
  %1735 = vdwg.mxu0
  %1736 = vrot.lane.b32.xlu0 %v595, 48
  %v1737 = vpop.permute.xlu0 %1736
  %v1739 = vsel %vm900, %v1636, 0
  %v1742 = vsel %vm978, %v1737, 0
  %1744 = vmatprep.subr.bf16.mxu0 0
  %1745 = vmatpush1.bf16.msra.mxu0 0
  %1746 = vmatprep.subr.bf16.mxu0 0
  %1747 = vmatpush1.bf16.msra.mxu0 0
  %1748 = vmatprep.subr.bf16.mxu0 0
  %1749 = vmatpush1.bf16.msra.mxu0 0
  %1750 = vmatprep.subr.bf16.mxu0 0
  %1751 = vmatpush1.bf16.msra.mxu0 0
  %1752 = vmatprep.subr.bf16.mxu0 0
  %1753 = vmatpush1.bf16.msra.mxu0 0
  %1754 = vmatprep.subr.bf16.mxu0 0
  %1755 = vmatpush1.bf16.msra.mxu0 0
  %1756 = vmatprep.subr.bf16.mxu0 0
  %1757 = vmatpush1.bf16.msra.mxu0 0
  %1758 = vmatprep.subr.bf16.mxu0 0
  %1759 = vmatpush1.bf16.msra.mxu0 %v1742
  %1760 = vmatprep.subr.bf16.mxu0 0
  %1761 = vmatpush2.bf16.msra.mxu0 0
  %1762 = vmatprep.subr.bf16.mxu0 0
  %1763 = vmatpush2.bf16.msra.mxu0 0
  %1764 = vmatprep.subr.bf16.mxu0 0
  %1765 = vmatpush2.bf16.msra.mxu0 0
  %1766 = vmatprep.subr.bf16.mxu0 0
  %1767 = vmatpush2.bf16.msra.mxu0 0
  %1768 = vmatprep.subr.bf16.mxu0 0
  %1769 = vmatpush2.bf16.msra.mxu0 0
  %1770 = vmatprep.subr.bf16.mxu0 0
  %1771 = vmatpush2.bf16.msra.mxu0 0
  %1772 = vmatprep.subr.bf16.mxu0 0
  %1773 = vmatpush2.bf16.msra.mxu0 0
  %1774 = vmatprep.subr.bf16.mxu0 0
  %1775 = vmatpush2.bf16.msra.mxu0 0
  %1776 = vmatprep.mubr.bf16.mxu0 0
  %1777 = vmatmul.mubr.bf16.gmra.mxu0 %v1739
  %v1778 = vpop.f32.mrf.mxu0
  %v1779 = vadd.f32 0.0, %v1778
  %v1780 = vpop.f32.mrf.mxu0
  %v1781 = vpop.f32.mrf.mxu0
  %v1782 = vpop.f32.mrf.mxu0
  %1783 = vdwg.mxu0
  %1784 = vrot.lane.b32.xlu0 %v596, 48
  %v1785 = vpop.permute.xlu0 %1784
  %v1787 = vsel %vm900, %v1637, 0
  %v1790 = vsel %vm978, %v1785, 0
  %1792 = vmatprep.subr.bf16.mxu0 0
  %1793 = vmatpush1.bf16.msra.mxu0 0
  %1794 = vmatprep.subr.bf16.mxu0 0
  %1795 = vmatpush1.bf16.msra.mxu0 0
  %1796 = vmatprep.subr.bf16.mxu0 0
  %1797 = vmatpush1.bf16.msra.mxu0 0
  %1798 = vmatprep.subr.bf16.mxu0 0
  %1799 = vmatpush1.bf16.msra.mxu0 0
  %1800 = vmatprep.subr.bf16.mxu0 0
  %1801 = vmatpush1.bf16.msra.mxu0 0
  %1802 = vmatprep.subr.bf16.mxu0 0
  %1803 = vmatpush1.bf16.msra.mxu0 0
  %1804 = vmatprep.subr.bf16.mxu0 0
  %1805 = vmatpush1.bf16.msra.mxu0 0
  %1806 = vmatprep.subr.bf16.mxu0 0
  %1807 = vmatpush1.bf16.msra.mxu0 %v1790
  %1808 = vmatprep.subr.bf16.mxu0 0
  %1809 = vmatpush2.bf16.msra.mxu0 0
  %1810 = vmatprep.subr.bf16.mxu0 0
  %1811 = vmatpush2.bf16.msra.mxu0 0
  %1812 = vmatprep.subr.bf16.mxu0 0
  %1813 = vmatpush2.bf16.msra.mxu0 0
  %1814 = vmatprep.subr.bf16.mxu0 0
  %1815 = vmatpush2.bf16.msra.mxu0 0
  %1816 = vmatprep.subr.bf16.mxu0 0
  %1817 = vmatpush2.bf16.msra.mxu0 0
  %1818 = vmatprep.subr.bf16.mxu0 0
  %1819 = vmatpush2.bf16.msra.mxu0 0
  %1820 = vmatprep.subr.bf16.mxu0 0
  %1821 = vmatpush2.bf16.msra.mxu0 0
  %1822 = vmatprep.subr.bf16.mxu0 0
  %1823 = vmatpush2.bf16.msra.mxu0 0
  %1824 = vmatprep.mubr.bf16.mxu0 0
  %1825 = vmatmul.mubr.bf16.gmra.mxu0 %v1787
  %v1826 = vpop.f32.mrf.mxu0
  %v1827 = vadd.f32 0.0, %v1826
  %v1828 = vpop.f32.mrf.mxu0
  %v1829 = vpop.f32.mrf.mxu0
  %v1830 = vpop.f32.mrf.mxu0
  %1831 = vdwg.mxu0
  %1832 = vrot.lane.b32.xlu0 %v597, 48
  %v1833 = vpop.permute.xlu0 %1832
  %v1835 = vsel %vm900, %v1638, 0
  %v1838 = vsel %vm978, %v1833, 0
  %1840 = vmatprep.subr.bf16.mxu0 0
  %1841 = vmatpush1.bf16.msra.mxu0 0
  %1842 = vmatprep.subr.bf16.mxu0 0
  %1843 = vmatpush1.bf16.msra.mxu0 0
  %1844 = vmatprep.subr.bf16.mxu0 0
  %1845 = vmatpush1.bf16.msra.mxu0 0
  %1846 = vmatprep.subr.bf16.mxu0 0
  %1847 = vmatpush1.bf16.msra.mxu0 0
  %1848 = vmatprep.subr.bf16.mxu0 0
  %1849 = vmatpush1.bf16.msra.mxu0 0
  %1850 = vmatprep.subr.bf16.mxu0 0
  %1851 = vmatpush1.bf16.msra.mxu0 0
  %1852 = vmatprep.subr.bf16.mxu0 0
  %1853 = vmatpush1.bf16.msra.mxu0 0
  %1854 = vmatprep.subr.bf16.mxu0 0
  %1855 = vmatpush1.bf16.msra.mxu0 %v1838
  %1856 = vmatprep.subr.bf16.mxu0 0
  %1857 = vmatpush2.bf16.msra.mxu0 0
  %1858 = vmatprep.subr.bf16.mxu0 0
  %1859 = vmatpush2.bf16.msra.mxu0 0
  %1860 = vmatprep.subr.bf16.mxu0 0
  %1861 = vmatpush2.bf16.msra.mxu0 0
  %1862 = vmatprep.subr.bf16.mxu0 0
  %1863 = vmatpush2.bf16.msra.mxu0 0
  %1864 = vmatprep.subr.bf16.mxu0 0
  %1865 = vmatpush2.bf16.msra.mxu0 0
  %1866 = vmatprep.subr.bf16.mxu0 0
  %1867 = vmatpush2.bf16.msra.mxu0 0
  %1868 = vmatprep.subr.bf16.mxu0 0
  %1869 = vmatpush2.bf16.msra.mxu0 0
  %1870 = vmatprep.subr.bf16.mxu0 0
  %1871 = vmatpush2.bf16.msra.mxu0 0
  %1872 = vmatprep.mubr.bf16.mxu0 0
  %1873 = vmatmul.mubr.bf16.gmra.mxu0 %v1835
  %v1874 = vpop.f32.mrf.mxu0
  %v1875 = vadd.f32 0.0, %v1874
  %v1876 = vpop.f32.mrf.mxu0
  %v1877 = vpop.f32.mrf.mxu0
  %v1878 = vpop.f32.mrf.mxu0
  %1879 = vdwg.mxu0
  %1880 = vrot.lane.b32.xlu0 %v598, 48
  %v1881 = vpop.permute.xlu0 %1880
  %v1883 = vsel %vm900, %v1639, 0
  %v1886 = vsel %vm978, %v1881, 0
  %1888 = vmatprep.subr.bf16.mxu0 0
  %1889 = vmatpush1.bf16.msra.mxu0 0
  %1890 = vmatprep.subr.bf16.mxu0 0
  %1891 = vmatpush1.bf16.msra.mxu0 0
  %1892 = vmatprep.subr.bf16.mxu0 0
  %1893 = vmatpush1.bf16.msra.mxu0 0
  %1894 = vmatprep.subr.bf16.mxu0 0
  %1895 = vmatpush1.bf16.msra.mxu0 0
  %1896 = vmatprep.subr.bf16.mxu0 0
  %1897 = vmatpush1.bf16.msra.mxu0 0
  %1898 = vmatprep.subr.bf16.mxu0 0
  %1899 = vmatpush1.bf16.msra.mxu0 0
  %1900 = vmatprep.subr.bf16.mxu0 0
  %1901 = vmatpush1.bf16.msra.mxu0 0
  %1902 = vmatprep.subr.bf16.mxu0 0
  %1903 = vmatpush1.bf16.msra.mxu0 %v1886
  %1904 = vmatprep.subr.bf16.mxu0 0
  %1905 = vmatpush2.bf16.msra.mxu0 0
  %1906 = vmatprep.subr.bf16.mxu0 0
  %1907 = vmatpush2.bf16.msra.mxu0 0
  %1908 = vmatprep.subr.bf16.mxu0 0
  %1909 = vmatpush2.bf16.msra.mxu0 0
  %1910 = vmatprep.subr.bf16.mxu0 0
  %1911 = vmatpush2.bf16.msra.mxu0 0
  %1912 = vmatprep.subr.bf16.mxu0 0
  %1913 = vmatpush2.bf16.msra.mxu0 0
  %1914 = vmatprep.subr.bf16.mxu0 0
  %1915 = vmatpush2.bf16.msra.mxu0 0
  %1916 = vmatprep.subr.bf16.mxu0 0
  %1917 = vmatpush2.bf16.msra.mxu0 0
  %1918 = vmatprep.subr.bf16.mxu0 0
  %1919 = vmatpush2.bf16.msra.mxu0 0
  %1920 = vmatprep.mubr.bf16.mxu0 0
  %1921 = vmatmul.mubr.bf16.gmra.mxu0 %v1883
  %v1922 = vpop.f32.mrf.mxu0
  %v1923 = vadd.f32 0.0, %v1922
  %v1924 = vpop.f32.mrf.mxu0
  %v1925 = vpop.f32.mrf.mxu0
  %v1926 = vpop.f32.mrf.mxu0
  %1927 = vdwg.mxu0
  %1934 = vrot.lane.b32.xlu0 %v1683, 16
  %v1935 = vpop.permute.xlu0 %1934
  %1936 = vrot.lane.b32.xlu0 %v1731, 16
  %v1937 = vpop.permute.xlu0 %1936
  %1938 = vrot.lane.b32.xlu0 %v1779, 16
  %v1939 = vpop.permute.xlu0 %1938
  %1940 = vrot.lane.b32.xlu0 %v1827, 16
  %v1941 = vpop.permute.xlu0 %1940
  %1942 = vrot.lane.b32.xlu0 %v1875, 16
  %v1943 = vpop.permute.xlu0 %1942
  %1944 = vrot.lane.b32.xlu0 %v1923, 16
  %v1945 = vpop.permute.xlu0 %1944
  %vm1952 = vcmask 261248
  %1953 = vst.msk [vmem:[#allocation2] sm:$0xff] %vm1952, %v1935
  %1954 = vst.msk [vmem:[#allocation2 + $0x8] sm:$0xff] %vm1952, %v1937
  %1955 = vst.msk [vmem:[#allocation2 + $0x10] sm:$0xff] %vm1952, %v1939
  %1956 = vst.msk [vmem:[#allocation2 + $0x18] sm:$0xff] %vm1952, %v1941
  %1957 = vst.msk [vmem:[#allocation2 + $0x20] sm:$0xff] %vm1952, %v1943
  %1958 = vst.msk [vmem:[#allocation2 + $0x28] sm:$0xff] %vm1952, %v1945
  %v1959 = vld [vmem:[#allocation2] sm:$0xff]
  %v1960 = vld [vmem:[#allocation2 + $0x8] sm:$0xff]
  %v1961 = vld [vmem:[#allocation2 + $0x10] sm:$0xff]
  %v1962 = vld [vmem:[#allocation2 + $0x18] sm:$0xff]
  %v1963 = vld [vmem:[#allocation2 + $0x20] sm:$0xff]
  %v1964 = vld [vmem:[#allocation2 + $0x28] sm:$0xff]
  %v1965 = vpack.c.bf16 %v1960, %v1959
  %v1966 = vpack.c.bf16 %v1962, %v1961
  %v1967 = vpack.c.bf16 %v1964, %v1963
  %v1968 = vld [vmem:[%s7] sm:$0xf]
  %v1969 = vld [vmem:[%s7 + $0x4] sm:$0xf]
  %v1970 = vld [vmem:[%s7 + $0x8] sm:$0xf]
  %v1971 = vld [vmem:[%s7 + $0xc] sm:$0xf]
  %v1976 = vunpack.c.l.b16 %v1968
  %v1977 = vunpack.c.l.b16 %v1969
  %v1978 = vunpack.c.l.b16 %v1970
  %v1979 = vunpack.c.l.b16 %v1971
  %v1980 = vpack.c.b16 %v1977, %v1976
  %v1981 = vpack.c.b16 %v1979, %v1978
  %v1985 = vsel %vm254, %v1965, 0
  %v1988 = vsel %vm254, %v1966, 0
  %v1991 = vsel %vm254, %v1967, 0
  %1993 = vmatprep.subr.bf16.mxu0 0
  %1994 = vmatpush1.bf16.msra.mxu0 0
  %1995 = vmatprep.subr.bf16.mxu0 0
  %1996 = vmatpush1.bf16.msra.mxu0 0
  %1997 = vmatprep.subr.bf16.mxu0 0
  %1998 = vmatpush1.bf16.msra.mxu0 0
  %1999 = vmatprep.subr.bf16.mxu0 0
  %2000 = vmatpush1.bf16.msra.mxu0 0
  %2001 = vmatprep.subr.bf16.mxu0 0
  %2002 = vmatpush1.bf16.msra.mxu0 0
  %2003 = vmatprep.subr.bf16.mxu0 0
  %2004 = vmatpush1.bf16.msra.mxu0 0
  %2005 = vmatprep.subr.bf16.mxu0 0
  %2006 = vmatpush1.bf16.msra.mxu0 %v1981
  %2007 = vmatprep.subr.bf16.mxu0 0
  %2008 = vmatpush1.bf16.msra.mxu0 %v1980
  %2009 = vmatprep.subr.bf16.mxu0 0
  %2010 = vmatpush2.bf16.msra.mxu0 0
  %2011 = vmatprep.subr.bf16.mxu0 0
  %2012 = vmatpush2.bf16.msra.mxu0 0
  %2013 = vmatprep.subr.bf16.mxu0 0
  %2014 = vmatpush2.bf16.msra.mxu0 0
  %2015 = vmatprep.subr.bf16.mxu0 0
  %2016 = vmatpush2.bf16.msra.mxu0 0
  %2017 = vmatprep.subr.bf16.mxu0 0
  %2018 = vmatpush2.bf16.msra.mxu0 0
  %2019 = vmatprep.subr.bf16.mxu0 0
  %2020 = vmatpush2.bf16.msra.mxu0 0
  %2021 = vmatprep.subr.bf16.mxu0 0
  %2022 = vmatpush2.bf16.msra.mxu0 0
  %2023 = vmatprep.subr.bf16.mxu0 0
  %2024 = vmatpush2.bf16.msra.mxu0 0
  %2025 = vmatprep.mubr.bf16.mxu0 0
  %2026 = vmatmul.mubr.bf16.gmra.mxu0 %v1985
  %v2027 = vpop.f32.mrf.mxu0
  %v2028 = vadd.f32 0.0, %v2027
  %v2029 = vpop.f32.mrf.mxu0
  %v2030 = vpop.f32.mrf.mxu0
  %v2031 = vadd.f32 0.0, %v2030
  %v2032 = vpop.f32.mrf.mxu0
  %2033 = vmatprep.mubr.bf16.mxu0 0
  %2034 = vmatmul.mubr.bf16.gmra.mxu0 %v1988
  %v2035 = vpop.f32.mrf.mxu0
  %v2036 = vadd.f32 0.0, %v2035
  %v2037 = vpop.f32.mrf.mxu0
  %v2038 = vpop.f32.mrf.mxu0
  %v2039 = vadd.f32 0.0, %v2038
  %v2040 = vpop.f32.mrf.mxu0
  %2041 = vmatprep.mubr.bf16.mxu0 0
  %2042 = vmatmul.mubr.bf16.gmra.mxu0 %v1991
  %v2043 = vpop.f32.mrf.mxu0
  %v2044 = vadd.f32 0.0, %v2043
  %v2045 = vpop.f32.mrf.mxu0
  %v2046 = vpop.f32.mrf.mxu0
  %v2047 = vadd.f32 0.0, %v2046
  %v2048 = vpop.f32.mrf.mxu0
  %2049 = vdwg.mxu0
  %v2050 = vadd.f32 %v402, %v2028
  %v2051 = vadd.f32 %v403, %v2031
  %v2052 = vadd.f32 %v404, %v2036
  %v2053 = vadd.f32 %v405, %v2039
  %v2054 = vadd.f32 %v406, %v2044
  %v2055 = vadd.f32 %v407, %v2047
  %v2056 = vlaneseq
  %v2057 = vshrl.u32 %v2056, 7
  %v2058 = vsub.s32 2, %v2057
  %v2059 = vrot.slane %v409, %v2058
  %v2060 = vadd.f32 %v2050, %v2059
  %v2061 = vadd.f32 %v2051, %v2059
  %v2062 = vadd.f32 %v2052, %v2059
  %v2063 = vadd.f32 %v2053, %v2059
  %v2064 = vadd.f32 %v2054, %v2059
  %v2065 = vadd.f32 %v2055, %v2059
  %v2066 = vsel %vm254, %v2060, 0.0
  %2067 = vadd.xlane.f32.xlu0 %v2066
  %v2068 = vpop.xlane.xlu0 %2067
  %v2069 = vsel %vm254, %v2061, 0.0
  %2070 = vadd.xlane.f32.xlu0 %v2069
  %v2071 = vpop.xlane.xlu0 %2070
  %v2072 = vsel %vm254, %v2062, 0.0
  %2073 = vadd.xlane.f32.xlu0 %v2072
  %v2074 = vpop.xlane.xlu0 %2073
  %v2075 = vsel %vm254, %v2063, 0.0
  %2076 = vadd.xlane.f32.xlu0 %v2075
  %v2077 = vpop.xlane.xlu0 %2076
  %v2078 = vsel %vm254, %v2064, 0.0
  %2079 = vadd.xlane.f32.xlu0 %v2078
  %v2080 = vpop.xlane.xlu0 %2079
  %v2081 = vsel %vm254, %v2065, 0.0
  %2082 = vadd.xlane.f32.xlu0 %v2081
  %v2083 = vpop.xlane.xlu0 %2082
  %v2084 = vmul.f32 %v2068, %v273
  %v2085 = vmul.f32 %v2071, %v273
  %v2086 = vmul.f32 %v2074, %v273
  %v2087 = vmul.f32 %v2077, %v273
  %v2088 = vmul.f32 %v2080, %v273
  %v2089 = vmul.f32 %v2083, %v273
  %v2090 = vsub.f32 %v2060, %v2084
  %v2091 = vsub.f32 %v2061, %v2085
  %v2092 = vsub.f32 %v2062, %v2086
  %v2093 = vsub.f32 %v2063, %v2087
  %v2094 = vsub.f32 %v2064, %v2088
  %v2095 = vsub.f32 %v2065, %v2089
  %v2096 = vmul.f32 %v2090, %v2090
  %v2097 = vmul.f32 %v2091, %v2091
  %v2098 = vmul.f32 %v2092, %v2092
  %v2099 = vmul.f32 %v2093, %v2093
  %v2100 = vmul.f32 %v2094, %v2094
  %v2101 = vmul.f32 %v2095, %v2095
  %v2102 = vsel %vm254, %v2096, 0.0
  %2103 = vadd.xlane.f32.xlu0 %v2102
  %v2104 = vpop.xlane.xlu0 %2103
  %v2105 = vsel %vm254, %v2097, 0.0
  %2106 = vadd.xlane.f32.xlu0 %v2105
  %v2107 = vpop.xlane.xlu0 %2106
  %v2108 = vsel %vm254, %v2098, 0.0
  %2109 = vadd.xlane.f32.xlu0 %v2108
  %v2110 = vpop.xlane.xlu0 %2109
  %v2111 = vsel %vm254, %v2099, 0.0
  %2112 = vadd.xlane.f32.xlu0 %v2111
  %v2113 = vpop.xlane.xlu0 %2112
  %v2114 = vsel %vm254, %v2100, 0.0
  %2115 = vadd.xlane.f32.xlu0 %v2114
  %v2116 = vpop.xlane.xlu0 %2115
  %v2117 = vsel %vm254, %v2101, 0.0
  %2118 = vadd.xlane.f32.xlu0 %v2117
  %v2119 = vpop.xlane.xlu0 %2118
  %v2120 = vmul.f32 %v2104, %v273
  %v2121 = vmul.f32 %v2107, %v273
  %v2122 = vmul.f32 %v2110, %v273
  %v2123 = vmul.f32 %v2113, %v273
  %v2124 = vmul.f32 %v2116, %v273
  %v2125 = vmul.f32 %v2119, %v273
  %v2126 = vadd.f32 %v2120, 1e-05
  %v2127 = vadd.f32 %v2121, 1e-05
  %v2128 = vadd.f32 %v2122, 1e-05
  %v2129 = vadd.f32 %v2123, 1e-05
  %v2130 = vadd.f32 %v2124, 1e-05
  %v2131 = vadd.f32 %v2125, 1e-05
  %v2132 = vrsqrt.pop %v2126
  %v2133 = vrsqrt.pop %v2127
  %v2134 = vrsqrt.pop %v2128
  %v2135 = vrsqrt.pop %v2129
  %v2136 = vrsqrt.pop %v2130
  %v2137 = vrsqrt.pop %v2131
  %v2138 = vmul.f32 %v2090, %v2132
  %v2139 = vmul.f32 %v2091, %v2133
  %v2140 = vmul.f32 %v2092, %v2134
  %v2141 = vmul.f32 %v2093, %v2135
  %v2142 = vmul.f32 %v2094, %v2136
  %v2143 = vmul.f32 %v2095, %v2137
  %v2144 = vlaneseq
  %v2145 = vshrl.u32 %v2144, 7
  %v2146 = vsub.s32 3, %v2145
  %v2147 = vrot.slane %v409, %v2146
  %v2148 = vmul.f32 %v2138, %v2147
  %v2149 = vmul.f32 %v2139, %v2147
  %v2150 = vmul.f32 %v2140, %v2147
  %v2151 = vmul.f32 %v2141, %v2147
  %v2152 = vmul.f32 %v2142, %v2147
  %v2153 = vmul.f32 %v2143, %v2147
  %v2154 = vlaneseq
  %v2155 = vshrl.u32 %v2154, 7
  %v2156 = vsub.s32 4, %v2155
  %v2157 = vrot.slane %v409, %v2156
  %v2158 = vadd.f32 %v2148, %v2157
  %v2159 = vadd.f32 %v2149, %v2157
  %v2160 = vadd.f32 %v2150, %v2157
  %v2161 = vadd.f32 %v2151, %v2157
  %v2162 = vadd.f32 %v2152, %v2157
  %v2163 = vadd.f32 %v2153, %v2157
  %v2164 = vpack.c.bf16 %v2159, %v2158
  %v2165 = vpack.c.bf16 %v2161, %v2160
  %v2166 = vpack.c.bf16 %v2163, %v2162
  %v2167 = vld [vmem:[%s8] sm:$0xf]
  %v2168 = vld [vmem:[%s8 + $0x4] sm:$0xf]
  %v2169 = vld [vmem:[%s8 + $0x8] sm:$0xf]
  %v2170 = vld [vmem:[%s8 + $0xc] sm:$0xf]
  %v2171 = vlaneseq
  %v2172 = vshrl.u32 %v2171, 7
  %v2173 = vsub.s32 5, %v2172
  %v2174 = vrot.slane %v409, %v2173
  %v2179 = vunpack.c.l.b16 %v2167
  %v2180 = vunpack.c.l.b16 %v2168
  %v2181 = vunpack.c.l.b16 %v2169
  %v2182 = vunpack.c.l.b16 %v2170
  %v2183 = vpack.c.b16 %v2180, %v2179
  %v2184 = vpack.c.b16 %v2182, %v2181
  %v2188 = vsel %vm254, %v2164, 0
  %v2191 = vsel %vm254, %v2165, 0
  %v2194 = vsel %vm254, %v2166, 0
  %2196 = vmatprep.subr.bf16.mxu0 0
  %2197 = vmatpush1.bf16.msra.mxu0 0
  %2198 = vmatprep.subr.bf16.mxu0 0
  %2199 = vmatpush1.bf16.msra.mxu0 0
  %2200 = vmatprep.subr.bf16.mxu0 0
  %2201 = vmatpush1.bf16.msra.mxu0 0
  %2202 = vmatprep.subr.bf16.mxu0 0
  %2203 = vmatpush1.bf16.msra.mxu0 0
  %2204 = vmatprep.subr.bf16.mxu0 0
  %2205 = vmatpush1.bf16.msra.mxu0 0
  %2206 = vmatprep.subr.bf16.mxu0 0
  %2207 = vmatpush1.bf16.msra.mxu0 0
  %2208 = vmatprep.subr.bf16.mxu0 0
  %2209 = vmatpush1.bf16.msra.mxu0 %v2184
  %2210 = vmatprep.subr.bf16.mxu0 0
  %2211 = vmatpush1.bf16.msra.mxu0 %v2183
  %2212 = vmatprep.subr.bf16.mxu0 0
  %2213 = vmatpush2.bf16.msra.mxu0 0
  %2214 = vmatprep.subr.bf16.mxu0 0
  %2215 = vmatpush2.bf16.msra.mxu0 0
  %2216 = vmatprep.subr.bf16.mxu0 0
  %2217 = vmatpush2.bf16.msra.mxu0 0
  %2218 = vmatprep.subr.bf16.mxu0 0
  %2219 = vmatpush2.bf16.msra.mxu0 0
  %2220 = vmatprep.subr.bf16.mxu0 0
  %2221 = vmatpush2.bf16.msra.mxu0 0
  %2222 = vmatprep.subr.bf16.mxu0 0
  %2223 = vmatpush2.bf16.msra.mxu0 0
  %2224 = vmatprep.subr.bf16.mxu0 0
  %2225 = vmatpush2.bf16.msra.mxu0 0
  %2226 = vmatprep.subr.bf16.mxu0 0
  %2227 = vmatpush2.bf16.msra.mxu0 0
  %2228 = vmatprep.mubr.bf16.mxu0 0
  %2229 = vmatmul.mubr.bf16.gmra.mxu0 %v2188
  %v2230 = vpop.f32.mrf.mxu0
  %v2231 = vadd.f32 %v2174, %v2230
  %v2232 = vpop.f32.mrf.mxu0
  %v2233 = vpop.f32.mrf.mxu0
  %v2234 = vadd.f32 %v2174, %v2233
  %v2235 = vpop.f32.mrf.mxu0
  %2236 = vmatprep.mubr.bf16.mxu0 0
  %2237 = vmatmul.mubr.bf16.gmra.mxu0 %v2191
  %v2238 = vpop.f32.mrf.mxu0
  %v2239 = vadd.f32 %v2174, %v2238
  %v2240 = vpop.f32.mrf.mxu0
  %v2241 = vpop.f32.mrf.mxu0
  %v2242 = vadd.f32 %v2174, %v2241
  %v2243 = vpop.f32.mrf.mxu0
  %2244 = vmatprep.mubr.bf16.mxu0 0
  %2245 = vmatmul.mubr.bf16.gmra.mxu0 %v2194
  %v2246 = vpop.f32.mrf.mxu0
  %v2247 = vadd.f32 %v2174, %v2246
  %v2248 = vpop.f32.mrf.mxu0
  %v2249 = vpop.f32.mrf.mxu0
  %v2250 = vadd.f32 %v2174, %v2249
  %v2251 = vpop.f32.mrf.mxu0
  %2252 = vdwg.mxu0
  %v2253 = vmul.f32 %v2231, 0.5
  %v2254 = vmul.f32 %v2234, 0.5
  %v2255 = vmul.f32 %v2239, 0.5
  %v2256 = vmul.f32 %v2242, 0.5
  %v2257 = vmul.f32 %v2247, 0.5
  %v2258 = vmul.f32 %v2250, 0.5
  %v2259 = vmul.f32 %v2231, 0.70710677
  %v2260 = vmul.f32 %v2234, 0.70710677
  %v2261 = vmul.f32 %v2239, 0.70710677
  %v2262 = vmul.f32 %v2242, 0.70710677
  %v2263 = vmul.f32 %v2247, 0.70710677
  %v2264 = vmul.f32 %v2250, 0.70710677
  %v2265 = vand.u32 2147483647, %v2259
  %v2266 = vand.u32 2147483647, %v2260
  %v2267 = vand.u32 2147483647, %v2261
  %v2268 = vand.u32 2147483647, %v2262
  %v2269 = vand.u32 2147483647, %v2263
  %v2270 = vand.u32 2147483647, %v2264
  %v2271 = vmul.f32 %v2265, 0.3275911
  %v2272 = vmul.f32 %v2266, 0.3275911
  %v2273 = vmul.f32 %v2267, 0.3275911
  %v2274 = vmul.f32 %v2268, 0.3275911
  %v2275 = vmul.f32 %v2269, 0.3275911
  %v2276 = vmul.f32 %v2270, 0.3275911
  %v2277 = vadd.f32 %v2271, 1.0
  %v2278 = vadd.f32 %v2272, 1.0
  %v2279 = vadd.f32 %v2273, 1.0
  %v2280 = vadd.f32 %v2274, 1.0
  %v2281 = vadd.f32 %v2275, 1.0
  %v2282 = vadd.f32 %v2276, 1.0
  %v2283 = vrcp.pop %v2277
  %v2284 = vmul.f32 1.0, %v2283
  %v2285 = vrcp.pop %v2278
  %v2286 = vmul.f32 1.0, %v2285
  %v2287 = vrcp.pop %v2279
  %v2288 = vmul.f32 1.0, %v2287
  %v2289 = vrcp.pop %v2280
  %v2290 = vmul.f32 1.0, %v2289
  %v2291 = vrcp.pop %v2281
  %v2292 = vmul.f32 1.0, %v2291
  %v2293 = vrcp.pop %v2282
  %v2294 = vmul.f32 1.0, %v2293
  %v2295 = vmul.f32 %v2284, 1.0614054
  %v2296 = vmul.f32 %v2286, 1.0614054
  %v2297 = vmul.f32 %v2288, 1.0614054
  %v2298 = vmul.f32 %v2290, 1.0614054
  %v2299 = vmul.f32 %v2292, 1.0614054
  %v2300 = vmul.f32 %v2294, 1.0614054
  %v2301 = vadd.f32 %v2295, -1.4531521
  %v2302 = vadd.f32 %v2296, -1.4531521
  %v2303 = vadd.f32 %v2297, -1.4531521
  %v2304 = vadd.f32 %v2298, -1.4531521
  %v2305 = vadd.f32 %v2299, -1.4531521
  %v2306 = vadd.f32 %v2300, -1.4531521
  %v2307 = vmul.f32 %v2301, %v2284
  %v2308 = vmul.f32 %v2302, %v2286
  %v2309 = vmul.f32 %v2303, %v2288
  %v2310 = vmul.f32 %v2304, %v2290
  %v2311 = vmul.f32 %v2305, %v2292
  %v2312 = vmul.f32 %v2306, %v2294
  %v2313 = vadd.f32 %v2307, 1.4214138
  %v2314 = vadd.f32 %v2308, 1.4214138
  %v2315 = vadd.f32 %v2309, 1.4214138
  %v2316 = vadd.f32 %v2310, 1.4214138
  %v2317 = vadd.f32 %v2311, 1.4214138
  %v2318 = vadd.f32 %v2312, 1.4214138
  %v2319 = vmul.f32 %v2313, %v2284
  %v2320 = vmul.f32 %v2314, %v2286
  %v2321 = vmul.f32 %v2315, %v2288
  %v2322 = vmul.f32 %v2316, %v2290
  %v2323 = vmul.f32 %v2317, %v2292
  %v2324 = vmul.f32 %v2318, %v2294
  %v2325 = vadd.f32 %v2319, -0.28449672
  %v2326 = vadd.f32 %v2320, -0.28449672
  %v2327 = vadd.f32 %v2321, -0.28449672
  %v2328 = vadd.f32 %v2322, -0.28449672
  %v2329 = vadd.f32 %v2323, -0.28449672
  %v2330 = vadd.f32 %v2324, -0.28449672
  %v2331 = vmul.f32 %v2325, %v2284
  %v2332 = vmul.f32 %v2326, %v2286
  %v2333 = vmul.f32 %v2327, %v2288
  %v2334 = vmul.f32 %v2328, %v2290
  %v2335 = vmul.f32 %v2329, %v2292
  %v2336 = vmul.f32 %v2330, %v2294
  %v2337 = vadd.f32 %v2331, 0.2548296
  %v2338 = vadd.f32 %v2332, 0.2548296
  %v2339 = vadd.f32 %v2333, 0.2548296
  %v2340 = vadd.f32 %v2334, 0.2548296
  %v2341 = vadd.f32 %v2335, 0.2548296
  %v2342 = vadd.f32 %v2336, 0.2548296
  %v2343 = vmul.f32 %v2337, %v2284
  %v2344 = vmul.f32 %v2338, %v2286
  %v2345 = vmul.f32 %v2339, %v2288
  %v2346 = vmul.f32 %v2340, %v2290
  %v2347 = vmul.f32 %v2341, %v2292
  %v2348 = vmul.f32 %v2342, %v2294
  %v2349 = vsub.f32 0.0, %v2265
  %v2350 = vsub.f32 0.0, %v2266
  %v2351 = vsub.f32 0.0, %v2267
  %v2352 = vsub.f32 0.0, %v2268
  %v2353 = vsub.f32 0.0, %v2269
  %v2354 = vsub.f32 0.0, %v2270
  %v2355 = vmul.f32 %v2349, %v2265
  %v2356 = vmul.f32 %v2350, %v2266
  %v2357 = vmul.f32 %v2351, %v2267
  %v2358 = vmul.f32 %v2352, %v2268
  %v2359 = vmul.f32 %v2353, %v2269
  %v2360 = vmul.f32 %v2354, %v2270
  %v2361 = vmul.f32 %v2355, 1.442695
  %v2362 = vpow.pop %v2361
  %v2363 = vmul.f32 %v2356, 1.442695
  %v2364 = vpow.pop %v2363
  %v2365 = vmul.f32 %v2357, 1.442695
  %v2366 = vpow.pop %v2365
  %v2367 = vmul.f32 %v2358, 1.442695
  %v2368 = vpow.pop %v2367
  %v2369 = vmul.f32 %v2359, 1.442695
  %v2370 = vpow.pop %v2369
  %v2371 = vmul.f32 %v2360, 1.442695
  %v2372 = vpow.pop %v2371
  %v2373 = vmul.f32 %v2343, %v2362
  %v2374 = vmul.f32 %v2344, %v2364
  %v2375 = vmul.f32 %v2345, %v2366
  %v2376 = vmul.f32 %v2346, %v2368
  %v2377 = vmul.f32 %v2347, %v2370
  %v2378 = vmul.f32 %v2348, %v2372
  %v2379 = vsub.f32 1.0, %v2373
  %v2380 = vsub.f32 1.0, %v2374
  %v2381 = vsub.f32 1.0, %v2375
  %v2382 = vsub.f32 1.0, %v2376
  %v2383 = vsub.f32 1.0, %v2377
  %v2384 = vsub.f32 1.0, %v2378
  %vm2385 = vcmp.ge.f32.partialorder %v2259, 0.0
  %vm2386 = vcmp.ge.f32.partialorder %v2260, 0.0
  %vm2387 = vcmp.ge.f32.partialorder %v2261, 0.0
  %vm2388 = vcmp.ge.f32.partialorder %v2262, 0.0
  %vm2389 = vcmp.ge.f32.partialorder %v2263, 0.0
  %vm2390 = vcmp.ge.f32.partialorder %v2264, 0.0
  %v2391 = vsub.f32 0.0, %v2379
  %v2392 = vsub.f32 0.0, %v2380
  %v2393 = vsub.f32 0.0, %v2381
  %v2394 = vsub.f32 0.0, %v2382
  %v2395 = vsub.f32 0.0, %v2383
  %v2396 = vsub.f32 0.0, %v2384
  %v2397 = vsel %vm2385, %v2379, %v2391
  %v2398 = vsel %vm2386, %v2380, %v2392
  %v2399 = vsel %vm2387, %v2381, %v2393
  %v2400 = vsel %vm2388, %v2382, %v2394
  %v2401 = vsel %vm2389, %v2383, %v2395
  %v2402 = vsel %vm2390, %v2384, %v2396
  %v2403 = vadd.f32 %v2397, 1.0
  %v2404 = vadd.f32 %v2398, 1.0
  %v2405 = vadd.f32 %v2399, 1.0
  %v2406 = vadd.f32 %v2400, 1.0
  %v2407 = vadd.f32 %v2401, 1.0
  %v2408 = vadd.f32 %v2402, 1.0
  %v2409 = vmul.f32 %v2253, %v2403
  %v2410 = vmul.f32 %v2254, %v2404
  %v2411 = vmul.f32 %v2255, %v2405
  %v2412 = vmul.f32 %v2256, %v2406
  %v2413 = vmul.f32 %v2257, %v2407
  %v2414 = vmul.f32 %v2258, %v2408
  %v2415 = vpack.c.bf16 %v2410, %v2409
  %v2416 = vpack.c.bf16 %v2412, %v2411
  %v2417 = vpack.c.bf16 %v2414, %v2413
  %v2418 = vld [vmem:[%s9] sm:$0xf]
  %v2419 = vld [vmem:[%s9 + $0x4] sm:$0xf]
  %v2420 = vld [vmem:[%s9 + $0x8] sm:$0xf]
  %v2421 = vld [vmem:[%s9 + $0xc] sm:$0xf]
  %v2422 = vlaneseq
  %v2423 = vshrl.u32 %v2422, 7
  %v2424 = vsub.s32 6, %v2423
  %v2425 = vrot.slane %v409, %v2424
  %v2430 = vunpack.c.l.b16 %v2418
  %v2431 = vunpack.c.l.b16 %v2419
  %v2432 = vunpack.c.l.b16 %v2420
  %v2433 = vunpack.c.l.b16 %v2421
  %v2434 = vpack.c.b16 %v2431, %v2430
  %v2435 = vpack.c.b16 %v2433, %v2432
  %v2439 = vsel %vm254, %v2415, 0
  %v2442 = vsel %vm254, %v2416, 0
  %v2445 = vsel %vm254, %v2417, 0
  %2447 = vmatprep.subr.bf16.mxu0 0
  %2448 = vmatpush1.bf16.msra.mxu0 0
  %2449 = vmatprep.subr.bf16.mxu0 0
  %2450 = vmatpush1.bf16.msra.mxu0 0
  %2451 = vmatprep.subr.bf16.mxu0 0
  %2452 = vmatpush1.bf16.msra.mxu0 0
  %2453 = vmatprep.subr.bf16.mxu0 0
  %2454 = vmatpush1.bf16.msra.mxu0 0
  %2455 = vmatprep.subr.bf16.mxu0 0
  %2456 = vmatpush1.bf16.msra.mxu0 0
  %2457 = vmatprep.subr.bf16.mxu0 0
  %2458 = vmatpush1.bf16.msra.mxu0 0
  %2459 = vmatprep.subr.bf16.mxu0 0
  %2460 = vmatpush1.bf16.msra.mxu0 %v2435
  %2461 = vmatprep.subr.bf16.mxu0 0
  %2462 = vmatpush1.bf16.msra.mxu0 %v2434
  %2463 = vmatprep.subr.bf16.mxu0 0
  %2464 = vmatpush2.bf16.msra.mxu0 0
  %2465 = vmatprep.subr.bf16.mxu0 0
  %2466 = vmatpush2.bf16.msra.mxu0 0
  %2467 = vmatprep.subr.bf16.mxu0 0
  %2468 = vmatpush2.bf16.msra.mxu0 0
  %2469 = vmatprep.subr.bf16.mxu0 0
  %2470 = vmatpush2.bf16.msra.mxu0 0
  %2471 = vmatprep.subr.bf16.mxu0 0
  %2472 = vmatpush2.bf16.msra.mxu0 0
  %2473 = vmatprep.subr.bf16.mxu0 0
  %2474 = vmatpush2.bf16.msra.mxu0 0
  %2475 = vmatprep.subr.bf16.mxu0 0
  %2476 = vmatpush2.bf16.msra.mxu0 0
  %2477 = vmatprep.subr.bf16.mxu0 0
  %2478 = vmatpush2.bf16.msra.mxu0 0
  %2479 = vmatprep.mubr.bf16.mxu0 0
  %2480 = vmatmul.mubr.bf16.gmra.mxu0 %v2439
  %v2481 = vpop.f32.mrf.mxu0
  %v2482 = vadd.f32 %v2425, %v2481
  %v2483 = vpop.f32.mrf.mxu0
  %v2484 = vpop.f32.mrf.mxu0
  %v2485 = vadd.f32 %v2425, %v2484
  %v2486 = vpop.f32.mrf.mxu0
  %2487 = vmatprep.mubr.bf16.mxu0 0
  %2488 = vmatmul.mubr.bf16.gmra.mxu0 %v2442
  %v2489 = vpop.f32.mrf.mxu0
  %v2490 = vadd.f32 %v2425, %v2489
  %v2491 = vpop.f32.mrf.mxu0
  %v2492 = vpop.f32.mrf.mxu0
  %v2493 = vadd.f32 %v2425, %v2492
  %v2494 = vpop.f32.mrf.mxu0
  %2495 = vmatprep.mubr.bf16.mxu0 0
  %2496 = vmatmul.mubr.bf16.gmra.mxu0 %v2445
  %v2497 = vpop.f32.mrf.mxu0
  %v2498 = vadd.f32 %v2425, %v2497
  %v2499 = vpop.f32.mrf.mxu0
  %v2500 = vpop.f32.mrf.mxu0
  %v2501 = vadd.f32 %v2425, %v2500
  %v2502 = vpop.f32.mrf.mxu0
  %2503 = vdwg.mxu0
  %v2504 = vadd.f32 %v2060, %v2482
  %v2505 = vadd.f32 %v2061, %v2485
  %v2506 = vadd.f32 %v2062, %v2490
  %v2507 = vadd.f32 %v2063, %v2493
  %v2508 = vadd.f32 %v2064, %v2498
  %v2509 = vadd.f32 %v2065, %v2501
  %s2510 = scalar_lea.vmem %s11, 8
  %v2511 = vld [vmem:[%s2510] sm:$0xff]
  %v2512 = vsel %vm254, %v2504, 0.0
  %2513 = vadd.xlane.f32.xlu0 %v2512
  %v2514 = vpop.xlane.xlu0 %2513
  %v2515 = vsel %vm254, %v2505, 0.0
  %2516 = vadd.xlane.f32.xlu0 %v2515
  %v2517 = vpop.xlane.xlu0 %2516
  %v2518 = vsel %vm254, %v2506, 0.0
  %2519 = vadd.xlane.f32.xlu0 %v2518
  %v2520 = vpop.xlane.xlu0 %2519
  %v2521 = vsel %vm254, %v2507, 0.0
  %2522 = vadd.xlane.f32.xlu0 %v2521
  %v2523 = vpop.xlane.xlu0 %2522
  %v2524 = vsel %vm254, %v2508, 0.0
  %2525 = vadd.xlane.f32.xlu0 %v2524
  %v2526 = vpop.xlane.xlu0 %2525
  %v2527 = vsel %vm254, %v2509, 0.0
  %2528 = vadd.xlane.f32.xlu0 %v2527
  %v2529 = vpop.xlane.xlu0 %2528
  %v2530 = vmul.f32 %v2514, %v273
  %v2531 = vmul.f32 %v2517, %v273
  %v2532 = vmul.f32 %v2520, %v273
  %v2533 = vmul.f32 %v2523, %v273
  %v2534 = vmul.f32 %v2526, %v273
  %v2535 = vmul.f32 %v2529, %v273
  %v2536 = vsub.f32 %v2504, %v2530
  %v2537 = vsub.f32 %v2505, %v2531
  %v2538 = vsub.f32 %v2506, %v2532
  %v2539 = vsub.f32 %v2507, %v2533
  %v2540 = vsub.f32 %v2508, %v2534
  %v2541 = vsub.f32 %v2509, %v2535
  %v2542 = vmul.f32 %v2536, %v2536
  %v2543 = vmul.f32 %v2537, %v2537
  %v2544 = vmul.f32 %v2538, %v2538
  %v2545 = vmul.f32 %v2539, %v2539
  %v2546 = vmul.f32 %v2540, %v2540
  %v2547 = vmul.f32 %v2541, %v2541
  %v2548 = vsel %vm254, %v2542, 0.0
  %2549 = vadd.xlane.f32.xlu0 %v2548
  %v2550 = vpop.xlane.xlu0 %2549
  %v2551 = vsel %vm254, %v2543, 0.0
  %2552 = vadd.xlane.f32.xlu0 %v2551
  %v2553 = vpop.xlane.xlu0 %2552
  %v2554 = vsel %vm254, %v2544, 0.0
  %2555 = vadd.xlane.f32.xlu0 %v2554
  %v2556 = vpop.xlane.xlu0 %2555
  %v2557 = vsel %vm254, %v2545, 0.0
  %2558 = vadd.xlane.f32.xlu0 %v2557
  %v2559 = vpop.xlane.xlu0 %2558
  %v2560 = vsel %vm254, %v2546, 0.0
  %2561 = vadd.xlane.f32.xlu0 %v2560
  %v2562 = vpop.xlane.xlu0 %2561
  %v2563 = vsel %vm254, %v2547, 0.0
  %2564 = vadd.xlane.f32.xlu0 %v2563
  %v2565 = vpop.xlane.xlu0 %2564
  %v2566 = vmul.f32 %v2550, %v273
  %v2567 = vmul.f32 %v2553, %v273
  %v2568 = vmul.f32 %v2556, %v273
  %v2569 = vmul.f32 %v2559, %v273
  %v2570 = vmul.f32 %v2562, %v273
  %v2571 = vmul.f32 %v2565, %v273
  %v2572 = vadd.f32 %v2566, 1e-05
  %v2573 = vadd.f32 %v2567, 1e-05
  %v2574 = vadd.f32 %v2568, 1e-05
  %v2575 = vadd.f32 %v2569, 1e-05
  %v2576 = vadd.f32 %v2570, 1e-05
  %v2577 = vadd.f32 %v2571, 1e-05
  %v2578 = vrsqrt.pop %v2572
  %v2579 = vrsqrt.pop %v2573
  %v2580 = vrsqrt.pop %v2574
  %v2581 = vrsqrt.pop %v2575
  %v2582 = vrsqrt.pop %v2576
  %v2583 = vrsqrt.pop %v2577
  %v2584 = vmul.f32 %v2536, %v2578
  %v2585 = vmul.f32 %v2537, %v2579
  %v2586 = vmul.f32 %v2538, %v2580
  %v2587 = vmul.f32 %v2539, %v2581
  %v2588 = vmul.f32 %v2540, %v2582
  %v2589 = vmul.f32 %v2541, %v2583
  %v2590 = vlaneseq
  %v2591 = vshrl.u32 %v2590, 7
  %v2592 = vsub.s32 0, %v2591
  %v2593 = vrot.slane %v2511, %v2592
  %v2594 = vmul.f32 %v2584, %v2593
  %v2595 = vmul.f32 %v2585, %v2593
  %v2596 = vmul.f32 %v2586, %v2593
  %v2597 = vmul.f32 %v2587, %v2593
  %v2598 = vmul.f32 %v2588, %v2593
  %v2599 = vmul.f32 %v2589, %v2593
  %v2600 = vlaneseq
  %v2601 = vshrl.u32 %v2600, 7
  %v2602 = vsub.s32 1, %v2601
  %v2603 = vrot.slane %v2511, %v2602
  %v2604 = vadd.f32 %v2594, %v2603
  %v2605 = vadd.f32 %v2595, %v2603
  %v2606 = vadd.f32 %v2596, %v2603
  %v2607 = vadd.f32 %v2597, %v2603
  %v2608 = vadd.f32 %v2598, %v2603
  %v2609 = vadd.f32 %v2599, %v2603
  %v2610 = vpack.c.bf16 %v2605, %v2604
  %v2611 = vpack.c.bf16 %v2607, %v2606
  %v2612 = vpack.c.bf16 %v2609, %v2608
  %s2613 = scalar_lea.vmem %s6, 16
  %v2614 = vld [vmem:[%s2613] sm:$0xf]
  %v2615 = vld [vmem:[%s2613 + $0x4] sm:$0xf]
  %v2616 = vld [vmem:[%s2613 + $0x8] sm:$0xf]
  %v2617 = vld [vmem:[%s2613 + $0xc] sm:$0xf]
  %v2622 = vunpack.c.l.b16 %v2614
  %v2623 = vunpack.c.l.b16 %v2615
  %v2624 = vunpack.c.l.b16 %v2616
  %v2625 = vunpack.c.l.b16 %v2617
  %v2626 = vpack.c.b16 %v2623, %v2622
  %v2627 = vpack.c.b16 %v2625, %v2624
  %v2631 = vsel %vm254, %v2610, 0
  %v2634 = vsel %vm254, %v2611, 0
  %v2637 = vsel %vm254, %v2612, 0
  %2639 = vmatprep.subr.bf16.mxu0 0
  %2640 = vmatpush1.bf16.msra.mxu0 0
  %2641 = vmatprep.subr.bf16.mxu0 0
  %2642 = vmatpush1.bf16.msra.mxu0 0
  %2643 = vmatprep.subr.bf16.mxu0 0
  %2644 = vmatpush1.bf16.msra.mxu0 0
  %2645 = vmatprep.subr.bf16.mxu0 0
  %2646 = vmatpush1.bf16.msra.mxu0 0
  %2647 = vmatprep.subr.bf16.mxu0 0
  %2648 = vmatpush1.bf16.msra.mxu0 0
  %2649 = vmatprep.subr.bf16.mxu0 0
  %2650 = vmatpush1.bf16.msra.mxu0 0
  %2651 = vmatprep.subr.bf16.mxu0 0
  %2652 = vmatpush1.bf16.msra.mxu0 %v2627
  %2653 = vmatprep.subr.bf16.mxu0 0
  %2654 = vmatpush1.bf16.msra.mxu0 %v2626
  %2655 = vmatprep.subr.bf16.mxu0 0
  %2656 = vmatpush2.bf16.msra.mxu0 0
  %2657 = vmatprep.subr.bf16.mxu0 0
  %2658 = vmatpush2.bf16.msra.mxu0 0
  %2659 = vmatprep.subr.bf16.mxu0 0
  %2660 = vmatpush2.bf16.msra.mxu0 0
  %2661 = vmatprep.subr.bf16.mxu0 0
  %2662 = vmatpush2.bf16.msra.mxu0 0
  %2663 = vmatprep.subr.bf16.mxu0 0
  %2664 = vmatpush2.bf16.msra.mxu0 0
  %2665 = vmatprep.subr.bf16.mxu0 0
  %2666 = vmatpush2.bf16.msra.mxu0 0
  %2667 = vmatprep.subr.bf16.mxu0 0
  %2668 = vmatpush2.bf16.msra.mxu0 0
  %2669 = vmatprep.subr.bf16.mxu0 0
  %2670 = vmatpush2.bf16.msra.mxu0 0
  %2671 = vmatprep.mubr.bf16.mxu0 0
  %2672 = vmatmul.mubr.bf16.gmra.mxu0 %v2631
  %v2673 = vpop.f32.mrf.mxu0
  %v2674 = vadd.f32 0.0, %v2673
  %v2675 = vpop.f32.mrf.mxu0
  %v2676 = vpop.f32.mrf.mxu0
  %v2677 = vadd.f32 0.0, %v2676
  %v2678 = vpop.f32.mrf.mxu0
  %2679 = vmatprep.mubr.bf16.mxu0 0
  %2680 = vmatmul.mubr.bf16.gmra.mxu0 %v2634
  %v2681 = vpop.f32.mrf.mxu0
  %v2682 = vadd.f32 0.0, %v2681
  %v2683 = vpop.f32.mrf.mxu0
  %v2684 = vpop.f32.mrf.mxu0
  %v2685 = vadd.f32 0.0, %v2684
  %v2686 = vpop.f32.mrf.mxu0
  %2687 = vmatprep.mubr.bf16.mxu0 0
  %2688 = vmatmul.mubr.bf16.gmra.mxu0 %v2637
  %v2689 = vpop.f32.mrf.mxu0
  %v2690 = vadd.f32 0.0, %v2689
  %v2691 = vpop.f32.mrf.mxu0
  %v2692 = vpop.f32.mrf.mxu0
  %v2693 = vadd.f32 0.0, %v2692
  %v2694 = vpop.f32.mrf.mxu0
  %2695 = vdwg.mxu0
  %v2696 = vpack.c.bf16 %v2674, %v2674
  %v2697 = vpack.c.bf16 %v2677, %v2677
  %v2698 = vpack.c.bf16 %v2682, %v2682
  %v2699 = vpack.c.bf16 %v2685, %v2685
  %v2700 = vpack.c.bf16 %v2690, %v2690
  %v2701 = vpack.c.bf16 %v2693, %v2693
  %2703 = vrot.lane.b32.xlu0 %v2696, 96
  %v2704 = vpop.permute.xlu0 %2703
  %v2706 = vsel %vm608, %v2696, 0
  %v2709 = vsel %vm608, %v2704, 0
  %2711 = vmatprep.subr.bf16.mxu0 0
  %2712 = vmatpush1.bf16.xpose.msra.mxu0 0
  %2713 = vmatprep.subr.bf16.mxu0 0
  %2714 = vmatpush1.bf16.xpose.msra.mxu0 0
  %2715 = vmatprep.subr.bf16.mxu0 0
  %2716 = vmatpush1.bf16.xpose.msra.mxu0 0
  %2717 = vmatprep.subr.bf16.mxu0 0
  %2718 = vmatpush1.bf16.xpose.msra.mxu0 0
  %2719 = vmatprep.subr.bf16.mxu0 0
  %2720 = vmatpush1.bf16.xpose.msra.mxu0 0
  %2721 = vmatprep.subr.bf16.mxu0 0
  %2722 = vmatpush1.bf16.xpose.msra.mxu0 0
  %2723 = vmatprep.subr.bf16.mxu0 0
  %2724 = vmatpush1.bf16.xpose.msra.mxu0 0
  %2725 = vmatprep.subr.bf16.mxu0 0
  %2726 = vmatpush1.bf16.xpose.msra.mxu0 %v2709
  %2727 = vmatprep.subr.bf16.mxu0 0
  %2728 = vmatpush2.bf16.xpose.msra.mxu0 0
  %2729 = vmatprep.subr.bf16.mxu0 0
  %2730 = vmatpush2.bf16.xpose.msra.mxu0 0
  %2731 = vmatprep.subr.bf16.mxu0 0
  %2732 = vmatpush2.bf16.xpose.msra.mxu0 0
  %2733 = vmatprep.subr.bf16.mxu0 0
  %2734 = vmatpush2.bf16.xpose.msra.mxu0 0
  %2735 = vmatprep.subr.bf16.mxu0 0
  %2736 = vmatpush2.bf16.xpose.msra.mxu0 0
  %2737 = vmatprep.subr.bf16.mxu0 0
  %2738 = vmatpush2.bf16.xpose.msra.mxu0 0
  %2739 = vmatprep.subr.bf16.mxu0 0
  %2740 = vmatpush2.bf16.xpose.msra.mxu0 0
  %2741 = vmatprep.subr.bf16.mxu0 0
  %2742 = vmatpush2.bf16.xpose.msra.mxu0 0
  %2743 = vmatprep.mubr.bf16.mxu0 0
  %2744 = vmatmul.mubr.bf16.gmra.mxu0 %v2706
  %v2745 = vpop.f32.mrf.mxu0
  %v2746 = vadd.f32 %v603, %v2745
  %v2747 = vpop.f32.mrf.mxu0
  %v2748 = vpop.f32.mrf.mxu0
  %v2749 = vpop.f32.mrf.mxu0
  %2750 = vdwg.mxu0
  %2752 = vrot.lane.b32.xlu0 %v2697, 96
  %v2753 = vpop.permute.xlu0 %2752
  %v2755 = vsel %vm608, %v2697, 0
  %v2758 = vsel %vm608, %v2753, 0
  %2760 = vmatprep.subr.bf16.mxu0 0
  %2761 = vmatpush1.bf16.xpose.msra.mxu0 0
  %2762 = vmatprep.subr.bf16.mxu0 0
  %2763 = vmatpush1.bf16.xpose.msra.mxu0 0
  %2764 = vmatprep.subr.bf16.mxu0 0
  %2765 = vmatpush1.bf16.xpose.msra.mxu0 0
  %2766 = vmatprep.subr.bf16.mxu0 0
  %2767 = vmatpush1.bf16.xpose.msra.mxu0 0
  %2768 = vmatprep.subr.bf16.mxu0 0
  %2769 = vmatpush1.bf16.xpose.msra.mxu0 0
  %2770 = vmatprep.subr.bf16.mxu0 0
  %2771 = vmatpush1.bf16.xpose.msra.mxu0 0
  %2772 = vmatprep.subr.bf16.mxu0 0
  %2773 = vmatpush1.bf16.xpose.msra.mxu0 0
  %2774 = vmatprep.subr.bf16.mxu0 0
  %2775 = vmatpush1.bf16.xpose.msra.mxu0 %v2758
  %2776 = vmatprep.subr.bf16.mxu0 0
  %2777 = vmatpush2.bf16.xpose.msra.mxu0 0
  %2778 = vmatprep.subr.bf16.mxu0 0
  %2779 = vmatpush2.bf16.xpose.msra.mxu0 0
  %2780 = vmatprep.subr.bf16.mxu0 0
  %2781 = vmatpush2.bf16.xpose.msra.mxu0 0
  %2782 = vmatprep.subr.bf16.mxu0 0
  %2783 = vmatpush2.bf16.xpose.msra.mxu0 0
  %2784 = vmatprep.subr.bf16.mxu0 0
  %2785 = vmatpush2.bf16.xpose.msra.mxu0 0
  %2786 = vmatprep.subr.bf16.mxu0 0
  %2787 = vmatpush2.bf16.xpose.msra.mxu0 0
  %2788 = vmatprep.subr.bf16.mxu0 0
  %2789 = vmatpush2.bf16.xpose.msra.mxu0 0
  %2790 = vmatprep.subr.bf16.mxu0 0
  %2791 = vmatpush2.bf16.xpose.msra.mxu0 0
  %2792 = vmatprep.mubr.bf16.mxu0 0
  %2793 = vmatmul.mubr.bf16.gmra.mxu0 %v2755
  %v2794 = vpop.f32.mrf.mxu0
  %v2795 = vadd.f32 %v603, %v2794
  %v2796 = vpop.f32.mrf.mxu0
  %v2797 = vpop.f32.mrf.mxu0
  %v2798 = vpop.f32.mrf.mxu0
  %2799 = vdwg.mxu0
  %2801 = vrot.lane.b32.xlu0 %v2698, 96
  %v2802 = vpop.permute.xlu0 %2801
  %v2804 = vsel %vm608, %v2698, 0
  %v2807 = vsel %vm608, %v2802, 0
  %2809 = vmatprep.subr.bf16.mxu0 0
  %2810 = vmatpush1.bf16.xpose.msra.mxu0 0
  %2811 = vmatprep.subr.bf16.mxu0 0
  %2812 = vmatpush1.bf16.xpose.msra.mxu0 0
  %2813 = vmatprep.subr.bf16.mxu0 0
  %2814 = vmatpush1.bf16.xpose.msra.mxu0 0
  %2815 = vmatprep.subr.bf16.mxu0 0
  %2816 = vmatpush1.bf16.xpose.msra.mxu0 0
  %2817 = vmatprep.subr.bf16.mxu0 0
  %2818 = vmatpush1.bf16.xpose.msra.mxu0 0
  %2819 = vmatprep.subr.bf16.mxu0 0
  %2820 = vmatpush1.bf16.xpose.msra.mxu0 0
  %2821 = vmatprep.subr.bf16.mxu0 0
  %2822 = vmatpush1.bf16.xpose.msra.mxu0 0
  %2823 = vmatprep.subr.bf16.mxu0 0
  %2824 = vmatpush1.bf16.xpose.msra.mxu0 %v2807
  %2825 = vmatprep.subr.bf16.mxu0 0
  %2826 = vmatpush2.bf16.xpose.msra.mxu0 0
  %2827 = vmatprep.subr.bf16.mxu0 0
  %2828 = vmatpush2.bf16.xpose.msra.mxu0 0
  %2829 = vmatprep.subr.bf16.mxu0 0
  %2830 = vmatpush2.bf16.xpose.msra.mxu0 0
  %2831 = vmatprep.subr.bf16.mxu0 0
  %2832 = vmatpush2.bf16.xpose.msra.mxu0 0
  %2833 = vmatprep.subr.bf16.mxu0 0
  %2834 = vmatpush2.bf16.xpose.msra.mxu0 0
  %2835 = vmatprep.subr.bf16.mxu0 0
  %2836 = vmatpush2.bf16.xpose.msra.mxu0 0
  %2837 = vmatprep.subr.bf16.mxu0 0
  %2838 = vmatpush2.bf16.xpose.msra.mxu0 0
  %2839 = vmatprep.subr.bf16.mxu0 0
  %2840 = vmatpush2.bf16.xpose.msra.mxu0 0
  %2841 = vmatprep.mubr.bf16.mxu0 0
  %2842 = vmatmul.mubr.bf16.gmra.mxu0 %v2804
  %v2843 = vpop.f32.mrf.mxu0
  %v2844 = vadd.f32 %v603, %v2843
  %v2845 = vpop.f32.mrf.mxu0
  %v2846 = vpop.f32.mrf.mxu0
  %v2847 = vpop.f32.mrf.mxu0
  %2848 = vdwg.mxu0
  %2850 = vrot.lane.b32.xlu0 %v2699, 96
  %v2851 = vpop.permute.xlu0 %2850
  %v2853 = vsel %vm608, %v2699, 0
  %v2856 = vsel %vm608, %v2851, 0
  %2858 = vmatprep.subr.bf16.mxu0 0
  %2859 = vmatpush1.bf16.xpose.msra.mxu0 0
  %2860 = vmatprep.subr.bf16.mxu0 0
  %2861 = vmatpush1.bf16.xpose.msra.mxu0 0
  %2862 = vmatprep.subr.bf16.mxu0 0
  %2863 = vmatpush1.bf16.xpose.msra.mxu0 0
  %2864 = vmatprep.subr.bf16.mxu0 0
  %2865 = vmatpush1.bf16.xpose.msra.mxu0 0
  %2866 = vmatprep.subr.bf16.mxu0 0
  %2867 = vmatpush1.bf16.xpose.msra.mxu0 0
  %2868 = vmatprep.subr.bf16.mxu0 0
  %2869 = vmatpush1.bf16.xpose.msra.mxu0 0
  %2870 = vmatprep.subr.bf16.mxu0 0
  %2871 = vmatpush1.bf16.xpose.msra.mxu0 0
  %2872 = vmatprep.subr.bf16.mxu0 0
  %2873 = vmatpush1.bf16.xpose.msra.mxu0 %v2856
  %2874 = vmatprep.subr.bf16.mxu0 0
  %2875 = vmatpush2.bf16.xpose.msra.mxu0 0
  %2876 = vmatprep.subr.bf16.mxu0 0
  %2877 = vmatpush2.bf16.xpose.msra.mxu0 0
  %2878 = vmatprep.subr.bf16.mxu0 0
  %2879 = vmatpush2.bf16.xpose.msra.mxu0 0
  %2880 = vmatprep.subr.bf16.mxu0 0
  %2881 = vmatpush2.bf16.xpose.msra.mxu0 0
  %2882 = vmatprep.subr.bf16.mxu0 0
  %2883 = vmatpush2.bf16.xpose.msra.mxu0 0
  %2884 = vmatprep.subr.bf16.mxu0 0
  %2885 = vmatpush2.bf16.xpose.msra.mxu0 0
  %2886 = vmatprep.subr.bf16.mxu0 0
  %2887 = vmatpush2.bf16.xpose.msra.mxu0 0
  %2888 = vmatprep.subr.bf16.mxu0 0
  %2889 = vmatpush2.bf16.xpose.msra.mxu0 0
  %2890 = vmatprep.mubr.bf16.mxu0 0
  %2891 = vmatmul.mubr.bf16.gmra.mxu0 %v2853
  %v2892 = vpop.f32.mrf.mxu0
  %v2893 = vadd.f32 %v603, %v2892
  %v2894 = vpop.f32.mrf.mxu0
  %v2895 = vpop.f32.mrf.mxu0
  %v2896 = vpop.f32.mrf.mxu0
  %2897 = vdwg.mxu0
  %2899 = vrot.lane.b32.xlu0 %v2700, 96
  %v2900 = vpop.permute.xlu0 %2899
  %v2902 = vsel %vm608, %v2700, 0
  %v2905 = vsel %vm608, %v2900, 0
  %2907 = vmatprep.subr.bf16.mxu0 0
  %2908 = vmatpush1.bf16.xpose.msra.mxu0 0
  %2909 = vmatprep.subr.bf16.mxu0 0
  %2910 = vmatpush1.bf16.xpose.msra.mxu0 0
  %2911 = vmatprep.subr.bf16.mxu0 0
  %2912 = vmatpush1.bf16.xpose.msra.mxu0 0
  %2913 = vmatprep.subr.bf16.mxu0 0
  %2914 = vmatpush1.bf16.xpose.msra.mxu0 0
  %2915 = vmatprep.subr.bf16.mxu0 0
  %2916 = vmatpush1.bf16.xpose.msra.mxu0 0
  %2917 = vmatprep.subr.bf16.mxu0 0
  %2918 = vmatpush1.bf16.xpose.msra.mxu0 0
  %2919 = vmatprep.subr.bf16.mxu0 0
  %2920 = vmatpush1.bf16.xpose.msra.mxu0 0
  %2921 = vmatprep.subr.bf16.mxu0 0
  %2922 = vmatpush1.bf16.xpose.msra.mxu0 %v2905
  %2923 = vmatprep.subr.bf16.mxu0 0
  %2924 = vmatpush2.bf16.xpose.msra.mxu0 0
  %2925 = vmatprep.subr.bf16.mxu0 0
  %2926 = vmatpush2.bf16.xpose.msra.mxu0 0
  %2927 = vmatprep.subr.bf16.mxu0 0
  %2928 = vmatpush2.bf16.xpose.msra.mxu0 0
  %2929 = vmatprep.subr.bf16.mxu0 0
  %2930 = vmatpush2.bf16.xpose.msra.mxu0 0
  %2931 = vmatprep.subr.bf16.mxu0 0
  %2932 = vmatpush2.bf16.xpose.msra.mxu0 0
  %2933 = vmatprep.subr.bf16.mxu0 0
  %2934 = vmatpush2.bf16.xpose.msra.mxu0 0
  %2935 = vmatprep.subr.bf16.mxu0 0
  %2936 = vmatpush2.bf16.xpose.msra.mxu0 0
  %2937 = vmatprep.subr.bf16.mxu0 0
  %2938 = vmatpush2.bf16.xpose.msra.mxu0 0
  %2939 = vmatprep.mubr.bf16.mxu0 0
  %2940 = vmatmul.mubr.bf16.gmra.mxu0 %v2902
  %v2941 = vpop.f32.mrf.mxu0
  %v2942 = vadd.f32 %v603, %v2941
  %v2943 = vpop.f32.mrf.mxu0
  %v2944 = vpop.f32.mrf.mxu0
  %v2945 = vpop.f32.mrf.mxu0
  %2946 = vdwg.mxu0
  %2948 = vrot.lane.b32.xlu0 %v2701, 96
  %v2949 = vpop.permute.xlu0 %2948
  %v2951 = vsel %vm608, %v2701, 0
  %v2954 = vsel %vm608, %v2949, 0
  %2956 = vmatprep.subr.bf16.mxu0 0
  %2957 = vmatpush1.bf16.xpose.msra.mxu0 0
  %2958 = vmatprep.subr.bf16.mxu0 0
  %2959 = vmatpush1.bf16.xpose.msra.mxu0 0
  %2960 = vmatprep.subr.bf16.mxu0 0
  %2961 = vmatpush1.bf16.xpose.msra.mxu0 0
  %2962 = vmatprep.subr.bf16.mxu0 0
  %2963 = vmatpush1.bf16.xpose.msra.mxu0 0
  %2964 = vmatprep.subr.bf16.mxu0 0
  %2965 = vmatpush1.bf16.xpose.msra.mxu0 0
  %2966 = vmatprep.subr.bf16.mxu0 0
  %2967 = vmatpush1.bf16.xpose.msra.mxu0 0
  %2968 = vmatprep.subr.bf16.mxu0 0
  %2969 = vmatpush1.bf16.xpose.msra.mxu0 0
  %2970 = vmatprep.subr.bf16.mxu0 0
  %2971 = vmatpush1.bf16.xpose.msra.mxu0 %v2954
  %2972 = vmatprep.subr.bf16.mxu0 0
  %2973 = vmatpush2.bf16.xpose.msra.mxu0 0
  %2974 = vmatprep.subr.bf16.mxu0 0
  %2975 = vmatpush2.bf16.xpose.msra.mxu0 0
  %2976 = vmatprep.subr.bf16.mxu0 0
  %2977 = vmatpush2.bf16.xpose.msra.mxu0 0
  %2978 = vmatprep.subr.bf16.mxu0 0
  %2979 = vmatpush2.bf16.xpose.msra.mxu0 0
  %2980 = vmatprep.subr.bf16.mxu0 0
  %2981 = vmatpush2.bf16.xpose.msra.mxu0 0
  %2982 = vmatprep.subr.bf16.mxu0 0
  %2983 = vmatpush2.bf16.xpose.msra.mxu0 0
  %2984 = vmatprep.subr.bf16.mxu0 0
  %2985 = vmatpush2.bf16.xpose.msra.mxu0 0
  %2986 = vmatprep.subr.bf16.mxu0 0
  %2987 = vmatpush2.bf16.xpose.msra.mxu0 0
  %2988 = vmatprep.mubr.bf16.mxu0 0
  %2989 = vmatmul.mubr.bf16.gmra.mxu0 %v2951
  %v2990 = vpop.f32.mrf.mxu0
  %v2991 = vadd.f32 %v603, %v2990
  %v2992 = vpop.f32.mrf.mxu0
  %v2993 = vpop.f32.mrf.mxu0
  %v2994 = vpop.f32.mrf.mxu0
  %2995 = vdwg.mxu0
  %v2996 = vsel %vm900, %v2746, -inf
  %2997 = vmax.xlane.f32.xlu0 %v2996
  %v2998 = vpop.xlane.xlu0 %2997
  %v2999 = vsel %vm900, %v2795, -inf
  %3000 = vmax.xlane.f32.xlu0 %v2999
  %v3001 = vpop.xlane.xlu0 %3000
  %v3002 = vsel %vm900, %v2844, -inf
  %3003 = vmax.xlane.f32.xlu0 %v3002
  %v3004 = vpop.xlane.xlu0 %3003
  %v3005 = vsel %vm900, %v2893, -inf
  %3006 = vmax.xlane.f32.xlu0 %v3005
  %v3007 = vpop.xlane.xlu0 %3006
  %v3008 = vsel %vm900, %v2942, -inf
  %3009 = vmax.xlane.f32.xlu0 %v3008
  %v3010 = vpop.xlane.xlu0 %3009
  %v3011 = vsel %vm900, %v2991, -inf
  %3012 = vmax.xlane.f32.xlu0 %v3011
  %v3013 = vpop.xlane.xlu0 %3012
  %v3014 = vsub.f32 %v2746, %v2998
  %v3015 = vsub.f32 %v2795, %v3001
  %v3016 = vsub.f32 %v2844, %v3004
  %v3017 = vsub.f32 %v2893, %v3007
  %v3018 = vsub.f32 %v2942, %v3010
  %v3019 = vsub.f32 %v2991, %v3013
  %v3020 = vmul.f32 %v3014, 1.442695
  %v3021 = vpow.pop %v3020
  %v3022 = vmul.f32 %v3015, 1.442695
  %v3023 = vpow.pop %v3022
  %v3024 = vmul.f32 %v3016, 1.442695
  %v3025 = vpow.pop %v3024
  %v3026 = vmul.f32 %v3017, 1.442695
  %v3027 = vpow.pop %v3026
  %v3028 = vmul.f32 %v3018, 1.442695
  %v3029 = vpow.pop %v3028
  %v3030 = vmul.f32 %v3019, 1.442695
  %v3031 = vpow.pop %v3030
  %v3032 = vsel %vm900, %v3021, 0.0
  %3033 = vadd.xlane.f32.xlu0 %v3032
  %v3034 = vpop.xlane.xlu0 %3033
  %v3035 = vsel %vm900, %v3023, 0.0
  %3036 = vadd.xlane.f32.xlu0 %v3035
  %v3037 = vpop.xlane.xlu0 %3036
  %v3038 = vsel %vm900, %v3025, 0.0
  %3039 = vadd.xlane.f32.xlu0 %v3038
  %v3040 = vpop.xlane.xlu0 %3039
  %v3041 = vsel %vm900, %v3027, 0.0
  %3042 = vadd.xlane.f32.xlu0 %v3041
  %v3043 = vpop.xlane.xlu0 %3042
  %v3044 = vsel %vm900, %v3029, 0.0
  %3045 = vadd.xlane.f32.xlu0 %v3044
  %v3046 = vpop.xlane.xlu0 %3045
  %v3047 = vsel %vm900, %v3031, 0.0
  %3048 = vadd.xlane.f32.xlu0 %v3047
  %v3049 = vpop.xlane.xlu0 %3048
  %v3050 = vrcp.pop %v3034
  %v3051 = vrcp.pop %v3037
  %v3052 = vrcp.pop %v3040
  %v3053 = vrcp.pop %v3043
  %v3054 = vrcp.pop %v3046
  %v3055 = vrcp.pop %v3049
  %v3056 = vmul.f32 %v3021, %v3050
  %v3057 = vmul.f32 %v3023, %v3051
  %v3058 = vmul.f32 %v3025, %v3052
  %v3059 = vmul.f32 %v3027, %v3053
  %v3060 = vmul.f32 %v3029, %v3054
  %v3061 = vmul.f32 %v3031, %v3055
  %v3062 = vpack.c.bf16 %v3056, %v3056
  %v3063 = vpack.c.bf16 %v3057, %v3057
  %v3064 = vpack.c.bf16 %v3058, %v3058
  %v3065 = vpack.c.bf16 %v3059, %v3059
  %v3066 = vpack.c.bf16 %v3060, %v3060
  %v3067 = vpack.c.bf16 %v3061, %v3061
  %3068 = vrot.lane.b32.xlu0 %v2696, 64
  %v3069 = vpop.permute.xlu0 %3068
  %v3071 = vsel %vm900, %v3062, 0
  %v3074 = vsel %vm978, %v3069, 0
  %3076 = vmatprep.subr.bf16.mxu0 0
  %3077 = vmatpush1.bf16.msra.mxu0 0
  %3078 = vmatprep.subr.bf16.mxu0 0
  %3079 = vmatpush1.bf16.msra.mxu0 0
  %3080 = vmatprep.subr.bf16.mxu0 0
  %3081 = vmatpush1.bf16.msra.mxu0 0
  %3082 = vmatprep.subr.bf16.mxu0 0
  %3083 = vmatpush1.bf16.msra.mxu0 0
  %3084 = vmatprep.subr.bf16.mxu0 0
  %3085 = vmatpush1.bf16.msra.mxu0 0
  %3086 = vmatprep.subr.bf16.mxu0 0
  %3087 = vmatpush1.bf16.msra.mxu0 0
  %3088 = vmatprep.subr.bf16.mxu0 0
  %3089 = vmatpush1.bf16.msra.mxu0 0
  %3090 = vmatprep.subr.bf16.mxu0 0
  %3091 = vmatpush1.bf16.msra.mxu0 %v3074
  %3092 = vmatprep.subr.bf16.mxu0 0
  %3093 = vmatpush2.bf16.msra.mxu0 0
  %3094 = vmatprep.subr.bf16.mxu0 0
  %3095 = vmatpush2.bf16.msra.mxu0 0
  %3096 = vmatprep.subr.bf16.mxu0 0
  %3097 = vmatpush2.bf16.msra.mxu0 0
  %3098 = vmatprep.subr.bf16.mxu0 0
  %3099 = vmatpush2.bf16.msra.mxu0 0
  %3100 = vmatprep.subr.bf16.mxu0 0
  %3101 = vmatpush2.bf16.msra.mxu0 0
  %3102 = vmatprep.subr.bf16.mxu0 0
  %3103 = vmatpush2.bf16.msra.mxu0 0
  %3104 = vmatprep.subr.bf16.mxu0 0
  %3105 = vmatpush2.bf16.msra.mxu0 0
  %3106 = vmatprep.subr.bf16.mxu0 0
  %3107 = vmatpush2.bf16.msra.mxu0 0
  %3108 = vmatprep.mubr.bf16.mxu0 0
  %3109 = vmatmul.mubr.bf16.gmra.mxu0 %v3071
  %v3110 = vpop.f32.mrf.mxu0
  %v3111 = vadd.f32 0.0, %v3110
  %v3112 = vpop.f32.mrf.mxu0
  %v3113 = vpop.f32.mrf.mxu0
  %v3114 = vpop.f32.mrf.mxu0
  %3115 = vdwg.mxu0
  %3116 = vrot.lane.b32.xlu0 %v2697, 64
  %v3117 = vpop.permute.xlu0 %3116
  %v3119 = vsel %vm900, %v3063, 0
  %v3122 = vsel %vm978, %v3117, 0
  %3124 = vmatprep.subr.bf16.mxu0 0
  %3125 = vmatpush1.bf16.msra.mxu0 0
  %3126 = vmatprep.subr.bf16.mxu0 0
  %3127 = vmatpush1.bf16.msra.mxu0 0
  %3128 = vmatprep.subr.bf16.mxu0 0
  %3129 = vmatpush1.bf16.msra.mxu0 0
  %3130 = vmatprep.subr.bf16.mxu0 0
  %3131 = vmatpush1.bf16.msra.mxu0 0
  %3132 = vmatprep.subr.bf16.mxu0 0
  %3133 = vmatpush1.bf16.msra.mxu0 0
  %3134 = vmatprep.subr.bf16.mxu0 0
  %3135 = vmatpush1.bf16.msra.mxu0 0
  %3136 = vmatprep.subr.bf16.mxu0 0
  %3137 = vmatpush1.bf16.msra.mxu0 0
  %3138 = vmatprep.subr.bf16.mxu0 0
  %3139 = vmatpush1.bf16.msra.mxu0 %v3122
  %3140 = vmatprep.subr.bf16.mxu0 0
  %3141 = vmatpush2.bf16.msra.mxu0 0
  %3142 = vmatprep.subr.bf16.mxu0 0
  %3143 = vmatpush2.bf16.msra.mxu0 0
  %3144 = vmatprep.subr.bf16.mxu0 0
  %3145 = vmatpush2.bf16.msra.mxu0 0
  %3146 = vmatprep.subr.bf16.mxu0 0
  %3147 = vmatpush2.bf16.msra.mxu0 0
  %3148 = vmatprep.subr.bf16.mxu0 0
  %3149 = vmatpush2.bf16.msra.mxu0 0
  %3150 = vmatprep.subr.bf16.mxu0 0
  %3151 = vmatpush2.bf16.msra.mxu0 0
  %3152 = vmatprep.subr.bf16.mxu0 0
  %3153 = vmatpush2.bf16.msra.mxu0 0
  %3154 = vmatprep.subr.bf16.mxu0 0
  %3155 = vmatpush2.bf16.msra.mxu0 0
  %3156 = vmatprep.mubr.bf16.mxu0 0
  %3157 = vmatmul.mubr.bf16.gmra.mxu0 %v3119
  %v3158 = vpop.f32.mrf.mxu0
  %v3159 = vadd.f32 0.0, %v3158
  %v3160 = vpop.f32.mrf.mxu0
  %v3161 = vpop.f32.mrf.mxu0
  %v3162 = vpop.f32.mrf.mxu0
  %3163 = vdwg.mxu0
  %3164 = vrot.lane.b32.xlu0 %v2698, 64
  %v3165 = vpop.permute.xlu0 %3164
  %v3167 = vsel %vm900, %v3064, 0
  %v3170 = vsel %vm978, %v3165, 0
  %3172 = vmatprep.subr.bf16.mxu0 0
  %3173 = vmatpush1.bf16.msra.mxu0 0
  %3174 = vmatprep.subr.bf16.mxu0 0
  %3175 = vmatpush1.bf16.msra.mxu0 0
  %3176 = vmatprep.subr.bf16.mxu0 0
  %3177 = vmatpush1.bf16.msra.mxu0 0
  %3178 = vmatprep.subr.bf16.mxu0 0
  %3179 = vmatpush1.bf16.msra.mxu0 0
  %3180 = vmatprep.subr.bf16.mxu0 0
  %3181 = vmatpush1.bf16.msra.mxu0 0
  %3182 = vmatprep.subr.bf16.mxu0 0
  %3183 = vmatpush1.bf16.msra.mxu0 0
  %3184 = vmatprep.subr.bf16.mxu0 0
  %3185 = vmatpush1.bf16.msra.mxu0 0
  %3186 = vmatprep.subr.bf16.mxu0 0
  %3187 = vmatpush1.bf16.msra.mxu0 %v3170
  %3188 = vmatprep.subr.bf16.mxu0 0
  %3189 = vmatpush2.bf16.msra.mxu0 0
  %3190 = vmatprep.subr.bf16.mxu0 0
  %3191 = vmatpush2.bf16.msra.mxu0 0
  %3192 = vmatprep.subr.bf16.mxu0 0
  %3193 = vmatpush2.bf16.msra.mxu0 0
  %3194 = vmatprep.subr.bf16.mxu0 0
  %3195 = vmatpush2.bf16.msra.mxu0 0
  %3196 = vmatprep.subr.bf16.mxu0 0
  %3197 = vmatpush2.bf16.msra.mxu0 0
  %3198 = vmatprep.subr.bf16.mxu0 0
  %3199 = vmatpush2.bf16.msra.mxu0 0
  %3200 = vmatprep.subr.bf16.mxu0 0
  %3201 = vmatpush2.bf16.msra.mxu0 0
  %3202 = vmatprep.subr.bf16.mxu0 0
  %3203 = vmatpush2.bf16.msra.mxu0 0
  %3204 = vmatprep.mubr.bf16.mxu0 0
  %3205 = vmatmul.mubr.bf16.gmra.mxu0 %v3167
  %v3206 = vpop.f32.mrf.mxu0
  %v3207 = vadd.f32 0.0, %v3206
  %v3208 = vpop.f32.mrf.mxu0
  %v3209 = vpop.f32.mrf.mxu0
  %v3210 = vpop.f32.mrf.mxu0
  %3211 = vdwg.mxu0
  %3212 = vrot.lane.b32.xlu0 %v2699, 64
  %v3213 = vpop.permute.xlu0 %3212
  %v3215 = vsel %vm900, %v3065, 0
  %v3218 = vsel %vm978, %v3213, 0
  %3220 = vmatprep.subr.bf16.mxu0 0
  %3221 = vmatpush1.bf16.msra.mxu0 0
  %3222 = vmatprep.subr.bf16.mxu0 0
  %3223 = vmatpush1.bf16.msra.mxu0 0
  %3224 = vmatprep.subr.bf16.mxu0 0
  %3225 = vmatpush1.bf16.msra.mxu0 0
  %3226 = vmatprep.subr.bf16.mxu0 0
  %3227 = vmatpush1.bf16.msra.mxu0 0
  %3228 = vmatprep.subr.bf16.mxu0 0
  %3229 = vmatpush1.bf16.msra.mxu0 0
  %3230 = vmatprep.subr.bf16.mxu0 0
  %3231 = vmatpush1.bf16.msra.mxu0 0
  %3232 = vmatprep.subr.bf16.mxu0 0
  %3233 = vmatpush1.bf16.msra.mxu0 0
  %3234 = vmatprep.subr.bf16.mxu0 0
  %3235 = vmatpush1.bf16.msra.mxu0 %v3218
  %3236 = vmatprep.subr.bf16.mxu0 0
  %3237 = vmatpush2.bf16.msra.mxu0 0
  %3238 = vmatprep.subr.bf16.mxu0 0
  %3239 = vmatpush2.bf16.msra.mxu0 0
  %3240 = vmatprep.subr.bf16.mxu0 0
  %3241 = vmatpush2.bf16.msra.mxu0 0
  %3242 = vmatprep.subr.bf16.mxu0 0
  %3243 = vmatpush2.bf16.msra.mxu0 0
  %3244 = vmatprep.subr.bf16.mxu0 0
  %3245 = vmatpush2.bf16.msra.mxu0 0
  %3246 = vmatprep.subr.bf16.mxu0 0
  %3247 = vmatpush2.bf16.msra.mxu0 0
  %3248 = vmatprep.subr.bf16.mxu0 0
  %3249 = vmatpush2.bf16.msra.mxu0 0
  %3250 = vmatprep.subr.bf16.mxu0 0
  %3251 = vmatpush2.bf16.msra.mxu0 0
  %3252 = vmatprep.mubr.bf16.mxu0 0
  %3253 = vmatmul.mubr.bf16.gmra.mxu0 %v3215
  %v3254 = vpop.f32.mrf.mxu0
  %v3255 = vadd.f32 0.0, %v3254
  %v3256 = vpop.f32.mrf.mxu0
  %v3257 = vpop.f32.mrf.mxu0
  %v3258 = vpop.f32.mrf.mxu0
  %3259 = vdwg.mxu0
  %3260 = vrot.lane.b32.xlu0 %v2700, 64
  %v3261 = vpop.permute.xlu0 %3260
  %v3263 = vsel %vm900, %v3066, 0
  %v3266 = vsel %vm978, %v3261, 0
  %3268 = vmatprep.subr.bf16.mxu0 0
  %3269 = vmatpush1.bf16.msra.mxu0 0
  %3270 = vmatprep.subr.bf16.mxu0 0
  %3271 = vmatpush1.bf16.msra.mxu0 0
  %3272 = vmatprep.subr.bf16.mxu0 0
  %3273 = vmatpush1.bf16.msra.mxu0 0
  %3274 = vmatprep.subr.bf16.mxu0 0
  %3275 = vmatpush1.bf16.msra.mxu0 0
  %3276 = vmatprep.subr.bf16.mxu0 0
  %3277 = vmatpush1.bf16.msra.mxu0 0
  %3278 = vmatprep.subr.bf16.mxu0 0
  %3279 = vmatpush1.bf16.msra.mxu0 0
  %3280 = vmatprep.subr.bf16.mxu0 0
  %3281 = vmatpush1.bf16.msra.mxu0 0
  %3282 = vmatprep.subr.bf16.mxu0 0
  %3283 = vmatpush1.bf16.msra.mxu0 %v3266
  %3284 = vmatprep.subr.bf16.mxu0 0
  %3285 = vmatpush2.bf16.msra.mxu0 0
  %3286 = vmatprep.subr.bf16.mxu0 0
  %3287 = vmatpush2.bf16.msra.mxu0 0
  %3288 = vmatprep.subr.bf16.mxu0 0
  %3289 = vmatpush2.bf16.msra.mxu0 0
  %3290 = vmatprep.subr.bf16.mxu0 0
  %3291 = vmatpush2.bf16.msra.mxu0 0
  %3292 = vmatprep.subr.bf16.mxu0 0
  %3293 = vmatpush2.bf16.msra.mxu0 0
  %3294 = vmatprep.subr.bf16.mxu0 0
  %3295 = vmatpush2.bf16.msra.mxu0 0
  %3296 = vmatprep.subr.bf16.mxu0 0
  %3297 = vmatpush2.bf16.msra.mxu0 0
  %3298 = vmatprep.subr.bf16.mxu0 0
  %3299 = vmatpush2.bf16.msra.mxu0 0
  %3300 = vmatprep.mubr.bf16.mxu0 0
  %3301 = vmatmul.mubr.bf16.gmra.mxu0 %v3263
  %v3302 = vpop.f32.mrf.mxu0
  %v3303 = vadd.f32 0.0, %v3302
  %v3304 = vpop.f32.mrf.mxu0
  %v3305 = vpop.f32.mrf.mxu0
  %v3306 = vpop.f32.mrf.mxu0
  %3307 = vdwg.mxu0
  %3308 = vrot.lane.b32.xlu0 %v2701, 64
  %v3309 = vpop.permute.xlu0 %3308
  %v3311 = vsel %vm900, %v3067, 0
  %v3314 = vsel %vm978, %v3309, 0
  %3316 = vmatprep.subr.bf16.mxu0 0
  %3317 = vmatpush1.bf16.msra.mxu0 0
  %3318 = vmatprep.subr.bf16.mxu0 0
  %3319 = vmatpush1.bf16.msra.mxu0 0
  %3320 = vmatprep.subr.bf16.mxu0 0
  %3321 = vmatpush1.bf16.msra.mxu0 0
  %3322 = vmatprep.subr.bf16.mxu0 0
  %3323 = vmatpush1.bf16.msra.mxu0 0
  %3324 = vmatprep.subr.bf16.mxu0 0
  %3325 = vmatpush1.bf16.msra.mxu0 0
  %3326 = vmatprep.subr.bf16.mxu0 0
  %3327 = vmatpush1.bf16.msra.mxu0 0
  %3328 = vmatprep.subr.bf16.mxu0 0
  %3329 = vmatpush1.bf16.msra.mxu0 0
  %3330 = vmatprep.subr.bf16.mxu0 0
  %3331 = vmatpush1.bf16.msra.mxu0 %v3314
  %3332 = vmatprep.subr.bf16.mxu0 0
  %3333 = vmatpush2.bf16.msra.mxu0 0
  %3334 = vmatprep.subr.bf16.mxu0 0
  %3335 = vmatpush2.bf16.msra.mxu0 0
  %3336 = vmatprep.subr.bf16.mxu0 0
  %3337 = vmatpush2.bf16.msra.mxu0 0
  %3338 = vmatprep.subr.bf16.mxu0 0
  %3339 = vmatpush2.bf16.msra.mxu0 0
  %3340 = vmatprep.subr.bf16.mxu0 0
  %3341 = vmatpush2.bf16.msra.mxu0 0
  %3342 = vmatprep.subr.bf16.mxu0 0
  %3343 = vmatpush2.bf16.msra.mxu0 0
  %3344 = vmatprep.subr.bf16.mxu0 0
  %3345 = vmatpush2.bf16.msra.mxu0 0
  %3346 = vmatprep.subr.bf16.mxu0 0
  %3347 = vmatpush2.bf16.msra.mxu0 0
  %3348 = vmatprep.mubr.bf16.mxu0 0
  %3349 = vmatmul.mubr.bf16.gmra.mxu0 %v3311
  %v3350 = vpop.f32.mrf.mxu0
  %v3351 = vadd.f32 0.0, %v3350
  %v3352 = vpop.f32.mrf.mxu0
  %v3353 = vpop.f32.mrf.mxu0
  %v3354 = vpop.f32.mrf.mxu0
  %3355 = vdwg.mxu0
  %3356 = vst.msk [vmem:[#allocation2] sm:$0xff] %vm608, %v3111
  %3357 = vst.msk [vmem:[#allocation2 + $0x8] sm:$0xff] %vm608, %v3159
  %3358 = vst.msk [vmem:[#allocation2 + $0x10] sm:$0xff] %vm608, %v3207
  %3359 = vst.msk [vmem:[#allocation2 + $0x18] sm:$0xff] %vm608, %v3255
  %3360 = vst.msk [vmem:[#allocation2 + $0x20] sm:$0xff] %vm608, %v3303
  %3361 = vst.msk [vmem:[#allocation2 + $0x28] sm:$0xff] %vm608, %v3351
  %3362 = vrot.lane.b32.xlu0 %v2696, 112
  %v3363 = vpop.permute.xlu0 %3362
  %3364 = vrot.lane.b32.xlu0 %v2696, 80
  %v3365 = vpop.permute.xlu0 %3364
  %v3367 = vsel %vm608, %v3363, 0
  %v3370 = vsel %vm608, %v3365, 0
  %3372 = vmatprep.subr.bf16.mxu0 0
  %3373 = vmatpush1.bf16.xpose.msra.mxu0 0
  %3374 = vmatprep.subr.bf16.mxu0 0
  %3375 = vmatpush1.bf16.xpose.msra.mxu0 0
  %3376 = vmatprep.subr.bf16.mxu0 0
  %3377 = vmatpush1.bf16.xpose.msra.mxu0 0
  %3378 = vmatprep.subr.bf16.mxu0 0
  %3379 = vmatpush1.bf16.xpose.msra.mxu0 0
  %3380 = vmatprep.subr.bf16.mxu0 0
  %3381 = vmatpush1.bf16.xpose.msra.mxu0 0
  %3382 = vmatprep.subr.bf16.mxu0 0
  %3383 = vmatpush1.bf16.xpose.msra.mxu0 0
  %3384 = vmatprep.subr.bf16.mxu0 0
  %3385 = vmatpush1.bf16.xpose.msra.mxu0 0
  %3386 = vmatprep.subr.bf16.mxu0 0
  %3387 = vmatpush1.bf16.xpose.msra.mxu0 %v3370
  %3388 = vmatprep.subr.bf16.mxu0 0
  %3389 = vmatpush2.bf16.xpose.msra.mxu0 0
  %3390 = vmatprep.subr.bf16.mxu0 0
  %3391 = vmatpush2.bf16.xpose.msra.mxu0 0
  %3392 = vmatprep.subr.bf16.mxu0 0
  %3393 = vmatpush2.bf16.xpose.msra.mxu0 0
  %3394 = vmatprep.subr.bf16.mxu0 0
  %3395 = vmatpush2.bf16.xpose.msra.mxu0 0
  %3396 = vmatprep.subr.bf16.mxu0 0
  %3397 = vmatpush2.bf16.xpose.msra.mxu0 0
  %3398 = vmatprep.subr.bf16.mxu0 0
  %3399 = vmatpush2.bf16.xpose.msra.mxu0 0
  %3400 = vmatprep.subr.bf16.mxu0 0
  %3401 = vmatpush2.bf16.xpose.msra.mxu0 0
  %3402 = vmatprep.subr.bf16.mxu0 0
  %3403 = vmatpush2.bf16.xpose.msra.mxu0 0
  %3404 = vmatprep.mubr.bf16.mxu0 0
  %3405 = vmatmul.mubr.bf16.gmra.mxu0 %v3367
  %v3406 = vpop.f32.mrf.mxu0
  %v3407 = vadd.f32 %v603, %v3406
  %v3408 = vpop.f32.mrf.mxu0
  %v3409 = vpop.f32.mrf.mxu0
  %v3410 = vpop.f32.mrf.mxu0
  %3411 = vdwg.mxu0
  %3412 = vrot.lane.b32.xlu0 %v2697, 112
  %v3413 = vpop.permute.xlu0 %3412
  %3414 = vrot.lane.b32.xlu0 %v2697, 80
  %v3415 = vpop.permute.xlu0 %3414
  %v3417 = vsel %vm608, %v3413, 0
  %v3420 = vsel %vm608, %v3415, 0
  %3422 = vmatprep.subr.bf16.mxu0 0
  %3423 = vmatpush1.bf16.xpose.msra.mxu0 0
  %3424 = vmatprep.subr.bf16.mxu0 0
  %3425 = vmatpush1.bf16.xpose.msra.mxu0 0
  %3426 = vmatprep.subr.bf16.mxu0 0
  %3427 = vmatpush1.bf16.xpose.msra.mxu0 0
  %3428 = vmatprep.subr.bf16.mxu0 0
  %3429 = vmatpush1.bf16.xpose.msra.mxu0 0
  %3430 = vmatprep.subr.bf16.mxu0 0
  %3431 = vmatpush1.bf16.xpose.msra.mxu0 0
  %3432 = vmatprep.subr.bf16.mxu0 0
  %3433 = vmatpush1.bf16.xpose.msra.mxu0 0
  %3434 = vmatprep.subr.bf16.mxu0 0
  %3435 = vmatpush1.bf16.xpose.msra.mxu0 0
  %3436 = vmatprep.subr.bf16.mxu0 0
  %3437 = vmatpush1.bf16.xpose.msra.mxu0 %v3420
  %3438 = vmatprep.subr.bf16.mxu0 0
  %3439 = vmatpush2.bf16.xpose.msra.mxu0 0
  %3440 = vmatprep.subr.bf16.mxu0 0
  %3441 = vmatpush2.bf16.xpose.msra.mxu0 0
  %3442 = vmatprep.subr.bf16.mxu0 0
  %3443 = vmatpush2.bf16.xpose.msra.mxu0 0
  %3444 = vmatprep.subr.bf16.mxu0 0
  %3445 = vmatpush2.bf16.xpose.msra.mxu0 0
  %3446 = vmatprep.subr.bf16.mxu0 0
  %3447 = vmatpush2.bf16.xpose.msra.mxu0 0
  %3448 = vmatprep.subr.bf16.mxu0 0
  %3449 = vmatpush2.bf16.xpose.msra.mxu0 0
  %3450 = vmatprep.subr.bf16.mxu0 0
  %3451 = vmatpush2.bf16.xpose.msra.mxu0 0
  %3452 = vmatprep.subr.bf16.mxu0 0
  %3453 = vmatpush2.bf16.xpose.msra.mxu0 0
  %3454 = vmatprep.mubr.bf16.mxu0 0
  %3455 = vmatmul.mubr.bf16.gmra.mxu0 %v3417
  %v3456 = vpop.f32.mrf.mxu0
  %v3457 = vadd.f32 %v603, %v3456
  %v3458 = vpop.f32.mrf.mxu0
  %v3459 = vpop.f32.mrf.mxu0
  %v3460 = vpop.f32.mrf.mxu0
  %3461 = vdwg.mxu0
  %3462 = vrot.lane.b32.xlu0 %v2698, 112
  %v3463 = vpop.permute.xlu0 %3462
  %3464 = vrot.lane.b32.xlu0 %v2698, 80
  %v3465 = vpop.permute.xlu0 %3464
  %v3467 = vsel %vm608, %v3463, 0
  %v3470 = vsel %vm608, %v3465, 0
  %3472 = vmatprep.subr.bf16.mxu0 0
  %3473 = vmatpush1.bf16.xpose.msra.mxu0 0
  %3474 = vmatprep.subr.bf16.mxu0 0
  %3475 = vmatpush1.bf16.xpose.msra.mxu0 0
  %3476 = vmatprep.subr.bf16.mxu0 0
  %3477 = vmatpush1.bf16.xpose.msra.mxu0 0
  %3478 = vmatprep.subr.bf16.mxu0 0
  %3479 = vmatpush1.bf16.xpose.msra.mxu0 0
  %3480 = vmatprep.subr.bf16.mxu0 0
  %3481 = vmatpush1.bf16.xpose.msra.mxu0 0
  %3482 = vmatprep.subr.bf16.mxu0 0
  %3483 = vmatpush1.bf16.xpose.msra.mxu0 0
  %3484 = vmatprep.subr.bf16.mxu0 0
  %3485 = vmatpush1.bf16.xpose.msra.mxu0 0
  %3486 = vmatprep.subr.bf16.mxu0 0
  %3487 = vmatpush1.bf16.xpose.msra.mxu0 %v3470
  %3488 = vmatprep.subr.bf16.mxu0 0
  %3489 = vmatpush2.bf16.xpose.msra.mxu0 0
  %3490 = vmatprep.subr.bf16.mxu0 0
  %3491 = vmatpush2.bf16.xpose.msra.mxu0 0
  %3492 = vmatprep.subr.bf16.mxu0 0
  %3493 = vmatpush2.bf16.xpose.msra.mxu0 0
  %3494 = vmatprep.subr.bf16.mxu0 0
  %3495 = vmatpush2.bf16.xpose.msra.mxu0 0
  %3496 = vmatprep.subr.bf16.mxu0 0
  %3497 = vmatpush2.bf16.xpose.msra.mxu0 0
  %3498 = vmatprep.subr.bf16.mxu0 0
  %3499 = vmatpush2.bf16.xpose.msra.mxu0 0
  %3500 = vmatprep.subr.bf16.mxu0 0
  %3501 = vmatpush2.bf16.xpose.msra.mxu0 0
  %3502 = vmatprep.subr.bf16.mxu0 0
  %3503 = vmatpush2.bf16.xpose.msra.mxu0 0
  %3504 = vmatprep.mubr.bf16.mxu0 0
  %3505 = vmatmul.mubr.bf16.gmra.mxu0 %v3467
  %v3506 = vpop.f32.mrf.mxu0
  %v3507 = vadd.f32 %v603, %v3506
  %v3508 = vpop.f32.mrf.mxu0
  %v3509 = vpop.f32.mrf.mxu0
  %v3510 = vpop.f32.mrf.mxu0
  %3511 = vdwg.mxu0
  %3512 = vrot.lane.b32.xlu0 %v2699, 112
  %v3513 = vpop.permute.xlu0 %3512
  %3514 = vrot.lane.b32.xlu0 %v2699, 80
  %v3515 = vpop.permute.xlu0 %3514
  %v3517 = vsel %vm608, %v3513, 0
  %v3520 = vsel %vm608, %v3515, 0
  %3522 = vmatprep.subr.bf16.mxu0 0
  %3523 = vmatpush1.bf16.xpose.msra.mxu0 0
  %3524 = vmatprep.subr.bf16.mxu0 0
  %3525 = vmatpush1.bf16.xpose.msra.mxu0 0
  %3526 = vmatprep.subr.bf16.mxu0 0
  %3527 = vmatpush1.bf16.xpose.msra.mxu0 0
  %3528 = vmatprep.subr.bf16.mxu0 0
  %3529 = vmatpush1.bf16.xpose.msra.mxu0 0
  %3530 = vmatprep.subr.bf16.mxu0 0
  %3531 = vmatpush1.bf16.xpose.msra.mxu0 0
  %3532 = vmatprep.subr.bf16.mxu0 0
  %3533 = vmatpush1.bf16.xpose.msra.mxu0 0
  %3534 = vmatprep.subr.bf16.mxu0 0
  %3535 = vmatpush1.bf16.xpose.msra.mxu0 0
  %3536 = vmatprep.subr.bf16.mxu0 0
  %3537 = vmatpush1.bf16.xpose.msra.mxu0 %v3520
  %3538 = vmatprep.subr.bf16.mxu0 0
  %3539 = vmatpush2.bf16.xpose.msra.mxu0 0
  %3540 = vmatprep.subr.bf16.mxu0 0
  %3541 = vmatpush2.bf16.xpose.msra.mxu0 0
  %3542 = vmatprep.subr.bf16.mxu0 0
  %3543 = vmatpush2.bf16.xpose.msra.mxu0 0
  %3544 = vmatprep.subr.bf16.mxu0 0
  %3545 = vmatpush2.bf16.xpose.msra.mxu0 0
  %3546 = vmatprep.subr.bf16.mxu0 0
  %3547 = vmatpush2.bf16.xpose.msra.mxu0 0
  %3548 = vmatprep.subr.bf16.mxu0 0
  %3549 = vmatpush2.bf16.xpose.msra.mxu0 0
  %3550 = vmatprep.subr.bf16.mxu0 0
  %3551 = vmatpush2.bf16.xpose.msra.mxu0 0
  %3552 = vmatprep.subr.bf16.mxu0 0
  %3553 = vmatpush2.bf16.xpose.msra.mxu0 0
  %3554 = vmatprep.mubr.bf16.mxu0 0
  %3555 = vmatmul.mubr.bf16.gmra.mxu0 %v3517
  %v3556 = vpop.f32.mrf.mxu0
  %v3557 = vadd.f32 %v603, %v3556
  %v3558 = vpop.f32.mrf.mxu0
  %v3559 = vpop.f32.mrf.mxu0
  %v3560 = vpop.f32.mrf.mxu0
  %3561 = vdwg.mxu0
  %3562 = vrot.lane.b32.xlu0 %v2700, 112
  %v3563 = vpop.permute.xlu0 %3562
  %3564 = vrot.lane.b32.xlu0 %v2700, 80
  %v3565 = vpop.permute.xlu0 %3564
  %v3567 = vsel %vm608, %v3563, 0
  %v3570 = vsel %vm608, %v3565, 0
  %3572 = vmatprep.subr.bf16.mxu0 0
  %3573 = vmatpush1.bf16.xpose.msra.mxu0 0
  %3574 = vmatprep.subr.bf16.mxu0 0
  %3575 = vmatpush1.bf16.xpose.msra.mxu0 0
  %3576 = vmatprep.subr.bf16.mxu0 0
  %3577 = vmatpush1.bf16.xpose.msra.mxu0 0
  %3578 = vmatprep.subr.bf16.mxu0 0
  %3579 = vmatpush1.bf16.xpose.msra.mxu0 0
  %3580 = vmatprep.subr.bf16.mxu0 0
  %3581 = vmatpush1.bf16.xpose.msra.mxu0 0
  %3582 = vmatprep.subr.bf16.mxu0 0
  %3583 = vmatpush1.bf16.xpose.msra.mxu0 0
  %3584 = vmatprep.subr.bf16.mxu0 0
  %3585 = vmatpush1.bf16.xpose.msra.mxu0 0
  %3586 = vmatprep.subr.bf16.mxu0 0
  %3587 = vmatpush1.bf16.xpose.msra.mxu0 %v3570
  %3588 = vmatprep.subr.bf16.mxu0 0
  %3589 = vmatpush2.bf16.xpose.msra.mxu0 0
  %3590 = vmatprep.subr.bf16.mxu0 0
  %3591 = vmatpush2.bf16.xpose.msra.mxu0 0
  %3592 = vmatprep.subr.bf16.mxu0 0
  %3593 = vmatpush2.bf16.xpose.msra.mxu0 0
  %3594 = vmatprep.subr.bf16.mxu0 0
  %3595 = vmatpush2.bf16.xpose.msra.mxu0 0
  %3596 = vmatprep.subr.bf16.mxu0 0
  %3597 = vmatpush2.bf16.xpose.msra.mxu0 0
  %3598 = vmatprep.subr.bf16.mxu0 0
  %3599 = vmatpush2.bf16.xpose.msra.mxu0 0
  %3600 = vmatprep.subr.bf16.mxu0 0
  %3601 = vmatpush2.bf16.xpose.msra.mxu0 0
  %3602 = vmatprep.subr.bf16.mxu0 0
  %3603 = vmatpush2.bf16.xpose.msra.mxu0 0
  %3604 = vmatprep.mubr.bf16.mxu0 0
  %3605 = vmatmul.mubr.bf16.gmra.mxu0 %v3567
  %v3606 = vpop.f32.mrf.mxu0
  %v3607 = vadd.f32 %v603, %v3606
  %v3608 = vpop.f32.mrf.mxu0
  %v3609 = vpop.f32.mrf.mxu0
  %v3610 = vpop.f32.mrf.mxu0
  %3611 = vdwg.mxu0
  %3612 = vrot.lane.b32.xlu0 %v2701, 112
  %v3613 = vpop.permute.xlu0 %3612
  %3614 = vrot.lane.b32.xlu0 %v2701, 80
  %v3615 = vpop.permute.xlu0 %3614
  %v3617 = vsel %vm608, %v3613, 0
  %v3620 = vsel %vm608, %v3615, 0
  %3622 = vmatprep.subr.bf16.mxu0 0
  %3623 = vmatpush1.bf16.xpose.msra.mxu0 0
  %3624 = vmatprep.subr.bf16.mxu0 0
  %3625 = vmatpush1.bf16.xpose.msra.mxu0 0
  %3626 = vmatprep.subr.bf16.mxu0 0
  %3627 = vmatpush1.bf16.xpose.msra.mxu0 0
  %3628 = vmatprep.subr.bf16.mxu0 0
  %3629 = vmatpush1.bf16.xpose.msra.mxu0 0
  %3630 = vmatprep.subr.bf16.mxu0 0
  %3631 = vmatpush1.bf16.xpose.msra.mxu0 0
  %3632 = vmatprep.subr.bf16.mxu0 0
  %3633 = vmatpush1.bf16.xpose.msra.mxu0 0
  %3634 = vmatprep.subr.bf16.mxu0 0
  %3635 = vmatpush1.bf16.xpose.msra.mxu0 0
  %3636 = vmatprep.subr.bf16.mxu0 0
  %3637 = vmatpush1.bf16.xpose.msra.mxu0 %v3620
  %3638 = vmatprep.subr.bf16.mxu0 0
  %3639 = vmatpush2.bf16.xpose.msra.mxu0 0
  %3640 = vmatprep.subr.bf16.mxu0 0
  %3641 = vmatpush2.bf16.xpose.msra.mxu0 0
  %3642 = vmatprep.subr.bf16.mxu0 0
  %3643 = vmatpush2.bf16.xpose.msra.mxu0 0
  %3644 = vmatprep.subr.bf16.mxu0 0
  %3645 = vmatpush2.bf16.xpose.msra.mxu0 0
  %3646 = vmatprep.subr.bf16.mxu0 0
  %3647 = vmatpush2.bf16.xpose.msra.mxu0 0
  %3648 = vmatprep.subr.bf16.mxu0 0
  %3649 = vmatpush2.bf16.xpose.msra.mxu0 0
  %3650 = vmatprep.subr.bf16.mxu0 0
  %3651 = vmatpush2.bf16.xpose.msra.mxu0 0
  %3652 = vmatprep.subr.bf16.mxu0 0
  %3653 = vmatpush2.bf16.xpose.msra.mxu0 0
  %3654 = vmatprep.mubr.bf16.mxu0 0
  %3655 = vmatmul.mubr.bf16.gmra.mxu0 %v3617
  %v3656 = vpop.f32.mrf.mxu0
  %v3657 = vadd.f32 %v603, %v3656
  %v3658 = vpop.f32.mrf.mxu0
  %v3659 = vpop.f32.mrf.mxu0
  %v3660 = vpop.f32.mrf.mxu0
  %3661 = vdwg.mxu0
  %v3662 = vsel %vm900, %v3407, -inf
  %3663 = vmax.xlane.f32.xlu0 %v3662
  %v3664 = vpop.xlane.xlu0 %3663
  %v3665 = vsel %vm900, %v3457, -inf
  %3666 = vmax.xlane.f32.xlu0 %v3665
  %v3667 = vpop.xlane.xlu0 %3666
  %v3668 = vsel %vm900, %v3507, -inf
  %3669 = vmax.xlane.f32.xlu0 %v3668
  %v3670 = vpop.xlane.xlu0 %3669
  %v3671 = vsel %vm900, %v3557, -inf
  %3672 = vmax.xlane.f32.xlu0 %v3671
  %v3673 = vpop.xlane.xlu0 %3672
  %v3674 = vsel %vm900, %v3607, -inf
  %3675 = vmax.xlane.f32.xlu0 %v3674
  %v3676 = vpop.xlane.xlu0 %3675
  %v3677 = vsel %vm900, %v3657, -inf
  %3678 = vmax.xlane.f32.xlu0 %v3677
  %v3679 = vpop.xlane.xlu0 %3678
  %v3680 = vsub.f32 %v3407, %v3664
  %v3681 = vsub.f32 %v3457, %v3667
  %v3682 = vsub.f32 %v3507, %v3670
  %v3683 = vsub.f32 %v3557, %v3673
  %v3684 = vsub.f32 %v3607, %v3676
  %v3685 = vsub.f32 %v3657, %v3679
  %v3686 = vmul.f32 %v3680, 1.442695
  %v3687 = vpow.pop %v3686
  %v3688 = vmul.f32 %v3681, 1.442695
  %v3689 = vpow.pop %v3688
  %v3690 = vmul.f32 %v3682, 1.442695
  %v3691 = vpow.pop %v3690
  %v3692 = vmul.f32 %v3683, 1.442695
  %v3693 = vpow.pop %v3692
  %v3694 = vmul.f32 %v3684, 1.442695
  %v3695 = vpow.pop %v3694
  %v3696 = vmul.f32 %v3685, 1.442695
  %v3697 = vpow.pop %v3696
  %v3698 = vsel %vm900, %v3687, 0.0
  %3699 = vadd.xlane.f32.xlu0 %v3698
  %v3700 = vpop.xlane.xlu0 %3699
  %v3701 = vsel %vm900, %v3689, 0.0
  %3702 = vadd.xlane.f32.xlu0 %v3701
  %v3703 = vpop.xlane.xlu0 %3702
  %v3704 = vsel %vm900, %v3691, 0.0
  %3705 = vadd.xlane.f32.xlu0 %v3704
  %v3706 = vpop.xlane.xlu0 %3705
  %v3707 = vsel %vm900, %v3693, 0.0
  %3708 = vadd.xlane.f32.xlu0 %v3707
  %v3709 = vpop.xlane.xlu0 %3708
  %v3710 = vsel %vm900, %v3695, 0.0
  %3711 = vadd.xlane.f32.xlu0 %v3710
  %v3712 = vpop.xlane.xlu0 %3711
  %v3713 = vsel %vm900, %v3697, 0.0
  %3714 = vadd.xlane.f32.xlu0 %v3713
  %v3715 = vpop.xlane.xlu0 %3714
  %v3716 = vrcp.pop %v3700
  %v3717 = vrcp.pop %v3703
  %v3718 = vrcp.pop %v3706
  %v3719 = vrcp.pop %v3709
  %v3720 = vrcp.pop %v3712
  %v3721 = vrcp.pop %v3715
  %v3722 = vmul.f32 %v3687, %v3716
  %v3723 = vmul.f32 %v3689, %v3717
  %v3724 = vmul.f32 %v3691, %v3718
  %v3725 = vmul.f32 %v3693, %v3719
  %v3726 = vmul.f32 %v3695, %v3720
  %v3727 = vmul.f32 %v3697, %v3721
  %v3728 = vpack.c.bf16 %v3722, %v3722
  %v3729 = vpack.c.bf16 %v3723, %v3723
  %v3730 = vpack.c.bf16 %v3724, %v3724
  %v3731 = vpack.c.bf16 %v3725, %v3725
  %v3732 = vpack.c.bf16 %v3726, %v3726
  %v3733 = vpack.c.bf16 %v3727, %v3727
  %3734 = vrot.lane.b32.xlu0 %v2696, 48
  %v3735 = vpop.permute.xlu0 %3734
  %v3737 = vsel %vm900, %v3728, 0
  %v3740 = vsel %vm978, %v3735, 0
  %3742 = vmatprep.subr.bf16.mxu0 0
  %3743 = vmatpush1.bf16.msra.mxu0 0
  %3744 = vmatprep.subr.bf16.mxu0 0
  %3745 = vmatpush1.bf16.msra.mxu0 0
  %3746 = vmatprep.subr.bf16.mxu0 0
  %3747 = vmatpush1.bf16.msra.mxu0 0
  %3748 = vmatprep.subr.bf16.mxu0 0
  %3749 = vmatpush1.bf16.msra.mxu0 0
  %3750 = vmatprep.subr.bf16.mxu0 0
  %3751 = vmatpush1.bf16.msra.mxu0 0
  %3752 = vmatprep.subr.bf16.mxu0 0
  %3753 = vmatpush1.bf16.msra.mxu0 0
  %3754 = vmatprep.subr.bf16.mxu0 0
  %3755 = vmatpush1.bf16.msra.mxu0 0
  %3756 = vmatprep.subr.bf16.mxu0 0
  %3757 = vmatpush1.bf16.msra.mxu0 %v3740
  %3758 = vmatprep.subr.bf16.mxu0 0
  %3759 = vmatpush2.bf16.msra.mxu0 0
  %3760 = vmatprep.subr.bf16.mxu0 0
  %3761 = vmatpush2.bf16.msra.mxu0 0
  %3762 = vmatprep.subr.bf16.mxu0 0
  %3763 = vmatpush2.bf16.msra.mxu0 0
  %3764 = vmatprep.subr.bf16.mxu0 0
  %3765 = vmatpush2.bf16.msra.mxu0 0
  %3766 = vmatprep.subr.bf16.mxu0 0
  %3767 = vmatpush2.bf16.msra.mxu0 0
  %3768 = vmatprep.subr.bf16.mxu0 0
  %3769 = vmatpush2.bf16.msra.mxu0 0
  %3770 = vmatprep.subr.bf16.mxu0 0
  %3771 = vmatpush2.bf16.msra.mxu0 0
  %3772 = vmatprep.subr.bf16.mxu0 0
  %3773 = vmatpush2.bf16.msra.mxu0 0
  %3774 = vmatprep.mubr.bf16.mxu0 0
  %3775 = vmatmul.mubr.bf16.gmra.mxu0 %v3737
  %v3776 = vpop.f32.mrf.mxu0
  %v3777 = vadd.f32 0.0, %v3776
  %v3778 = vpop.f32.mrf.mxu0
  %v3779 = vpop.f32.mrf.mxu0
  %v3780 = vpop.f32.mrf.mxu0
  %3781 = vdwg.mxu0
  %3782 = vrot.lane.b32.xlu0 %v2697, 48
  %v3783 = vpop.permute.xlu0 %3782
  %v3785 = vsel %vm900, %v3729, 0
  %v3788 = vsel %vm978, %v3783, 0
  %3790 = vmatprep.subr.bf16.mxu0 0
  %3791 = vmatpush1.bf16.msra.mxu0 0
  %3792 = vmatprep.subr.bf16.mxu0 0
  %3793 = vmatpush1.bf16.msra.mxu0 0
  %3794 = vmatprep.subr.bf16.mxu0 0
  %3795 = vmatpush1.bf16.msra.mxu0 0
  %3796 = vmatprep.subr.bf16.mxu0 0
  %3797 = vmatpush1.bf16.msra.mxu0 0
  %3798 = vmatprep.subr.bf16.mxu0 0
  %3799 = vmatpush1.bf16.msra.mxu0 0
  %3800 = vmatprep.subr.bf16.mxu0 0
  %3801 = vmatpush1.bf16.msra.mxu0 0
  %3802 = vmatprep.subr.bf16.mxu0 0
  %3803 = vmatpush1.bf16.msra.mxu0 0
  %3804 = vmatprep.subr.bf16.mxu0 0
  %3805 = vmatpush1.bf16.msra.mxu0 %v3788
  %3806 = vmatprep.subr.bf16.mxu0 0
  %3807 = vmatpush2.bf16.msra.mxu0 0
  %3808 = vmatprep.subr.bf16.mxu0 0
  %3809 = vmatpush2.bf16.msra.mxu0 0
  %3810 = vmatprep.subr.bf16.mxu0 0
  %3811 = vmatpush2.bf16.msra.mxu0 0
  %3812 = vmatprep.subr.bf16.mxu0 0
  %3813 = vmatpush2.bf16.msra.mxu0 0
  %3814 = vmatprep.subr.bf16.mxu0 0
  %3815 = vmatpush2.bf16.msra.mxu0 0
  %3816 = vmatprep.subr.bf16.mxu0 0
  %3817 = vmatpush2.bf16.msra.mxu0 0
  %3818 = vmatprep.subr.bf16.mxu0 0
  %3819 = vmatpush2.bf16.msra.mxu0 0
  %3820 = vmatprep.subr.bf16.mxu0 0
  %3821 = vmatpush2.bf16.msra.mxu0 0
  %3822 = vmatprep.mubr.bf16.mxu0 0
  %3823 = vmatmul.mubr.bf16.gmra.mxu0 %v3785
  %v3824 = vpop.f32.mrf.mxu0
  %v3825 = vadd.f32 0.0, %v3824
  %v3826 = vpop.f32.mrf.mxu0
  %v3827 = vpop.f32.mrf.mxu0
  %v3828 = vpop.f32.mrf.mxu0
  %3829 = vdwg.mxu0
  %3830 = vrot.lane.b32.xlu0 %v2698, 48
  %v3831 = vpop.permute.xlu0 %3830
  %v3833 = vsel %vm900, %v3730, 0
  %v3836 = vsel %vm978, %v3831, 0
  %3838 = vmatprep.subr.bf16.mxu0 0
  %3839 = vmatpush1.bf16.msra.mxu0 0
  %3840 = vmatprep.subr.bf16.mxu0 0
  %3841 = vmatpush1.bf16.msra.mxu0 0
  %3842 = vmatprep.subr.bf16.mxu0 0
  %3843 = vmatpush1.bf16.msra.mxu0 0
  %3844 = vmatprep.subr.bf16.mxu0 0
  %3845 = vmatpush1.bf16.msra.mxu0 0
  %3846 = vmatprep.subr.bf16.mxu0 0
  %3847 = vmatpush1.bf16.msra.mxu0 0
  %3848 = vmatprep.subr.bf16.mxu0 0
  %3849 = vmatpush1.bf16.msra.mxu0 0
  %3850 = vmatprep.subr.bf16.mxu0 0
  %3851 = vmatpush1.bf16.msra.mxu0 0
  %3852 = vmatprep.subr.bf16.mxu0 0
  %3853 = vmatpush1.bf16.msra.mxu0 %v3836
  %3854 = vmatprep.subr.bf16.mxu0 0
  %3855 = vmatpush2.bf16.msra.mxu0 0
  %3856 = vmatprep.subr.bf16.mxu0 0
  %3857 = vmatpush2.bf16.msra.mxu0 0
  %3858 = vmatprep.subr.bf16.mxu0 0
  %3859 = vmatpush2.bf16.msra.mxu0 0
  %3860 = vmatprep.subr.bf16.mxu0 0
  %3861 = vmatpush2.bf16.msra.mxu0 0
  %3862 = vmatprep.subr.bf16.mxu0 0
  %3863 = vmatpush2.bf16.msra.mxu0 0
  %3864 = vmatprep.subr.bf16.mxu0 0
  %3865 = vmatpush2.bf16.msra.mxu0 0
  %3866 = vmatprep.subr.bf16.mxu0 0
  %3867 = vmatpush2.bf16.msra.mxu0 0
  %3868 = vmatprep.subr.bf16.mxu0 0
  %3869 = vmatpush2.bf16.msra.mxu0 0
  %3870 = vmatprep.mubr.bf16.mxu0 0
  %3871 = vmatmul.mubr.bf16.gmra.mxu0 %v3833
  %v3872 = vpop.f32.mrf.mxu0
  %v3873 = vadd.f32 0.0, %v3872
  %v3874 = vpop.f32.mrf.mxu0
  %v3875 = vpop.f32.mrf.mxu0
  %v3876 = vpop.f32.mrf.mxu0
  %3877 = vdwg.mxu0
  %3878 = vrot.lane.b32.xlu0 %v2699, 48
  %v3879 = vpop.permute.xlu0 %3878
  %v3881 = vsel %vm900, %v3731, 0
  %v3884 = vsel %vm978, %v3879, 0
  %3886 = vmatprep.subr.bf16.mxu0 0
  %3887 = vmatpush1.bf16.msra.mxu0 0
  %3888 = vmatprep.subr.bf16.mxu0 0
  %3889 = vmatpush1.bf16.msra.mxu0 0
  %3890 = vmatprep.subr.bf16.mxu0 0
  %3891 = vmatpush1.bf16.msra.mxu0 0
  %3892 = vmatprep.subr.bf16.mxu0 0
  %3893 = vmatpush1.bf16.msra.mxu0 0
  %3894 = vmatprep.subr.bf16.mxu0 0
  %3895 = vmatpush1.bf16.msra.mxu0 0
  %3896 = vmatprep.subr.bf16.mxu0 0
  %3897 = vmatpush1.bf16.msra.mxu0 0
  %3898 = vmatprep.subr.bf16.mxu0 0
  %3899 = vmatpush1.bf16.msra.mxu0 0
  %3900 = vmatprep.subr.bf16.mxu0 0
  %3901 = vmatpush1.bf16.msra.mxu0 %v3884
  %3902 = vmatprep.subr.bf16.mxu0 0
  %3903 = vmatpush2.bf16.msra.mxu0 0
  %3904 = vmatprep.subr.bf16.mxu0 0
  %3905 = vmatpush2.bf16.msra.mxu0 0
  %3906 = vmatprep.subr.bf16.mxu0 0
  %3907 = vmatpush2.bf16.msra.mxu0 0
  %3908 = vmatprep.subr.bf16.mxu0 0
  %3909 = vmatpush2.bf16.msra.mxu0 0
  %3910 = vmatprep.subr.bf16.mxu0 0
  %3911 = vmatpush2.bf16.msra.mxu0 0
  %3912 = vmatprep.subr.bf16.mxu0 0
  %3913 = vmatpush2.bf16.msra.mxu0 0
  %3914 = vmatprep.subr.bf16.mxu0 0
  %3915 = vmatpush2.bf16.msra.mxu0 0
  %3916 = vmatprep.subr.bf16.mxu0 0
  %3917 = vmatpush2.bf16.msra.mxu0 0
  %3918 = vmatprep.mubr.bf16.mxu0 0
  %3919 = vmatmul.mubr.bf16.gmra.mxu0 %v3881
  %v3920 = vpop.f32.mrf.mxu0
  %v3921 = vadd.f32 0.0, %v3920
  %v3922 = vpop.f32.mrf.mxu0
  %v3923 = vpop.f32.mrf.mxu0
  %v3924 = vpop.f32.mrf.mxu0
  %3925 = vdwg.mxu0
  %3926 = vrot.lane.b32.xlu0 %v2700, 48
  %v3927 = vpop.permute.xlu0 %3926
  %v3929 = vsel %vm900, %v3732, 0
  %v3932 = vsel %vm978, %v3927, 0
  %3934 = vmatprep.subr.bf16.mxu0 0
  %3935 = vmatpush1.bf16.msra.mxu0 0
  %3936 = vmatprep.subr.bf16.mxu0 0
  %3937 = vmatpush1.bf16.msra.mxu0 0
  %3938 = vmatprep.subr.bf16.mxu0 0
  %3939 = vmatpush1.bf16.msra.mxu0 0
  %3940 = vmatprep.subr.bf16.mxu0 0
  %3941 = vmatpush1.bf16.msra.mxu0 0
  %3942 = vmatprep.subr.bf16.mxu0 0
  %3943 = vmatpush1.bf16.msra.mxu0 0
  %3944 = vmatprep.subr.bf16.mxu0 0
  %3945 = vmatpush1.bf16.msra.mxu0 0
  %3946 = vmatprep.subr.bf16.mxu0 0
  %3947 = vmatpush1.bf16.msra.mxu0 0
  %3948 = vmatprep.subr.bf16.mxu0 0
  %3949 = vmatpush1.bf16.msra.mxu0 %v3932
  %3950 = vmatprep.subr.bf16.mxu0 0
  %3951 = vmatpush2.bf16.msra.mxu0 0
  %3952 = vmatprep.subr.bf16.mxu0 0
  %3953 = vmatpush2.bf16.msra.mxu0 0
  %3954 = vmatprep.subr.bf16.mxu0 0
  %3955 = vmatpush2.bf16.msra.mxu0 0
  %3956 = vmatprep.subr.bf16.mxu0 0
  %3957 = vmatpush2.bf16.msra.mxu0 0
  %3958 = vmatprep.subr.bf16.mxu0 0
  %3959 = vmatpush2.bf16.msra.mxu0 0
  %3960 = vmatprep.subr.bf16.mxu0 0
  %3961 = vmatpush2.bf16.msra.mxu0 0
  %3962 = vmatprep.subr.bf16.mxu0 0
  %3963 = vmatpush2.bf16.msra.mxu0 0
  %3964 = vmatprep.subr.bf16.mxu0 0
  %3965 = vmatpush2.bf16.msra.mxu0 0
  %3966 = vmatprep.mubr.bf16.mxu0 0
  %3967 = vmatmul.mubr.bf16.gmra.mxu0 %v3929
  %v3968 = vpop.f32.mrf.mxu0
  %v3969 = vadd.f32 0.0, %v3968
  %v3970 = vpop.f32.mrf.mxu0
  %v3971 = vpop.f32.mrf.mxu0
  %v3972 = vpop.f32.mrf.mxu0
  %3973 = vdwg.mxu0
  %3974 = vrot.lane.b32.xlu0 %v2701, 48
  %v3975 = vpop.permute.xlu0 %3974
  %v3977 = vsel %vm900, %v3733, 0
  %v3980 = vsel %vm978, %v3975, 0
  %3982 = vmatprep.subr.bf16.mxu0 0
  %3983 = vmatpush1.bf16.msra.mxu0 0
  %3984 = vmatprep.subr.bf16.mxu0 0
  %3985 = vmatpush1.bf16.msra.mxu0 0
  %3986 = vmatprep.subr.bf16.mxu0 0
  %3987 = vmatpush1.bf16.msra.mxu0 0
  %3988 = vmatprep.subr.bf16.mxu0 0
  %3989 = vmatpush1.bf16.msra.mxu0 0
  %3990 = vmatprep.subr.bf16.mxu0 0
  %3991 = vmatpush1.bf16.msra.mxu0 0
  %3992 = vmatprep.subr.bf16.mxu0 0
  %3993 = vmatpush1.bf16.msra.mxu0 0
  %3994 = vmatprep.subr.bf16.mxu0 0
  %3995 = vmatpush1.bf16.msra.mxu0 0
  %3996 = vmatprep.subr.bf16.mxu0 0
  %3997 = vmatpush1.bf16.msra.mxu0 %v3980
  %3998 = vmatprep.subr.bf16.mxu0 0
  %3999 = vmatpush2.bf16.msra.mxu0 0
  %4000 = vmatprep.subr.bf16.mxu0 0
  %4001 = vmatpush2.bf16.msra.mxu0 0
  %4002 = vmatprep.subr.bf16.mxu0 0
  %4003 = vmatpush2.bf16.msra.mxu0 0
  %4004 = vmatprep.subr.bf16.mxu0 0
  %4005 = vmatpush2.bf16.msra.mxu0 0
  %4006 = vmatprep.subr.bf16.mxu0 0
  %4007 = vmatpush2.bf16.msra.mxu0 0
  %4008 = vmatprep.subr.bf16.mxu0 0
  %4009 = vmatpush2.bf16.msra.mxu0 0
  %4010 = vmatprep.subr.bf16.mxu0 0
  %4011 = vmatpush2.bf16.msra.mxu0 0
  %4012 = vmatprep.subr.bf16.mxu0 0
  %4013 = vmatpush2.bf16.msra.mxu0 0
  %4014 = vmatprep.mubr.bf16.mxu0 0
  %4015 = vmatmul.mubr.bf16.gmra.mxu0 %v3977
  %v4016 = vpop.f32.mrf.mxu0
  %v4017 = vadd.f32 0.0, %v4016
  %v4018 = vpop.f32.mrf.mxu0
  %v4019 = vpop.f32.mrf.mxu0
  %v4020 = vpop.f32.mrf.mxu0
  %4021 = vdwg.mxu0
  %4028 = vrot.lane.b32.xlu0 %v3777, 16
  %v4029 = vpop.permute.xlu0 %4028
  %4030 = vrot.lane.b32.xlu0 %v3825, 16
  %v4031 = vpop.permute.xlu0 %4030
  %4032 = vrot.lane.b32.xlu0 %v3873, 16
  %v4033 = vpop.permute.xlu0 %4032
  %4034 = vrot.lane.b32.xlu0 %v3921, 16
  %v4035 = vpop.permute.xlu0 %4034
  %4036 = vrot.lane.b32.xlu0 %v3969, 16
  %v4037 = vpop.permute.xlu0 %4036
  %4038 = vrot.lane.b32.xlu0 %v4017, 16
  %v4039 = vpop.permute.xlu0 %4038
  %4046 = vst.msk [vmem:[#allocation2] sm:$0xff] %vm1952, %v4029
  %4047 = vst.msk [vmem:[#allocation2 + $0x8] sm:$0xff] %vm1952, %v4031
  %4048 = vst.msk [vmem:[#allocation2 + $0x10] sm:$0xff] %vm1952, %v4033
  %4049 = vst.msk [vmem:[#allocation2 + $0x18] sm:$0xff] %vm1952, %v4035
  %4050 = vst.msk [vmem:[#allocation2 + $0x20] sm:$0xff] %vm1952, %v4037
  %4051 = vst.msk [vmem:[#allocation2 + $0x28] sm:$0xff] %vm1952, %v4039
  %v4052 = vld [vmem:[#allocation2] sm:$0xff]
  %v4053 = vld [vmem:[#allocation2 + $0x8] sm:$0xff]
  %v4054 = vld [vmem:[#allocation2 + $0x10] sm:$0xff]
  %v4055 = vld [vmem:[#allocation2 + $0x18] sm:$0xff]
  %v4056 = vld [vmem:[#allocation2 + $0x20] sm:$0xff]
  %v4057 = vld [vmem:[#allocation2 + $0x28] sm:$0xff]
  %v4058 = vpack.c.bf16 %v4053, %v4052
  %v4059 = vpack.c.bf16 %v4055, %v4054
  %v4060 = vpack.c.bf16 %v4057, %v4056
  %s4061 = scalar_lea.vmem %s7, 16
  %v4062 = vld [vmem:[%s4061] sm:$0xf]
  %v4063 = vld [vmem:[%s4061 + $0x4] sm:$0xf]
  %v4064 = vld [vmem:[%s4061 + $0x8] sm:$0xf]
  %v4065 = vld [vmem:[%s4061 + $0xc] sm:$0xf]
  %v4070 = vunpack.c.l.b16 %v4062
  %v4071 = vunpack.c.l.b16 %v4063
  %v4072 = vunpack.c.l.b16 %v4064
  %v4073 = vunpack.c.l.b16 %v4065
  %v4074 = vpack.c.b16 %v4071, %v4070
  %v4075 = vpack.c.b16 %v4073, %v4072
  %v4079 = vsel %vm254, %v4058, 0
  %v4082 = vsel %vm254, %v4059, 0
  %v4085 = vsel %vm254, %v4060, 0
  %4087 = vmatprep.subr.bf16.mxu0 0
  %4088 = vmatpush1.bf16.msra.mxu0 0
  %4089 = vmatprep.subr.bf16.mxu0 0
  %4090 = vmatpush1.bf16.msra.mxu0 0
  %4091 = vmatprep.subr.bf16.mxu0 0
  %4092 = vmatpush1.bf16.msra.mxu0 0
  %4093 = vmatprep.subr.bf16.mxu0 0
  %4094 = vmatpush1.bf16.msra.mxu0 0
  %4095 = vmatprep.subr.bf16.mxu0 0
  %4096 = vmatpush1.bf16.msra.mxu0 0
  %4097 = vmatprep.subr.bf16.mxu0 0
  %4098 = vmatpush1.bf16.msra.mxu0 0
  %4099 = vmatprep.subr.bf16.mxu0 0
  %4100 = vmatpush1.bf16.msra.mxu0 %v4075
  %4101 = vmatprep.subr.bf16.mxu0 0
  %4102 = vmatpush1.bf16.msra.mxu0 %v4074
  %4103 = vmatprep.subr.bf16.mxu0 0
  %4104 = vmatpush2.bf16.msra.mxu0 0
  %4105 = vmatprep.subr.bf16.mxu0 0
  %4106 = vmatpush2.bf16.msra.mxu0 0
  %4107 = vmatprep.subr.bf16.mxu0 0
  %4108 = vmatpush2.bf16.msra.mxu0 0
  %4109 = vmatprep.subr.bf16.mxu0 0
  %4110 = vmatpush2.bf16.msra.mxu0 0
  %4111 = vmatprep.subr.bf16.mxu0 0
  %4112 = vmatpush2.bf16.msra.mxu0 0
  %4113 = vmatprep.subr.bf16.mxu0 0
  %4114 = vmatpush2.bf16.msra.mxu0 0
  %4115 = vmatprep.subr.bf16.mxu0 0
  %4116 = vmatpush2.bf16.msra.mxu0 0
  %4117 = vmatprep.subr.bf16.mxu0 0
  %4118 = vmatpush2.bf16.msra.mxu0 0
  %4119 = vmatprep.mubr.bf16.mxu0 0
  %4120 = vmatmul.mubr.bf16.gmra.mxu0 %v4079
  %v4121 = vpop.f32.mrf.mxu0
  %v4122 = vadd.f32 0.0, %v4121
  %v4123 = vpop.f32.mrf.mxu0
  %v4124 = vpop.f32.mrf.mxu0
  %v4125 = vadd.f32 0.0, %v4124
  %v4126 = vpop.f32.mrf.mxu0
  %4127 = vmatprep.mubr.bf16.mxu0 0
  %4128 = vmatmul.mubr.bf16.gmra.mxu0 %v4082
  %v4129 = vpop.f32.mrf.mxu0
  %v4130 = vadd.f32 0.0, %v4129
  %v4131 = vpop.f32.mrf.mxu0
  %v4132 = vpop.f32.mrf.mxu0
  %v4133 = vadd.f32 0.0, %v4132
  %v4134 = vpop.f32.mrf.mxu0
  %4135 = vmatprep.mubr.bf16.mxu0 0
  %4136 = vmatmul.mubr.bf16.gmra.mxu0 %v4085
  %v4137 = vpop.f32.mrf.mxu0
  %v4138 = vadd.f32 0.0, %v4137
  %v4139 = vpop.f32.mrf.mxu0
  %v4140 = vpop.f32.mrf.mxu0
  %v4141 = vadd.f32 0.0, %v4140
  %v4142 = vpop.f32.mrf.mxu0
  %4143 = vdwg.mxu0
  %v4144 = vadd.f32 %v2504, %v4122
  %v4145 = vadd.f32 %v2505, %v4125
  %v4146 = vadd.f32 %v2506, %v4130
  %v4147 = vadd.f32 %v2507, %v4133
  %v4148 = vadd.f32 %v2508, %v4138
  %v4149 = vadd.f32 %v2509, %v4141
  %v4150 = vlaneseq
  %v4151 = vshrl.u32 %v4150, 7
  %v4152 = vsub.s32 2, %v4151
  %v4153 = vrot.slane %v2511, %v4152
  %v4154 = vadd.f32 %v4144, %v4153
  %v4155 = vadd.f32 %v4145, %v4153
  %v4156 = vadd.f32 %v4146, %v4153
  %v4157 = vadd.f32 %v4147, %v4153
  %v4158 = vadd.f32 %v4148, %v4153
  %v4159 = vadd.f32 %v4149, %v4153
  %v4160 = vsel %vm254, %v4154, 0.0
  %4161 = vadd.xlane.f32.xlu0 %v4160
  %v4162 = vpop.xlane.xlu0 %4161
  %v4163 = vsel %vm254, %v4155, 0.0
  %4164 = vadd.xlane.f32.xlu0 %v4163
  %v4165 = vpop.xlane.xlu0 %4164
  %v4166 = vsel %vm254, %v4156, 0.0
  %4167 = vadd.xlane.f32.xlu0 %v4166
  %v4168 = vpop.xlane.xlu0 %4167
  %v4169 = vsel %vm254, %v4157, 0.0
  %4170 = vadd.xlane.f32.xlu0 %v4169
  %v4171 = vpop.xlane.xlu0 %4170
  %v4172 = vsel %vm254, %v4158, 0.0
  %4173 = vadd.xlane.f32.xlu0 %v4172
  %v4174 = vpop.xlane.xlu0 %4173
  %v4175 = vsel %vm254, %v4159, 0.0
  %4176 = vadd.xlane.f32.xlu0 %v4175
  %v4177 = vpop.xlane.xlu0 %4176
  %v4178 = vmul.f32 %v4162, %v273
  %v4179 = vmul.f32 %v4165, %v273
  %v4180 = vmul.f32 %v4168, %v273
  %v4181 = vmul.f32 %v4171, %v273
  %v4182 = vmul.f32 %v4174, %v273
  %v4183 = vmul.f32 %v4177, %v273
  %v4184 = vsub.f32 %v4154, %v4178
  %v4185 = vsub.f32 %v4155, %v4179
  %v4186 = vsub.f32 %v4156, %v4180
  %v4187 = vsub.f32 %v4157, %v4181
  %v4188 = vsub.f32 %v4158, %v4182
  %v4189 = vsub.f32 %v4159, %v4183
  %v4190 = vmul.f32 %v4184, %v4184
  %v4191 = vmul.f32 %v4185, %v4185
  %v4192 = vmul.f32 %v4186, %v4186
  %v4193 = vmul.f32 %v4187, %v4187
  %v4194 = vmul.f32 %v4188, %v4188
  %v4195 = vmul.f32 %v4189, %v4189
  %v4196 = vsel %vm254, %v4190, 0.0
  %4197 = vadd.xlane.f32.xlu0 %v4196
  %v4198 = vpop.xlane.xlu0 %4197
  %v4199 = vsel %vm254, %v4191, 0.0
  %4200 = vadd.xlane.f32.xlu0 %v4199
  %v4201 = vpop.xlane.xlu0 %4200
  %v4202 = vsel %vm254, %v4192, 0.0
  %4203 = vadd.xlane.f32.xlu0 %v4202
  %v4204 = vpop.xlane.xlu0 %4203
  %v4205 = vsel %vm254, %v4193, 0.0
  %4206 = vadd.xlane.f32.xlu0 %v4205
  %v4207 = vpop.xlane.xlu0 %4206
  %v4208 = vsel %vm254, %v4194, 0.0
  %4209 = vadd.xlane.f32.xlu0 %v4208
  %v4210 = vpop.xlane.xlu0 %4209
  %v4211 = vsel %vm254, %v4195, 0.0
  %4212 = vadd.xlane.f32.xlu0 %v4211
  %v4213 = vpop.xlane.xlu0 %4212
  %v4214 = vmul.f32 %v4198, %v273
  %v4215 = vmul.f32 %v4201, %v273
  %v4216 = vmul.f32 %v4204, %v273
  %v4217 = vmul.f32 %v4207, %v273
  %v4218 = vmul.f32 %v4210, %v273
  %v4219 = vmul.f32 %v4213, %v273
  %v4220 = vadd.f32 %v4214, 1e-05
  %v4221 = vadd.f32 %v4215, 1e-05
  %v4222 = vadd.f32 %v4216, 1e-05
  %v4223 = vadd.f32 %v4217, 1e-05
  %v4224 = vadd.f32 %v4218, 1e-05
  %v4225 = vadd.f32 %v4219, 1e-05
  %v4226 = vrsqrt.pop %v4220
  %v4227 = vrsqrt.pop %v4221
  %v4228 = vrsqrt.pop %v4222
  %v4229 = vrsqrt.pop %v4223
  %v4230 = vrsqrt.pop %v4224
  %v4231 = vrsqrt.pop %v4225
  %v4232 = vmul.f32 %v4184, %v4226
  %v4233 = vmul.f32 %v4185, %v4227
  %v4234 = vmul.f32 %v4186, %v4228
  %v4235 = vmul.f32 %v4187, %v4229
  %v4236 = vmul.f32 %v4188, %v4230
  %v4237 = vmul.f32 %v4189, %v4231
  %v4238 = vlaneseq
  %v4239 = vshrl.u32 %v4238, 7
  %v4240 = vsub.s32 3, %v4239
  %v4241 = vrot.slane %v2511, %v4240
  %v4242 = vmul.f32 %v4232, %v4241
  %v4243 = vmul.f32 %v4233, %v4241
  %v4244 = vmul.f32 %v4234, %v4241
  %v4245 = vmul.f32 %v4235, %v4241
  %v4246 = vmul.f32 %v4236, %v4241
  %v4247 = vmul.f32 %v4237, %v4241
  %v4248 = vlaneseq
  %v4249 = vshrl.u32 %v4248, 7
  %v4250 = vsub.s32 4, %v4249
  %v4251 = vrot.slane %v2511, %v4250
  %v4252 = vadd.f32 %v4242, %v4251
  %v4253 = vadd.f32 %v4243, %v4251
  %v4254 = vadd.f32 %v4244, %v4251
  %v4255 = vadd.f32 %v4245, %v4251
  %v4256 = vadd.f32 %v4246, %v4251
  %v4257 = vadd.f32 %v4247, %v4251
  %v4258 = vpack.c.bf16 %v4253, %v4252
  %v4259 = vpack.c.bf16 %v4255, %v4254
  %v4260 = vpack.c.bf16 %v4257, %v4256
  %s4261 = scalar_lea.vmem %s8, 16
  %v4262 = vld [vmem:[%s4261] sm:$0xf]
  %v4263 = vld [vmem:[%s4261 + $0x4] sm:$0xf]
  %v4264 = vld [vmem:[%s4261 + $0x8] sm:$0xf]
  %v4265 = vld [vmem:[%s4261 + $0xc] sm:$0xf]
  %v4266 = vlaneseq
  %v4267 = vshrl.u32 %v4266, 7
  %v4268 = vsub.s32 5, %v4267
  %v4269 = vrot.slane %v2511, %v4268
  %v4274 = vunpack.c.l.b16 %v4262
  %v4275 = vunpack.c.l.b16 %v4263
  %v4276 = vunpack.c.l.b16 %v4264
  %v4277 = vunpack.c.l.b16 %v4265
  %v4278 = vpack.c.b16 %v4275, %v4274
  %v4279 = vpack.c.b16 %v4277, %v4276
  %v4283 = vsel %vm254, %v4258, 0
  %v4286 = vsel %vm254, %v4259, 0
  %v4289 = vsel %vm254, %v4260, 0
  %4291 = vmatprep.subr.bf16.mxu0 0
  %4292 = vmatpush1.bf16.msra.mxu0 0
  %4293 = vmatprep.subr.bf16.mxu0 0
  %4294 = vmatpush1.bf16.msra.mxu0 0
  %4295 = vmatprep.subr.bf16.mxu0 0
  %4296 = vmatpush1.bf16.msra.mxu0 0
  %4297 = vmatprep.subr.bf16.mxu0 0
  %4298 = vmatpush1.bf16.msra.mxu0 0
  %4299 = vmatprep.subr.bf16.mxu0 0
  %4300 = vmatpush1.bf16.msra.mxu0 0
  %4301 = vmatprep.subr.bf16.mxu0 0
  %4302 = vmatpush1.bf16.msra.mxu0 0
  %4303 = vmatprep.subr.bf16.mxu0 0
  %4304 = vmatpush1.bf16.msra.mxu0 %v4279
  %4305 = vmatprep.subr.bf16.mxu0 0
  %4306 = vmatpush1.bf16.msra.mxu0 %v4278
  %4307 = vmatprep.subr.bf16.mxu0 0
  %4308 = vmatpush2.bf16.msra.mxu0 0
  %4309 = vmatprep.subr.bf16.mxu0 0
  %4310 = vmatpush2.bf16.msra.mxu0 0
  %4311 = vmatprep.subr.bf16.mxu0 0
  %4312 = vmatpush2.bf16.msra.mxu0 0
  %4313 = vmatprep.subr.bf16.mxu0 0
  %4314 = vmatpush2.bf16.msra.mxu0 0
  %4315 = vmatprep.subr.bf16.mxu0 0
  %4316 = vmatpush2.bf16.msra.mxu0 0
  %4317 = vmatprep.subr.bf16.mxu0 0
  %4318 = vmatpush2.bf16.msra.mxu0 0
  %4319 = vmatprep.subr.bf16.mxu0 0
  %4320 = vmatpush2.bf16.msra.mxu0 0
  %4321 = vmatprep.subr.bf16.mxu0 0
  %4322 = vmatpush2.bf16.msra.mxu0 0
  %4323 = vmatprep.mubr.bf16.mxu0 0
  %4324 = vmatmul.mubr.bf16.gmra.mxu0 %v4283
  %v4325 = vpop.f32.mrf.mxu0
  %v4326 = vadd.f32 %v4269, %v4325
  %v4327 = vpop.f32.mrf.mxu0
  %v4328 = vpop.f32.mrf.mxu0
  %v4329 = vadd.f32 %v4269, %v4328
  %v4330 = vpop.f32.mrf.mxu0
  %4331 = vmatprep.mubr.bf16.mxu0 0
  %4332 = vmatmul.mubr.bf16.gmra.mxu0 %v4286
  %v4333 = vpop.f32.mrf.mxu0
  %v4334 = vadd.f32 %v4269, %v4333
  %v4335 = vpop.f32.mrf.mxu0
  %v4336 = vpop.f32.mrf.mxu0
  %v4337 = vadd.f32 %v4269, %v4336
  %v4338 = vpop.f32.mrf.mxu0
  %4339 = vmatprep.mubr.bf16.mxu0 0
  %4340 = vmatmul.mubr.bf16.gmra.mxu0 %v4289
  %v4341 = vpop.f32.mrf.mxu0
  %v4342 = vadd.f32 %v4269, %v4341
  %v4343 = vpop.f32.mrf.mxu0
  %v4344 = vpop.f32.mrf.mxu0
  %v4345 = vadd.f32 %v4269, %v4344
  %v4346 = vpop.f32.mrf.mxu0
  %4347 = vdwg.mxu0
  %v4348 = vmul.f32 %v4326, 0.5
  %v4349 = vmul.f32 %v4329, 0.5
  %v4350 = vmul.f32 %v4334, 0.5
  %v4351 = vmul.f32 %v4337, 0.5
  %v4352 = vmul.f32 %v4342, 0.5
  %v4353 = vmul.f32 %v4345, 0.5
  %v4354 = vmul.f32 %v4326, 0.70710677
  %v4355 = vmul.f32 %v4329, 0.70710677
  %v4356 = vmul.f32 %v4334, 0.70710677
  %v4357 = vmul.f32 %v4337, 0.70710677
  %v4358 = vmul.f32 %v4342, 0.70710677
  %v4359 = vmul.f32 %v4345, 0.70710677
  %v4360 = vand.u32 2147483647, %v4354
  %v4361 = vand.u32 2147483647, %v4355
  %v4362 = vand.u32 2147483647, %v4356
  %v4363 = vand.u32 2147483647, %v4357
  %v4364 = vand.u32 2147483647, %v4358
  %v4365 = vand.u32 2147483647, %v4359
  %v4366 = vmul.f32 %v4360, 0.3275911
  %v4367 = vmul.f32 %v4361, 0.3275911
  %v4368 = vmul.f32 %v4362, 0.3275911
  %v4369 = vmul.f32 %v4363, 0.3275911
  %v4370 = vmul.f32 %v4364, 0.3275911
  %v4371 = vmul.f32 %v4365, 0.3275911
  %v4372 = vadd.f32 %v4366, 1.0
  %v4373 = vadd.f32 %v4367, 1.0
  %v4374 = vadd.f32 %v4368, 1.0
  %v4375 = vadd.f32 %v4369, 1.0
  %v4376 = vadd.f32 %v4370, 1.0
  %v4377 = vadd.f32 %v4371, 1.0
  %v4378 = vrcp.pop %v4372
  %v4379 = vmul.f32 1.0, %v4378
  %v4380 = vrcp.pop %v4373
  %v4381 = vmul.f32 1.0, %v4380
  %v4382 = vrcp.pop %v4374
  %v4383 = vmul.f32 1.0, %v4382
  %v4384 = vrcp.pop %v4375
  %v4385 = vmul.f32 1.0, %v4384
  %v4386 = vrcp.pop %v4376
  %v4387 = vmul.f32 1.0, %v4386
  %v4388 = vrcp.pop %v4377
  %v4389 = vmul.f32 1.0, %v4388
  %v4390 = vmul.f32 %v4379, 1.0614054
  %v4391 = vmul.f32 %v4381, 1.0614054
  %v4392 = vmul.f32 %v4383, 1.0614054
  %v4393 = vmul.f32 %v4385, 1.0614054
  %v4394 = vmul.f32 %v4387, 1.0614054
  %v4395 = vmul.f32 %v4389, 1.0614054
  %v4396 = vadd.f32 %v4390, -1.4531521
  %v4397 = vadd.f32 %v4391, -1.4531521
  %v4398 = vadd.f32 %v4392, -1.4531521
  %v4399 = vadd.f32 %v4393, -1.4531521
  %v4400 = vadd.f32 %v4394, -1.4531521
  %v4401 = vadd.f32 %v4395, -1.4531521
  %v4402 = vmul.f32 %v4396, %v4379
  %v4403 = vmul.f32 %v4397, %v4381
  %v4404 = vmul.f32 %v4398, %v4383
  %v4405 = vmul.f32 %v4399, %v4385
  %v4406 = vmul.f32 %v4400, %v4387
  %v4407 = vmul.f32 %v4401, %v4389
  %v4408 = vadd.f32 %v4402, 1.4214138
  %v4409 = vadd.f32 %v4403, 1.4214138
  %v4410 = vadd.f32 %v4404, 1.4214138
  %v4411 = vadd.f32 %v4405, 1.4214138
  %v4412 = vadd.f32 %v4406, 1.4214138
  %v4413 = vadd.f32 %v4407, 1.4214138
  %v4414 = vmul.f32 %v4408, %v4379
  %v4415 = vmul.f32 %v4409, %v4381
  %v4416 = vmul.f32 %v4410, %v4383
  %v4417 = vmul.f32 %v4411, %v4385
  %v4418 = vmul.f32 %v4412, %v4387
  %v4419 = vmul.f32 %v4413, %v4389
  %v4420 = vadd.f32 %v4414, -0.28449672
  %v4421 = vadd.f32 %v4415, -0.28449672
  %v4422 = vadd.f32 %v4416, -0.28449672
  %v4423 = vadd.f32 %v4417, -0.28449672
  %v4424 = vadd.f32 %v4418, -0.28449672
  %v4425 = vadd.f32 %v4419, -0.28449672
  %v4426 = vmul.f32 %v4420, %v4379
  %v4427 = vmul.f32 %v4421, %v4381
  %v4428 = vmul.f32 %v4422, %v4383
  %v4429 = vmul.f32 %v4423, %v4385
  %v4430 = vmul.f32 %v4424, %v4387
  %v4431 = vmul.f32 %v4425, %v4389
  %v4432 = vadd.f32 %v4426, 0.2548296
  %v4433 = vadd.f32 %v4427, 0.2548296
  %v4434 = vadd.f32 %v4428, 0.2548296
  %v4435 = vadd.f32 %v4429, 0.2548296
  %v4436 = vadd.f32 %v4430, 0.2548296
  %v4437 = vadd.f32 %v4431, 0.2548296
  %v4438 = vmul.f32 %v4432, %v4379
  %v4439 = vmul.f32 %v4433, %v4381
  %v4440 = vmul.f32 %v4434, %v4383
  %v4441 = vmul.f32 %v4435, %v4385
  %v4442 = vmul.f32 %v4436, %v4387
  %v4443 = vmul.f32 %v4437, %v4389
  %v4444 = vsub.f32 0.0, %v4360
  %v4445 = vsub.f32 0.0, %v4361
  %v4446 = vsub.f32 0.0, %v4362
  %v4447 = vsub.f32 0.0, %v4363
  %v4448 = vsub.f32 0.0, %v4364
  %v4449 = vsub.f32 0.0, %v4365
  %v4450 = vmul.f32 %v4444, %v4360
  %v4451 = vmul.f32 %v4445, %v4361
  %v4452 = vmul.f32 %v4446, %v4362
  %v4453 = vmul.f32 %v4447, %v4363
  %v4454 = vmul.f32 %v4448, %v4364
  %v4455 = vmul.f32 %v4449, %v4365
  %v4456 = vmul.f32 %v4450, 1.442695
  %v4457 = vpow.pop %v4456
  %v4458 = vmul.f32 %v4451, 1.442695
  %v4459 = vpow.pop %v4458
  %v4460 = vmul.f32 %v4452, 1.442695
  %v4461 = vpow.pop %v4460
  %v4462 = vmul.f32 %v4453, 1.442695
  %v4463 = vpow.pop %v4462
  %v4464 = vmul.f32 %v4454, 1.442695
  %v4465 = vpow.pop %v4464
  %v4466 = vmul.f32 %v4455, 1.442695
  %v4467 = vpow.pop %v4466
  %v4468 = vmul.f32 %v4438, %v4457
  %v4469 = vmul.f32 %v4439, %v4459
  %v4470 = vmul.f32 %v4440, %v4461
  %v4471 = vmul.f32 %v4441, %v4463
  %v4472 = vmul.f32 %v4442, %v4465
  %v4473 = vmul.f32 %v4443, %v4467
  %v4474 = vsub.f32 1.0, %v4468
  %v4475 = vsub.f32 1.0, %v4469
  %v4476 = vsub.f32 1.0, %v4470
  %v4477 = vsub.f32 1.0, %v4471
  %v4478 = vsub.f32 1.0, %v4472
  %v4479 = vsub.f32 1.0, %v4473
  %vm4480 = vcmp.ge.f32.partialorder %v4354, 0.0
  %vm4481 = vcmp.ge.f32.partialorder %v4355, 0.0
  %vm4482 = vcmp.ge.f32.partialorder %v4356, 0.0
  %vm4483 = vcmp.ge.f32.partialorder %v4357, 0.0
  %vm4484 = vcmp.ge.f32.partialorder %v4358, 0.0
  %vm4485 = vcmp.ge.f32.partialorder %v4359, 0.0
  %v4486 = vsub.f32 0.0, %v4474
  %v4487 = vsub.f32 0.0, %v4475
  %v4488 = vsub.f32 0.0, %v4476
  %v4489 = vsub.f32 0.0, %v4477
  %v4490 = vsub.f32 0.0, %v4478
  %v4491 = vsub.f32 0.0, %v4479
  %v4492 = vsel %vm4480, %v4474, %v4486
  %v4493 = vsel %vm4481, %v4475, %v4487
  %v4494 = vsel %vm4482, %v4476, %v4488
  %v4495 = vsel %vm4483, %v4477, %v4489
  %v4496 = vsel %vm4484, %v4478, %v4490
  %v4497 = vsel %vm4485, %v4479, %v4491
  %v4498 = vadd.f32 %v4492, 1.0
  %v4499 = vadd.f32 %v4493, 1.0
  %v4500 = vadd.f32 %v4494, 1.0
  %v4501 = vadd.f32 %v4495, 1.0
  %v4502 = vadd.f32 %v4496, 1.0
  %v4503 = vadd.f32 %v4497, 1.0
  %v4504 = vmul.f32 %v4348, %v4498
  %v4505 = vmul.f32 %v4349, %v4499
  %v4506 = vmul.f32 %v4350, %v4500
  %v4507 = vmul.f32 %v4351, %v4501
  %v4508 = vmul.f32 %v4352, %v4502
  %v4509 = vmul.f32 %v4353, %v4503
  %v4510 = vpack.c.bf16 %v4505, %v4504
  %v4511 = vpack.c.bf16 %v4507, %v4506
  %v4512 = vpack.c.bf16 %v4509, %v4508
  %s4513 = scalar_lea.vmem %s9, 16
  %v4514 = vld [vmem:[%s4513] sm:$0xf]
  %v4515 = vld [vmem:[%s4513 + $0x4] sm:$0xf]
  %v4516 = vld [vmem:[%s4513 + $0x8] sm:$0xf]
  %v4517 = vld [vmem:[%s4513 + $0xc] sm:$0xf]
  %v4518 = vlaneseq
  %v4519 = vshrl.u32 %v4518, 7
  %v4520 = vsub.s32 6, %v4519
  %v4521 = vrot.slane %v2511, %v4520
  %v4526 = vunpack.c.l.b16 %v4514
  %v4527 = vunpack.c.l.b16 %v4515
  %v4528 = vunpack.c.l.b16 %v4516
  %v4529 = vunpack.c.l.b16 %v4517
  %v4530 = vpack.c.b16 %v4527, %v4526
  %v4531 = vpack.c.b16 %v4529, %v4528
  %v4535 = vsel %vm254, %v4510, 0
  %v4538 = vsel %vm254, %v4511, 0
  %v4541 = vsel %vm254, %v4512, 0
  %4543 = vmatprep.subr.bf16.mxu0 0
  %4544 = vmatpush1.bf16.msra.mxu0 0
  %4545 = vmatprep.subr.bf16.mxu0 0
  %4546 = vmatpush1.bf16.msra.mxu0 0
  %4547 = vmatprep.subr.bf16.mxu0 0
  %4548 = vmatpush1.bf16.msra.mxu0 0
  %4549 = vmatprep.subr.bf16.mxu0 0
  %4550 = vmatpush1.bf16.msra.mxu0 0
  %4551 = vmatprep.subr.bf16.mxu0 0
  %4552 = vmatpush1.bf16.msra.mxu0 0
  %4553 = vmatprep.subr.bf16.mxu0 0
  %4554 = vmatpush1.bf16.msra.mxu0 0
  %4555 = vmatprep.subr.bf16.mxu0 0
  %4556 = vmatpush1.bf16.msra.mxu0 %v4531
  %4557 = vmatprep.subr.bf16.mxu0 0
  %4558 = vmatpush1.bf16.msra.mxu0 %v4530
  %4559 = vmatprep.subr.bf16.mxu0 0
  %4560 = vmatpush2.bf16.msra.mxu0 0
  %4561 = vmatprep.subr.bf16.mxu0 0
  %4562 = vmatpush2.bf16.msra.mxu0 0
  %4563 = vmatprep.subr.bf16.mxu0 0
  %4564 = vmatpush2.bf16.msra.mxu0 0
  %4565 = vmatprep.subr.bf16.mxu0 0
  %4566 = vmatpush2.bf16.msra.mxu0 0
  %4567 = vmatprep.subr.bf16.mxu0 0
  %4568 = vmatpush2.bf16.msra.mxu0 0
  %4569 = vmatprep.subr.bf16.mxu0 0
  %4570 = vmatpush2.bf16.msra.mxu0 0
  %4571 = vmatprep.subr.bf16.mxu0 0
  %4572 = vmatpush2.bf16.msra.mxu0 0
  %4573 = vmatprep.subr.bf16.mxu0 0
  %4574 = vmatpush2.bf16.msra.mxu0 0
  %4575 = vmatprep.mubr.bf16.mxu0 0
  %4576 = vmatmul.mubr.bf16.gmra.mxu0 %v4535
  %v4577 = vpop.f32.mrf.mxu0
  %v4578 = vadd.f32 %v4521, %v4577
  %v4579 = vpop.f32.mrf.mxu0
  %v4580 = vpop.f32.mrf.mxu0
  %v4581 = vadd.f32 %v4521, %v4580
  %v4582 = vpop.f32.mrf.mxu0
  %4583 = vmatprep.mubr.bf16.mxu0 0
  %4584 = vmatmul.mubr.bf16.gmra.mxu0 %v4538
  %v4585 = vpop.f32.mrf.mxu0
  %v4586 = vadd.f32 %v4521, %v4585
  %v4587 = vpop.f32.mrf.mxu0
  %v4588 = vpop.f32.mrf.mxu0
  %v4589 = vadd.f32 %v4521, %v4588
  %v4590 = vpop.f32.mrf.mxu0
  %4591 = vmatprep.mubr.bf16.mxu0 0
  %4592 = vmatmul.mubr.bf16.gmra.mxu0 %v4541
  %v4593 = vpop.f32.mrf.mxu0
  %v4594 = vadd.f32 %v4521, %v4593
  %v4595 = vpop.f32.mrf.mxu0
  %v4596 = vpop.f32.mrf.mxu0
  %v4597 = vadd.f32 %v4521, %v4596
  %v4598 = vpop.f32.mrf.mxu0
  %4599 = vdwg.mxu0
  %v4600 = vadd.f32 %v4154, %v4578
  %v4601 = vadd.f32 %v4155, %v4581
  %v4602 = vadd.f32 %v4156, %v4586
  %v4603 = vadd.f32 %v4157, %v4589
  %v4604 = vadd.f32 %v4158, %v4594
  %v4605 = vadd.f32 %v4159, %v4597
  %v4612 = vrot.slane %v4601, 7
  %vm4613 = vcmask 1041409
  %v4614 = vsel %vm4613, %v4612, %v4600
  %v4615 = vrot.slane %v4602, 6
  %vm4616 = vcmask 1042434
  %v4617 = vsel %vm4616, %v4615, %v4614
  %v4618 = vrot.slane %v4603, 5
  %vm4619 = vcmask 1043459
  %v4620 = vsel %vm4619, %v4618, %v4617
  %v4621 = vrot.slane %v4604, 4
  %vm4622 = vcmask 1044484
  %v4623 = vsel %vm4622, %v4621, %v4620
  %v4624 = vrot.slane %v4605, 3
  %vm4625 = vcmask 1045509
  %v4626 = vsel %vm4625, %v4624, %v4623
  %vm4628 = vcmask 259072
  %v4629 = vsel %vm4628, %v4626, 0.0
  %4630 = vadd.xlane.f32.xlu0 %v4629
  %v4631 = vpop.xlane.xlu0 %4630
  %v4632 = vmul.f32 %v4631, %v273
  %v4634 = vrot.slane %v4632, 1
  %v4635 = vrot.slane %v4632, 2
  %v4636 = vrot.slane %v4632, 3
  %v4637 = vrot.slane %v4632, 4
  %v4638 = vrot.slane %v4632, 5
  %v4645 = vsub.f32 %v4600, %v4632
  %v4646 = vsub.f32 %v4601, %v4634
  %v4647 = vsub.f32 %v4602, %v4635
  %v4648 = vsub.f32 %v4603, %v4636
  %v4649 = vsub.f32 %v4604, %v4637
  %v4650 = vsub.f32 %v4605, %v4638
  %v4651 = vmul.f32 %v4645, %v4645
  %v4652 = vmul.f32 %v4646, %v4646
  %v4653 = vmul.f32 %v4647, %v4647
  %v4654 = vmul.f32 %v4648, %v4648
  %v4655 = vmul.f32 %v4649, %v4649
  %v4656 = vmul.f32 %v4650, %v4650
  %v4663 = vrot.slane %v4652, 7
  %v4664 = vsel %vm4613, %v4663, %v4651
  %v4665 = vrot.slane %v4653, 6
  %v4666 = vsel %vm4616, %v4665, %v4664
  %v4667 = vrot.slane %v4654, 5
  %v4668 = vsel %vm4619, %v4667, %v4666
  %v4669 = vrot.slane %v4655, 4
  %v4670 = vsel %vm4622, %v4669, %v4668
  %v4671 = vrot.slane %v4656, 3
  %v4672 = vsel %vm4625, %v4671, %v4670
  %v4674 = vsel %vm4628, %v4672, 0.0
  %4675 = vadd.xlane.f32.xlu0 %v4674
  %v4676 = vpop.xlane.xlu0 %4675
  %v4677 = vmul.f32 %v4676, %v273
  %v4678 = vadd.f32 %v4677, 1e-05
  %v4679 = vrsqrt.pop %v4678
  %v4681 = vrot.slane %v4679, 1
  %v4682 = vrot.slane %v4679, 2
  %v4683 = vrot.slane %v4679, 3
  %v4684 = vrot.slane %v4679, 4
  %v4685 = vrot.slane %v4679, 5
  %v4692 = vmul.f32 %v4645, %v4679
  %v4693 = vmul.f32 %v4646, %v4681
  %v4694 = vmul.f32 %v4647, %v4682
  %v4695 = vmul.f32 %v4648, %v4683
  %v4696 = vmul.f32 %v4649, %v4684
  %v4697 = vmul.f32 %v4650, %v4685
  %v4698 = vlaneseq
  %v4699 = vshrl.u32 %v4698, 7
  %v4700 = vsub.s32 5, %v4699
  %v4701 = vrot.slane %v42, %v4700
  %v4702 = vmul.f32 %v4692, %v4701
  %v4703 = vmul.f32 %v4693, %v4701
  %v4704 = vmul.f32 %v4694, %v4701
  %v4705 = vmul.f32 %v4695, %v4701
  %v4706 = vmul.f32 %v4696, %v4701
  %v4707 = vmul.f32 %v4697, %v4701
  %v4708 = vlaneseq
  %v4709 = vshrl.u32 %v4708, 7
  %v4710 = vsub.s32 6, %v4709
  %v4711 = vrot.slane %v42, %v4710
  %v4712 = vadd.f32 %v4702, %v4711
  %v4713 = vadd.f32 %v4703, %v4711
  %v4714 = vadd.f32 %v4704, %v4711
  %v4715 = vadd.f32 %v4705, %v4711
  %v4716 = vadd.f32 %v4706, %v4711
  %v4717 = vadd.f32 %v4707, %v4711
  %v4718 = vpack.c.bf16 %v4712, %v4712
  %v4719 = vpack.c.bf16 %v4713, %v4713
  %v4720 = vpack.c.bf16 %v4714, %v4714
  %v4721 = vpack.c.bf16 %v4715, %v4715
  %v4722 = vpack.c.bf16 %v4716, %v4716
  %v4723 = vpack.c.bf16 %v4717, %v4717
  %v4724 = vld [vmem:[%s10] sm:$0xf]
  %v4725 = vld [vmem:[%s10 + $0x4] sm:$0xf]
  %v4726 = vld [vmem:[%s10 + $0x8] sm:$0xf]
  %v4727 = vld [vmem:[%s10 + $0xc] sm:$0xf]
  %v4728 = vlaneseq
  %v4729 = vshrl.u32 %v4728, 7
  %v4730 = vsub.s32 7, %v4729
  %v4731 = vrot.slane %v42, %v4730
  %v4738 = vunpack.c.l.b16 %v4718
  %v4739 = vunpack.c.l.b16 %v4719
  %v4740 = vunpack.c.l.b16 %v4720
  %v4741 = vunpack.c.l.b16 %v4721
  %v4742 = vunpack.c.l.b16 %v4722
  %v4743 = vunpack.c.l.b16 %v4723
  %v4744 = vrot.slane %v4739, 7
  %v4745 = vsel %vm4613, %v4744, %v4738
  %v4746 = vrot.slane %v4740, 6
  %v4747 = vsel %vm4616, %v4746, %v4745
  %v4748 = vrot.slane %v4741, 5
  %v4749 = vsel %vm4619, %v4748, %v4747
  %v4750 = vrot.slane %v4742, 4
  %v4751 = vsel %vm4622, %v4750, %v4749
  %v4752 = vrot.slane %v4743, 3
  %v4753 = vsel %vm4625, %v4752, %v4751
  %v4754 = vpack.c.b16 %v4753, %v4753
  %v4759 = vunpack.c.l.b16 %v4724
  %v4760 = vunpack.c.l.b16 %v4725
  %v4761 = vunpack.c.l.b16 %v4726
  %v4762 = vunpack.c.l.b16 %v4727
  %v4763 = vpack.c.b16 %v4760, %v4759
  %v4764 = vpack.c.b16 %v4762, %v4761
  %v4768 = vsel %vm254, %v4754, 0
  %4770 = vmatprep.subr.bf16.mxu0 0
  %4771 = vmatpush1.bf16.msra.mxu0 0
  %4772 = vmatprep.subr.bf16.mxu0 0
  %4773 = vmatpush1.bf16.msra.mxu0 0
  %4774 = vmatprep.subr.bf16.mxu0 0
  %4775 = vmatpush1.bf16.msra.mxu0 0
  %4776 = vmatprep.subr.bf16.mxu0 0
  %4777 = vmatpush1.bf16.msra.mxu0 0
  %4778 = vmatprep.subr.bf16.mxu0 0
  %4779 = vmatpush1.bf16.msra.mxu0 0
  %4780 = vmatprep.subr.bf16.mxu0 0
  %4781 = vmatpush1.bf16.msra.mxu0 0
  %4782 = vmatprep.subr.bf16.mxu0 0
  %4783 = vmatpush1.bf16.msra.mxu0 %v4764
  %4784 = vmatprep.subr.bf16.mxu0 0
  %4785 = vmatpush1.bf16.msra.mxu0 %v4763
  %4786 = vmatprep.subr.bf16.mxu0 0
  %4787 = vmatpush2.bf16.msra.mxu0 0
  %4788 = vmatprep.subr.bf16.mxu0 0
  %4789 = vmatpush2.bf16.msra.mxu0 0
  %4790 = vmatprep.subr.bf16.mxu0 0
  %4791 = vmatpush2.bf16.msra.mxu0 0
  %4792 = vmatprep.subr.bf16.mxu0 0
  %4793 = vmatpush2.bf16.msra.mxu0 0
  %4794 = vmatprep.subr.bf16.mxu0 0
  %4795 = vmatpush2.bf16.msra.mxu0 0
  %4796 = vmatprep.subr.bf16.mxu0 0
  %4797 = vmatpush2.bf16.msra.mxu0 0
  %4798 = vmatprep.subr.bf16.mxu0 0
  %4799 = vmatpush2.bf16.msra.mxu0 0
  %4800 = vmatprep.subr.bf16.mxu0 0
  %4801 = vmatpush2.bf16.msra.mxu0 0
  %4802 = vmatprep.mubr.bf16.mxu0 0
  %4803 = vmatmul.mubr.bf16.gmra.mxu0 %v4768
  %v4804 = vpop.f32.mrf.mxu0
  %v4805 = vadd.f32 %v4731, %v4804
  %v4806 = vpop.f32.mrf.mxu0
  %v4807 = vpop.f32.mrf.mxu0
  %v4808 = vpop.f32.mrf.mxu0
  %4809 = vdwg.mxu0
  %vm4810 = vcmask 29696
  %4811 = vst.msk [vmem:[%s12] sm:$0x3f] %vm4810, %v4805
  // Predicated region
  $region50: #{vit_crf_forward.1} parent=0 // pred_check
    _
  $region51: #{vit_crf_forward.1} parent=0 // pred_check_branch
    %4813 = sbr.rel (0) target = $region53
  $region52: #{vit_crf_forward.1} parent=0 // pred_region
    _
  $region53: #{vit_crf_forward.1} parent=0 // pred_fallthru
    _
  // Predicated region
  $region54: #{vit_crf_forward.1} parent=0 // pred_check
    _
  $region55: #{vit_crf_forward.1} parent=0 // pred_check_branch
    %4815 = sbr.rel (0) target = $region57
  $region56: #{vit_crf_forward.1} parent=0 // pred_region
    _
  $region57: #{vit_crf_forward.1} parent=0 // pred_fallthru
    _

</llo_original>
